<compile_context>
chip_gen: v6e
topology: v6e:2x2x1
jax: 0.10.0
libtpu: 0.0.40
codegen_flags: <defaults>
</compile_context>

<pallas_src>
import functools
import math

import jax
import jax.numpy as jnp
from jax.experimental import pallas as pl
from jax.experimental.pallas import tpu as pltpu


def _decoder_kernel(x_ref, bias_ref,
                    wq_ref, wk_ref, wv_ref, wo_ref,
                    ln1g_ref, ln1b_ref,
                    w1_ref, b1_ref, w2_ref, b2_ref,
                    ln2g_ref, ln2b_ref,
                    o_ref,
                    act_ref,
                    *, n_head, d_k, d_v, eps):
    """One grid step == one TransformerDecoderLayer applied to the VMEM-resident
    activation carry `act_ref` of shape (B*L, D)."""
    del d_v  # implied by the wo/wv ref shapes
    layer = pl.program_id(0)
    n_layers = pl.num_programs(0)

    # Layer 0: bring the (flattened) input activation into the VMEM carry.
    @pl.when(layer == 0)
    def _():
        act_ref[...] = x_ref[...].astype(jnp.float32)

    x = act_ref[...]                                    # (N, D) f32, N = B*L
    n_tok, d_model = x.shape
    inv_temp = 1.0 / math.sqrt(d_k)

    # ---- multi-head self-attention (head-batched, no per-head loop) --------
    xh = jnp.broadcast_to(x, (n_head, n_tok, d_model))              # (H, N, D)
    q = jnp.einsum('hnd,hdk->hnk', xh, wq_ref[0],
                   preferred_element_type=jnp.float32) * inv_temp   # (H, N, dk)
    k = jnp.einsum('hnd,hdk->hnk', xh, wk_ref[0],
                   preferred_element_type=jnp.float32)              # (H, N, dk)
    v = jnp.einsum('hnd,hdk->hnk', xh, wv_ref[0],
                   preferred_element_type=jnp.float32)              # (H, N, dv)

    # scores + additive bias (user mask + cross-batch block mask), f32.
    # bias is (N, N) and broadcasts across the head axis.
    s = jnp.einsum('hqd,hkd->hqk', q, k,
                   preferred_element_type=jnp.float32) + bias_ref[...]
    m = jnp.max(s, axis=-1, keepdims=True)
    p = jnp.exp(s - m)
    p = p * pl.reciprocal(jnp.sum(p, axis=-1, keepdims=True), approx=True)

    ctx = jnp.einsum('hqk,hkd->hqd', p, v,
                     preferred_element_type=jnp.float32)            # (H, N, dv)
    proj = jnp.einsum('hqd,hde->hqe', ctx, wo_ref[0],
                      preferred_element_type=jnp.float32)           # (H, N, D)
    attn = jnp.sum(proj, axis=0)                                    # (N, D)

    # residual + LayerNorm (eps=1e-6, biased variance, rsqrt on EUP)
    y = attn + x
    mu = jnp.mean(y, axis=-1, keepdims=True)
    var = jnp.mean((y - mu) ** 2, axis=-1, keepdims=True)
    y = (y - mu) * jax.lax.rsqrt(var + eps) * ln1g_ref[0] + ln1b_ref[0]

    # ---- position-wise feed-forward ----------------------------------------
    h1 = jnp.dot(y, w1_ref[0], preferred_element_type=jnp.float32) + b1_ref[0]
    h1 = jnp.maximum(h1, 0.0)
    f = jnp.dot(h1, w2_ref[0], preferred_element_type=jnp.float32) + b2_ref[0]

    z = f + y
    mu2 = jnp.mean(z, axis=-1, keepdims=True)
    var2 = jnp.mean((z - mu2) ** 2, axis=-1, keepdims=True)
    z = (z - mu2) * jax.lax.rsqrt(var2 + eps) * ln2g_ref[0] + ln2b_ref[0]

    act_ref[...] = z                     # carry to the next layer (stays in VMEM)

    @pl.when(layer == n_layers - 1)
    def _():
        o_ref[...] = z.astype(o_ref.dtype)


def transformer_decoder(x, mask, stacked_params, *, n_head, d_k, d_v):
    """Mirrors TransformerDecoder.forward: returns [final_hidden_states].

    x: (B, L, D); mask: (B, L, L), nonzero => masked (shared across heads,
    i.e. the usual (B, 1, L, L) torch-mask broadcast).
    """
    B, L, D = x.shape
    n_layers = stacked_params["wq"].shape[0]
    n_tok = B * L

    # ---- wrapper-side (free) weight re-layout: split the head axis ---------
    p = stacked_params
    wq = p["wq"].reshape(n_layers, D, n_head, d_k).transpose(0, 2, 1, 3)  # (Lyr,H,D,dk)
    wk = p["wk"].reshape(n_layers, D, n_head, d_k).transpose(0, 2, 1, 3)
    wv = p["wv"].reshape(n_layers, D, n_head, d_v).transpose(0, 2, 1, 3)
    wo = p["wo"].reshape(n_layers, n_head, d_v, D)                        # (Lyr,H,dv,D)

    # ---- combined additive attention bias, computed ONCE for the whole call.
    # user mask: nonzero => masked (-1e9), matching masked_fill(mask != 0, -1e9).
    # Cross-batch entries get -1e30 (strictly more negative) so the flattened
    # (B*L)-token attention never mixes batch elements.
    user = jnp.where(mask != 0, -1000000000.0, 0.0).astype(jnp.float32)   # (B,L,L)
    same_batch = jnp.eye(B, dtype=bool)[:, None, :, None]                 # (B,1,B,1)
    bias = jnp.where(same_batch, user[:, :, None, :], -1e30)              # (B,L,B,L)
    bias = bias.reshape(n_tok, n_tok)

    x2 = x.reshape(n_tok, D)                                              # lane-dense slab

    kernel = functools.partial(_decoder_kernel, n_head=n_head, d_k=d_k,
                               d_v=d_v, eps=1e-6)

    def shared(a):      # whole array, resident for every layer (DMA'd once)
        return pl.BlockSpec(a.shape, lambda l: (0,) * a.ndim)

    def per_layer(a):   # one layer's slice per grid step (auto double-buffered)
        return pl.BlockSpec((1,) + a.shape[1:],
                            lambda l: (l,) + (0,) * (a.ndim - 1))

    out2 = pl.pallas_call(
        kernel,
        out_shape=jax.ShapeDtypeStruct((n_tok, D), x.dtype),
        grid_spec=pltpu.PrefetchScalarGridSpec(
            num_scalar_prefetch=0,
            grid=(n_layers,),
            in_specs=[
                shared(x2), shared(bias),
                per_layer(wq), per_layer(wk), per_layer(wv), per_layer(wo),
                per_layer(p["ln1_g"]), per_layer(p["ln1_b"]),
                per_layer(p["w1"]), per_layer(p["b1"]),
                per_layer(p["w2"]), per_layer(p["b2"]),
                per_layer(p["ln2_g"]), per_layer(p["ln2_b"]),
            ],
            out_specs=pl.BlockSpec((n_tok, D), lambda l: (0, 0)),
            scratch_shapes=[pltpu.VMEM((n_tok, D), jnp.float32)],
        ),
        compiler_params=pltpu.CompilerParams(
            dimension_semantics=("arbitrary",),
            vmem_limit_bytes=32 * 1024 * 1024),
    )(x2, bias, wq, wk, wv, wo,
      p["ln1_g"], p["ln1_b"], p["w1"], p["b1"], p["w2"], p["b2"],
      p["ln2_g"], p["ln2_b"])

    return [out2.reshape(B, L, D)]


# ----------------------------- parameters -----------------------------------

def init_layer_params(key, d_model, d_inner, n_head, d_k, d_v):
    """Linear weights stored pre-transposed as (in_features, out_features)."""
    ks = jax.random.split(key, 6)
    s = 0.05
    return {
        "wq": s * jax.random.normal(ks[0], (d_model, n_head * d_k), jnp.float32),
        "wk": s * jax.random.normal(ks[1], (d_model, n_head * d_k), jnp.float32),
        "wv": s * jax.random.normal(ks[2], (d_model, n_head * d_v), jnp.float32),
        "wo": s * jax.random.normal(ks[3], (n_head * d_v, d_model), jnp.float32),
        "ln1_g": jnp.ones((1, d_model), jnp.float32),
        "ln1_b": jnp.zeros((1, d_model), jnp.float32),
        "w1": s * jax.random.normal(ks[4], (d_model, d_inner), jnp.float32),
        "b1": jnp.zeros((1, d_inner), jnp.float32),
        "w2": s * jax.random.normal(ks[5], (d_inner, d_model), jnp.float32),
        "b2": jnp.zeros((1, d_model), jnp.float32),
        "ln2_g": jnp.ones((1, d_model), jnp.float32),
        "ln2_b": jnp.zeros((1, d_model), jnp.float32),
    }


def stack_layer_params(layer_params):
    """Stack a list of per-layer param dicts along a new leading layer axis."""
    return jax.tree.map(lambda *xs: jnp.stack(xs, axis=0), *layer_params)


# -------------------------- pure-JAX reference -------------------------------

def _layer_norm(x, g, b, eps):
    mu = jnp.mean(x, axis=-1, keepdims=True)
    var = jnp.mean((x - mu) ** 2, axis=-1, keepdims=True)
    return (x - mu) / jnp.sqrt(var + eps) * g + b


def reference_decoder(x, mask, layer_params, *, n_head, d_k, d_v):
    eps = 1e-6
    B, L, D = x.shape
    h = x
    for p in layer_params:
        q = (h @ p["wq"]).reshape(B, L, n_head, d_k).transpose(0, 2, 1, 3)
        k = (h @ p["wk"]).reshape(B, L, n_head, d_k).transpose(0, 2, 1, 3)
        v = (h @ p["wv"]).reshape(B, L, n_head, d_v).transpose(0, 2, 1, 3)
        s = (q / math.sqrt(d_k)) @ jnp.swapaxes(k, -1, -2)         # (B,H,L,L)
        s = jnp.where(mask[:, None, :, :] != 0, -1000000000.0, s)
        a = jax.nn.softmax(s, axis=-1)
        o = (a @ v).transpose(0, 2, 1, 3).reshape(B, L, n_head * d_v)
        o = o @ p["wo"] + h
        o = _layer_norm(o, p["ln1_g"][0], p["ln1_b"][0], eps)
        f = jnp.maximum(o @ p["w1"] + p["b1"][0], 0.0) @ p["w2"] + p["b2"][0]
        h = _layer_norm(f + o, p["ln2_g"][0], p["ln2_b"][0], eps)
    return h


if __name__ == "__main__":
    # small config consistent with the module
    n_layers, n_head, d_k, d_v = 2, 4, 8, 8
    d_model, d_inner = 32, 64
    B, L = 2, 8

    key = jax.random.PRNGKey(0)
    k_x, *k_layers = jax.random.split(key, n_layers + 1)

    x = jax.random.normal(k_x, (B, L, d_model), jnp.float32)
    # causal-style mask: nonzero entries are masked out (matches
    # masked_fill(mask != 0, -1e9) semantics)
    causal = jnp.triu(jnp.ones((L, L), jnp.float32), k=1)
    mask = jnp.broadcast_to(causal, (B, L, L))

    layer_params = [
        init_layer_params(k_layers[i], d_model, d_inner, n_head, d_k, d_v)
        for i in range(n_layers)
    ]
    stacked = stack_layer_params(layer_params)

    out = transformer_decoder(x, mask, stacked,
                              n_head=n_head, d_k=d_k, d_v=d_v)
    jax.block_until_ready(out[0])

    assert out[0].shape == (B, L, d_model)
    assert bool(jnp.all(jnp.isfinite(out[0])))

    ref = reference_decoder(x, mask, layer_params,
                            n_head=n_head, d_k=d_k, d_v=d_v)
    err = float(jnp.max(jnp.abs(out[0] - ref)))
    assert err < 5e-2, f"kernel vs reference mismatch: max abs err = {err}"

    print("KERNEL_OK")
</pallas_src>

<mosaic_0001>
module attributes {stable_mosaic.version = 11 : i64} {
  func.func @_decoder_kernel(%arg0: i32, %arg1: memref<16x32xf32, #tpu.memory_space<vmem>>, %arg2: memref<16x16xf32, #tpu.memory_space<vmem>>, %arg3: memref<1x4x32x8xf32, #tpu.memory_space<vmem>>, %arg4: memref<1x4x32x8xf32, #tpu.memory_space<vmem>>, %arg5: memref<1x4x32x8xf32, #tpu.memory_space<vmem>>, %arg6: memref<1x4x8x32xf32, #tpu.memory_space<vmem>>, %arg7: memref<1x1x32xf32, #tpu.memory_space<vmem>>, %arg8: memref<1x1x32xf32, #tpu.memory_space<vmem>>, %arg9: memref<1x32x64xf32, #tpu.memory_space<vmem>>, %arg10: memref<1x1x64xf32, #tpu.memory_space<vmem>>, %arg11: memref<1x64x32xf32, #tpu.memory_space<vmem>>, %arg12: memref<1x1x32xf32, #tpu.memory_space<vmem>>, %arg13: memref<1x1x32xf32, #tpu.memory_space<vmem>>, %arg14: memref<1x1x32xf32, #tpu.memory_space<vmem>>, %arg15: memref<16x32xf32, #tpu.memory_space<vmem>>, %arg16: memref<16x32xf32, #tpu.memory_space<vmem>>) attributes {dimension_semantics = [#tpu.dimension_semantics<arbitrary>], iteration_bounds = array<i64: 2>, scalar_prefetch = 0 : i64, scratch_operands = 1 : i64, tpu.core_type = #tpu.core_type<tc>, window_params = [{pipeline_mode = #tpu.pipeline_mode<synchronous>, transform_indices = @transform_0, window_bounds = array<i64: 16, 32>}, {pipeline_mode = #tpu.pipeline_mode<synchronous>, transform_indices = @transform_1, window_bounds = array<i64: 16, 16>}, {transform_indices = @transform_2, window_bounds = array<i64: 1, 4, 32, 8>}, {transform_indices = @transform_3, window_bounds = array<i64: 1, 4, 32, 8>}, {transform_indices = @transform_4, window_bounds = array<i64: 1, 4, 32, 8>}, {transform_indices = @transform_5, window_bounds = array<i64: 1, 4, 8, 32>}, {transform_indices = @transform_6, window_bounds = array<i64: 1, 1, 32>}, {transform_indices = @transform_7, window_bounds = array<i64: 1, 1, 32>}, {transform_indices = @transform_8, window_bounds = array<i64: 1, 32, 64>}, {transform_indices = @transform_9, window_bounds = array<i64: 1, 1, 64>}, {transform_indices = @transform_10, window_bounds = array<i64: 1, 64, 32>}, {transform_indices = @transform_11, window_bounds = array<i64: 1, 1, 32>}, {transform_indices = @transform_12, window_bounds = array<i64: 1, 1, 32>}, {transform_indices = @transform_13, window_bounds = array<i64: 1, 1, 32>}, {pipeline_mode = #tpu.pipeline_mode<synchronous>, transform_indices = @transform_14, window_bounds = array<i64: 16, 32>}]} {
    %c0_i32 = arith.constant 0 : i32
    %0 = arith.cmpi eq, %arg0, %c0_i32 : i32
    %1 = arith.extui %0 : i1 to i32
    %c0_i32_0 = arith.constant 0 : i32
    %2 = arith.cmpi ne, %1, %c0_i32_0 : i32
    scf.if %2 {
      %c0_69 = arith.constant 0 : index
      %c0_70 = arith.constant 0 : index
      %111 = vector.load %arg1[%c0_69, %c0_70] : memref<16x32xf32, #tpu.memory_space<vmem>>, vector<16x32xf32>
      %c0_71 = arith.constant 0 : index
      %c0_72 = arith.constant 0 : index
      %112 = vector.load %arg16[%c0_71, %c0_72] : memref<16x32xf32, #tpu.memory_space<vmem>>, vector<16x32xf32>
      tpu.vector_store %arg16[%c0_71, %c0_72], %111 {strides = array<i32>} : memref<16x32xf32, #tpu.memory_space<vmem>>, vector<16x32xf32>,
    } else {
    }
    %c0 = arith.constant 0 : index
    %c0_1 = arith.constant 0 : index
    %3 = vector.load %arg16[%c0, %c0_1] : memref<16x32xf32, #tpu.memory_space<vmem>>, vector<16x32xf32>
    %4 = vector.shape_cast %3 : vector<16x32xf32> to vector<1x16x32xf32>
    %5 = vector.broadcast %4 : vector<1x16x32xf32> to vector<4x16x32xf32>
    %c0_2 = arith.constant 0 : index
    %c0_3 = arith.constant 0 : index
    %c0_4 = arith.constant 0 : index
    %c0_5 = arith.constant 0 : index
    %6 = vector.load %arg3[%c0_2, %c0_3, %c0_4, %c0_5] : memref<1x4x32x8xf32, #tpu.memory_space<vmem>>, vector<1x4x32x8xf32>
    %7 = vector.shape_cast %6 : vector<1x4x32x8xf32> to vector<4x32x8xf32>
    "tpu.trace_start"() <{level = 10 : i32, message = "hnd,hdk->hnk"}> : () -> ()
    %cst = arith.constant dense<0.000000e+00> : vector<4x16x8xf32>
    %8 = tpu.matmul %5, %7, %cst {dimension_numbers = #tpu.dot_dimension_numbers<[2], [1], [1], [2], [0, 0, 0, 1, 1, 2], [0], [0]>} : vector<4x16x32xf32>, vector<4x32x8xf32>, vector<4x16x8xf32> -> vector<4x16x8xf32>
    "tpu.trace_stop"() : () -> ()
    %cst_6 = arith.constant 0.353553385 : f32
    %9 = vector.broadcast %cst_6 : f32 to vector<4x16x8xf32>
    %10 = arith.mulf %8, %9 : vector<4x16x8xf32>
    %c0_7 = arith.constant 0 : index
    %c0_8 = arith.constant 0 : index
    %c0_9 = arith.constant 0 : index
    %c0_10 = arith.constant 0 : index
    %11 = vector.load %arg4[%c0_7, %c0_8, %c0_9, %c0_10] : memref<1x4x32x8xf32, #tpu.memory_space<vmem>>, vector<1x4x32x8xf32>
    %12 = vector.shape_cast %11 : vector<1x4x32x8xf32> to vector<4x32x8xf32>
    "tpu.trace_start"() <{level = 10 : i32, message = "hnd,hdk->hnk"}> : () -> ()
    %cst_11 = arith.constant dense<0.000000e+00> : vector<4x16x8xf32>
    %13 = tpu.matmul %5, %12, %cst_11 {dimension_numbers = #tpu.dot_dimension_numbers<[2], [1], [1], [2], [0, 0, 0, 1, 1, 2], [0], [0]>} : vector<4x16x32xf32>, vector<4x32x8xf32>, vector<4x16x8xf32> -> vector<4x16x8xf32>
    "tpu.trace_stop"() : () -> ()
    %c0_12 = arith.constant 0 : index
    %c0_13 = arith.constant 0 : index
    %c0_14 = arith.constant 0 : index
    %c0_15 = arith.constant 0 : index
    %14 = vector.load %arg5[%c0_12, %c0_13, %c0_14, %c0_15] : memref<1x4x32x8xf32, #tpu.memory_space<vmem>>, vector<1x4x32x8xf32>
    %15 = vector.shape_cast %14 : vector<1x4x32x8xf32> to vector<4x32x8xf32>
    "tpu.trace_start"() <{level = 10 : i32, message = "hnd,hdk->hnk"}> : () -> ()
    %cst_16 = arith.constant dense<0.000000e+00> : vector<4x16x8xf32>
    %16 = tpu.matmul %5, %15, %cst_16 {dimension_numbers = #tpu.dot_dimension_numbers<[2], [1], [1], [2], [0, 0, 0, 1, 1, 2], [0], [0]>} : vector<4x16x32xf32>, vector<4x32x8xf32>, vector<4x16x8xf32> -> vector<4x16x8xf32>
    "tpu.trace_stop"() : () -> ()
    "tpu.trace_start"() <{level = 10 : i32, message = "hqd,hkd->hqk"}> : () -> ()
    %cst_17 = arith.constant dense<0.000000e+00> : vector<4x16x16xf32>
    %17 = tpu.matmul %10, %13, %cst_17 {dimension_numbers = #tpu.dot_dimension_numbers<[2], [2], [1], [1], [0, 0, 0, 1, 1, 1], [0], [0]>} : vector<4x16x8xf32>, vector<4x16x8xf32>, vector<4x16x16xf32> -> vector<4x16x16xf32>
    "tpu.trace_stop"() : () -> ()
    %c0_18 = arith.constant 0 : index
    %c0_19 = arith.constant 0 : index
    %18 = vector.load %arg2[%c0_18, %c0_19] : memref<16x16xf32, #tpu.memory_space<vmem>>, vector<16x16xf32>
    %19 = vector.shape_cast %18 : vector<16x16xf32> to vector<1x16x16xf32>
    %20 = vector.broadcast %19 : vector<1x16x16xf32> to vector<4x16x16xf32>
    %21 = arith.addf %17, %20 : vector<4x16x16xf32>
    %cst_20 = arith.constant dense<0xFF800000> : vector<4x16xf32>
    %22 = vector.multi_reduction <maximumf>, %21, %cst_20 [2] : vector<4x16x16xf32> to vector<4x16xf32>
    %23 = vector.shape_cast %22 : vector<4x16xf32> to vector<4x16x1xf32>
    %24 = vector.broadcast %23 : vector<4x16x1xf32> to vector<4x16x16xf32>
    %25 = arith.subf %21, %24 : vector<4x16x16xf32>
    %26 = math.exp %25 : vector<4x16x16xf32>
    %cst_21 = arith.constant dense<0.000000e+00> : vector<4x16xf32>
    %27 = vector.multi_reduction <add>, %26, %cst_21 [2] : vector<4x16x16xf32> to vector<4x16xf32>
    %28 = vector.shape_cast %27 : vector<4x16xf32> to vector<4x16x1xf32>
    %29 = tpu.reciprocal %28 {approx = true} : vector<4x16x1xf32> -> vector<4x16x1xf32>
    %30 = vector.broadcast %29 : vector<4x16x1xf32> to vector<4x16x16xf32>
    %31 = arith.mulf %26, %30 : vector<4x16x16xf32>
    "tpu.trace_start"() <{level = 10 : i32, message = "hqk,hkd->hqd"}> : () -> ()
    %cst_22 = arith.constant dense<0.000000e+00> : vector<4x16x8xf32>
    %32 = tpu.matmul %31, %16, %cst_22 {dimension_numbers = #tpu.dot_dimension_numbers<[2], [1], [1], [2], [0, 0, 0, 1, 1, 2], [0], [0]>} : vector<4x16x16xf32>, vector<4x16x8xf32>, vector<4x16x8xf32> -> vector<4x16x8xf32>
    "tpu.trace_stop"() : () -> ()
    %c0_23 = arith.constant 0 : index
    %c0_24 = arith.constant 0 : index
    %c0_25 = arith.constant 0 : index
    %c0_26 = arith.constant 0 : index
    %33 = vector.load %arg6[%c0_23, %c0_24, %c0_25, %c0_26] : memref<1x4x8x32xf32, #tpu.memory_space<vmem>>, vector<1x4x8x32xf32>
    %34 = vector.shape_cast %33 : vector<1x4x8x32xf32> to vector<4x8x32xf32>
    "tpu.trace_start"() <{level = 10 : i32, message = "hqd,hde->hqe"}> : () -> ()
    %cst_27 = arith.constant dense<0.000000e+00> : vector<4x16x32xf32>
    %35 = tpu.matmul %32, %34, %cst_27 {dimension_numbers = #tpu.dot_dimension_numbers<[2], [1], [1], [2], [0, 0, 0, 1, 1, 2], [0], [0]>} : vector<4x16x8xf32>, vector<4x8x32xf32>, vector<4x16x32xf32> -> vector<4x16x32xf32>
    "tpu.trace_stop"() : () -> ()
    %cst_28 = arith.constant dense<0.000000e+00> : vector<16x32xf32>
    %36 = vector.multi_reduction <add>, %35, %cst_28 [0] : vector<4x16x32xf32> to vector<16x32xf32>
    %37 = arith.addf %36, %3 : vector<16x32xf32>
    %cst_29 = arith.constant dense<0.000000e+00> : vector<16xf32>
    %38 = vector.multi_reduction <add>, %37, %cst_29 [1] : vector<16x32xf32> to vector<16xf32>
    %39 = vector.shape_cast %38 : vector<16xf32> to vector<16x1xf32>
    %cst_30 = arith.constant 3.200000e+01 : f32
    %40 = vector.broadcast %cst_30 : f32 to vector<16x1xf32>
    %41 = arith.divf %39, %40 : vector<16x1xf32>
    %42 = vector.broadcast %41 : vector<16x1xf32> to vector<16x32xf32>
    %43 = arith.subf %37, %42 : vector<16x32xf32>
    %44 = arith.mulf %43, %43 : vector<16x32xf32>
    %cst_31 = arith.constant dense<0.000000e+00> : vector<16xf32>
    %45 = vector.multi_reduction <add>, %44, %cst_31 [1] : vector<16x32xf32> to vector<16xf32>
    %46 = vector.shape_cast %45 : vector<16xf32> to vector<16x1xf32>
    %cst_32 = arith.constant 3.200000e+01 : f32
    %47 = vector.broadcast %cst_32 : f32 to vector<16x1xf32>
    %48 = arith.divf %46, %47 : vector<16x1xf32>
    %49 = vector.broadcast %41 : vector<16x1xf32> to vector<16x32xf32>
    %50 = arith.subf %37, %49 : vector<16x32xf32>
    %cst_33 = arith.constant 9.99999997E-7 : f32
    %51 = vector.broadcast %cst_33 : f32 to vector<16x1xf32>
    %52 = arith.addf %48, %51 : vector<16x1xf32>
    %53 = math.rsqrt %52 : vector<16x1xf32>
    %54 = vector.broadcast %53 : vector<16x1xf32> to vector<16x32xf32>
    %55 = arith.mulf %50, %54 : vector<16x32xf32>
    %c0_34 = arith.constant 0 : index
    %c0_35 = arith.constant 0 : index
    %c0_36 = arith.constant 0 : index
    %56 = vector.load %arg7[%c0_34, %c0_35, %c0_36] : memref<1x1x32xf32, #tpu.memory_space<vmem>>, vector<1x1x32xf32>
    %57 = vector.shape_cast %56 : vector<1x1x32xf32> to vector<1x32xf32>
    %58 = vector.broadcast %57 : vector<1x32xf32> to vector<16x32xf32>
    %59 = arith.mulf %55, %58 : vector<16x32xf32>
    %c0_37 = arith.constant 0 : index
    %c0_38 = arith.constant 0 : index
    %c0_39 = arith.constant 0 : index
    %60 = vector.load %arg8[%c0_37, %c0_38, %c0_39] : memref<1x1x32xf32, #tpu.memory_space<vmem>>, vector<1x1x32xf32>
    %61 = vector.shape_cast %60 : vector<1x1x32xf32> to vector<1x32xf32>
    %62 = vector.broadcast %61 : vector<1x32xf32> to vector<16x32xf32>
    %63 = arith.addf %59, %62 : vector<16x32xf32>
    %c0_40 = arith.constant 0 : index
    %c0_41 = arith.constant 0 : index
    %c0_42 = arith.constant 0 : index
    %64 = vector.load %arg9[%c0_40, %c0_41, %c0_42] : memref<1x32x64xf32, #tpu.memory_space<vmem>>, vector<1x32x64xf32>
    %65 = vector.shape_cast %64 : vector<1x32x64xf32> to vector<32x64xf32>
    %cst_43 = arith.constant dense<0.000000e+00> : vector<16x64xf32>
    %66 = tpu.matmul %63, %65, %cst_43 {dimension_numbers = #tpu.dot_dimension_numbers<[1], [0], [0], [1], [0, 0, 1, 1], [], []>} : vector<16x32xf32>, vector<32x64xf32>, vector<16x64xf32> -> vector<16x64xf32>
    %c0_44 = arith.constant 0 : index
    %c0_45 = arith.constant 0 : index
    %c0_46 = arith.constant 0 : index
    %67 = vector.load %arg10[%c0_44, %c0_45, %c0_46] : memref<1x1x64xf32, #tpu.memory_space<vmem>>, vector<1x1x64xf32>
    %68 = vector.shape_cast %67 : vector<1x1x64xf32> to vector<1x64xf32>
    %69 = vector.broadcast %68 : vector<1x64xf32> to vector<16x64xf32>
    %70 = arith.addf %66, %69 : vector<16x64xf32>
    %cst_47 = arith.constant 0.000000e+00 : f32
    %71 = vector.broadcast %cst_47 : f32 to vector<16x64xf32>
    %72 = arith.maximumf %70, %71 : vector<16x64xf32>
    %c0_48 = arith.constant 0 : index
    %c0_49 = arith.constant 0 : index
    %c0_50 = arith.constant 0 : index
    %73 = vector.load %arg11[%c0_48, %c0_49, %c0_50] : memref<1x64x32xf32, #tpu.memory_space<vmem>>, vector<1x64x32xf32>
    %74 = vector.shape_cast %73 : vector<1x64x32xf32> to vector<64x32xf32>
    %cst_51 = arith.constant dense<0.000000e+00> : vector<16x32xf32>
    %75 = tpu.matmul %72, %74, %cst_51 {dimension_numbers = #tpu.dot_dimension_numbers<[1], [0], [0], [1], [0, 0, 1, 1], [], []>} : vector<16x64xf32>, vector<64x32xf32>, vector<16x32xf32> -> vector<16x32xf32>
    %c0_52 = arith.constant 0 : index
    %c0_53 = arith.constant 0 : index
    %c0_54 = arith.constant 0 : index
    %76 = vector.load %arg12[%c0_52, %c0_53, %c0_54] : memref<1x1x32xf32, #tpu.memory_space<vmem>>, vector<1x1x32xf32>
    %77 = vector.shape_cast %76 : vector<1x1x32xf32> to vector<1x32xf32>
    %78 = vector.broadcast %77 : vector<1x32xf32> to vector<16x32xf32>
    %79 = arith.addf %75, %78 : vector<16x32xf32>
    %80 = arith.addf %79, %63 : vector<16x32xf32>
    %cst_55 = arith.constant dense<0.000000e+00> : vector<16xf32>
    %81 = vector.multi_reduction <add>, %80, %cst_55 [1] : vector<16x32xf32> to vector<16xf32>
    %82 = vector.shape_cast %81 : vector<16xf32> to vector<16x1xf32>
    %cst_56 = arith.constant 3.200000e+01 : f32
    %83 = vector.broadcast %cst_56 : f32 to vector<16x1xf32>
    %84 = arith.divf %82, %83 : vector<16x1xf32>
    %85 = vector.broadcast %84 : vector<16x1xf32> to vector<16x32xf32>
    %86 = arith.subf %80, %85 : vector<16x32xf32>
    %87 = arith.mulf %86, %86 : vector<16x32xf32>
    %cst_57 = arith.constant dense<0.000000e+00> : vector<16xf32>
    %88 = vector.multi_reduction <add>, %87, %cst_57 [1] : vector<16x32xf32> to vector<16xf32>
    %89 = vector.shape_cast %88 : vector<16xf32> to vector<16x1xf32>
    %cst_58 = arith.constant 3.200000e+01 : f32
    %90 = vector.broadcast %cst_58 : f32 to vector<16x1xf32>
    %91 = arith.divf %89, %90 : vector<16x1xf32>
    %92 = vector.broadcast %84 : vector<16x1xf32> to vector<16x32xf32>
    %93 = arith.subf %80, %92 : vector<16x32xf32>
    %cst_59 = arith.constant 9.99999997E-7 : f32
    %94 = vector.broadcast %cst_59 : f32 to vector<16x1xf32>
    %95 = arith.addf %91, %94 : vector<16x1xf32>
    %96 = math.rsqrt %95 : vector<16x1xf32>
    %97 = vector.broadcast %96 : vector<16x1xf32> to vector<16x32xf32>
    %98 = arith.mulf %93, %97 : vector<16x32xf32>
    %c0_60 = arith.constant 0 : index
    %c0_61 = arith.constant 0 : index
    %c0_62 = arith.constant 0 : index
    %99 = vector.load %arg13[%c0_60, %c0_61, %c0_62] : memref<1x1x32xf32, #tpu.memory_space<vmem>>, vector<1x1x32xf32>
    %100 = vector.shape_cast %99 : vector<1x1x32xf32> to vector<1x32xf32>
    %101 = vector.broadcast %100 : vector<1x32xf32> to vector<16x32xf32>
    %102 = arith.mulf %98, %101 : vector<16x32xf32>
    %c0_63 = arith.constant 0 : index
    %c0_64 = arith.constant 0 : index
    %c0_65 = arith.constant 0 : index
    %103 = vector.load %arg14[%c0_63, %c0_64, %c0_65] : memref<1x1x32xf32, #tpu.memory_space<vmem>>, vector<1x1x32xf32>
    %104 = vector.shape_cast %103 : vector<1x1x32xf32> to vector<1x32xf32>
    %105 = vector.broadcast %104 : vector<1x32xf32> to vector<16x32xf32>
    %106 = arith.addf %102, %105 : vector<16x32xf32>
    %c0_66 = arith.constant 0 : index
    %c0_67 = arith.constant 0 : index
    %107 = vector.load %arg16[%c0_66, %c0_67] : memref<16x32xf32, #tpu.memory_space<vmem>>, vector<16x32xf32>
    tpu.vector_store %arg16[%c0_66, %c0_67], %106 {strides = array<i32>} : memref<16x32xf32, #tpu.memory_space<vmem>>, vector<16x32xf32>,
    %c1_i32 = arith.constant 1 : i32
    %108 = arith.cmpi eq, %arg0, %c1_i32 : i32
    %109 = arith.extui %108 : i1 to i32
    %c0_i32_68 = arith.constant 0 : i32
    %110 = arith.cmpi ne, %109, %c0_i32_68 : i32
    scf.if %110 {
      %c0_69 = arith.constant 0 : index
      %c0_70 = arith.constant 0 : index
      %111 = vector.load %arg15[%c0_69, %c0_70] : memref<16x32xf32, #tpu.memory_space<vmem>>, vector<16x32xf32>
      tpu.vector_store %arg15[%c0_69, %c0_70], %106 {strides = array<i32>} : memref<16x32xf32, #tpu.memory_space<vmem>>, vector<16x32xf32>,
    } else {
    }
    return
  }
  func.func @transform_0(%arg0: i32) -> (i32, i32) {
    %c0_i32 = arith.constant 0 : i32
    %c0_i32_0 = arith.constant 0 : i32
    %c0_i32_1 = arith.constant 0 : i32
    return %c0_i32, %c0_i32_0 : i32, i32
  }
  func.func @transform_1(%arg0: i32) -> (i32, i32) {
    %c0_i32 = arith.constant 0 : i32
    %c0_i32_0 = arith.constant 0 : i32
    %c0_i32_1 = arith.constant 0 : i32
    return %c0_i32, %c0_i32_0 : i32, i32
  }
  func.func @transform_2(%arg0: i32) -> (i32, i32, i32, i32) {
    %c0_i32 = arith.constant 0 : i32
    %c0_i32_0 = arith.constant 0 : i32
    %c0_i32_1 = arith.constant 0 : i32
    %c0_i32_2 = arith.constant 0 : i32
    return %arg0, %c0_i32, %c0_i32_0, %c0_i32_1 : i32, i32, i32, i32
  }
  func.func @transform_3(%arg0: i32) -> (i32, i32, i32, i32) {
    %c0_i32 = arith.constant 0 : i32
    %c0_i32_0 = arith.constant 0 : i32
    %c0_i32_1 = arith.constant 0 : i32
    %c0_i32_2 = arith.constant 0 : i32
    return %arg0, %c0_i32, %c0_i32_0, %c0_i32_1 : i32, i32, i32, i32
  }
  func.func @transform_4(%arg0: i32) -> (i32, i32, i32, i32) {
    %c0_i32 = arith.constant 0 : i32
    %c0_i32_0 = arith.constant 0 : i32
    %c0_i32_1 = arith.constant 0 : i32
    %c0_i32_2 = arith.constant 0 : i32
    return %arg0, %c0_i32, %c0_i32_0, %c0_i32_1 : i32, i32, i32, i32
  }
  func.func @transform_5(%arg0: i32) -> (i32, i32, i32, i32) {
    %c0_i32 = arith.constant 0 : i32
    %c0_i32_0 = arith.constant 0 : i32
    %c0_i32_1 = arith.constant 0 : i32
    %c0_i32_2 = arith.constant 0 : i32
    return %arg0, %c0_i32, %c0_i32_0, %c0_i32_1 : i32, i32, i32, i32
  }
  func.func @transform_6(%arg0: i32) -> (i32, i32, i32) {
    %c0_i32 = arith.constant 0 : i32
    %c0_i32_0 = arith.constant 0 : i32
    %c0_i32_1 = arith.constant 0 : i32
    return %arg0, %c0_i32, %c0_i32_0 : i32, i32, i32
  }
  func.func @transform_7(%arg0: i32) -> (i32, i32, i32) {
    %c0_i32 = arith.constant 0 : i32
    %c0_i32_0 = arith.constant 0 : i32
    %c0_i32_1 = arith.constant 0 : i32
    return %arg0, %c0_i32, %c0_i32_0 : i32, i32, i32
  }
  func.func @transform_8(%arg0: i32) -> (i32, i32, i32) {
    %c0_i32 = arith.constant 0 : i32
    %c0_i32_0 = arith.constant 0 : i32
    %c0_i32_1 = arith.constant 0 : i32
    return %arg0, %c0_i32, %c0_i32_0 : i32, i32, i32
  }
  func.func @transform_9(%arg0: i32) -> (i32, i32, i32) {
    %c0_i32 = arith.constant 0 : i32
    %c0_i32_0 = arith.constant 0 : i32
    %c0_i32_1 = arith.constant 0 : i32
    return %arg0, %c0_i32, %c0_i32_0 : i32, i32, i32
  }
  func.func @transform_10(%arg0: i32) -> (i32, i32, i32) {
    %c0_i32 = arith.constant 0 : i32
    %c0_i32_0 = arith.constant 0 : i32
    %c0_i32_1 = arith.constant 0 : i32
    return %arg0, %c0_i32, %c0_i32_0 : i32, i32, i32
  }
  func.func @transform_11(%arg0: i32) -> (i32, i32, i32) {
    %c0_i32 = arith.constant 0 : i32
    %c0_i32_0 = arith.constant 0 : i32
    %c0_i32_1 = arith.constant 0 : i32
    return %arg0, %c0_i32, %c0_i32_0 : i32, i32, i32
  }
  func.func @transform_12(%arg0: i32) -> (i32, i32, i32) {
    %c0_i32 = arith.constant 0 : i32
    %c0_i32_0 = arith.constant 0 : i32
    %c0_i32_1 = arith.constant 0 : i32
    return %arg0, %c0_i32, %c0_i32_0 : i32, i32, i32
  }
  func.func @transform_13(%arg0: i32) -> (i32, i32, i32) {
    %c0_i32 = arith.constant 0 : i32
    %c0_i32_0 = arith.constant 0 : i32
    %c0_i32_1 = arith.constant 0 : i32
    return %arg0, %c0_i32, %c0_i32_0 : i32, i32, i32
  }
  func.func @transform_14(%arg0: i32) -> (i32, i32) {
    %c0_i32 = arith.constant 0 : i32
    %c0_i32_0 = arith.constant 0 : i32
    %c0_i32_1 = arith.constant 0 : i32
    return %c0_i32, %c0_i32_0 : i32, i32
  }
}

</mosaic_0001>

<llo_original>
// kernel: tpu_custom_call.1
$region0: #{tpu_custom_call.1}
  #allocation0 [shape = 'u32[]', space=smem, size = 0x4, offset = 0x4, fixed_abs, tag = 'smem constant byte address 0x4 - core index']
  #allocation1 [shape = 'u32[144,128]{1,0:T(1,128)}', space=vmem, size = 0x12000, scoped, tag = 'internal scratch']
  #allocation2 [shape = 'f32[16,32]{1,0:T(8,128)}', space=vmem, size = 0x2000, scoped, tag = 'scratch operand']
  %s0 = inlined_call_operand.vmem [shape: f32[16,32], index: 0, kind: input, shape index: {}]
  %s1 = inlined_call_operand.vmem [shape: f32[16,16], index: 1, kind: input, shape index: {}]
  %s2 = inlined_call_operand.vmem [shape: f32[2,4,32,8], index: 2, kind: input, shape index: {}]
  %s3 = inlined_call_operand.vmem [shape: f32[2,4,32,8], index: 3, kind: input, shape index: {}]
  %s4 = inlined_call_operand.vmem [shape: f32[2,4,32,8], index: 4, kind: input, shape index: {}]
  %s5 = inlined_call_operand.vmem [shape: f32[2,4,8,32], index: 5, kind: input, shape index: {}]
  %s6 = inlined_call_operand.vmem [shape: f32[2,1,32], index: 6, kind: input, shape index: {}]
  %s7 = inlined_call_operand.vmem [shape: f32[2,1,32], index: 7, kind: input, shape index: {}]
  %s8 = inlined_call_operand.vmem [shape: f32[2,32,64], index: 8, kind: input, shape index: {}]
  %s9 = inlined_call_operand.vmem [shape: f32[2,1,64], index: 9, kind: input, shape index: {}]
  %s10 = inlined_call_operand.vmem [shape: f32[2,64,32], index: 10, kind: input, shape index: {}]
  %s11 = inlined_call_operand.vmem [shape: f32[2,1,32], index: 11, kind: input, shape index: {}]
  %s12 = inlined_call_operand.vmem [shape: f32[2,1,32], index: 12, kind: input, shape index: {}]
  %s13 = inlined_call_operand.vmem [shape: f32[2,1,32], index: 13, kind: input, shape index: {}]
  %s14 = inlined_call_operand.hbm [shape: f32[16,32], index: 14, kind: output, shape index: {}]
  %s15 = sld [smem:[#allocation0]]
  $region97: #{tpu_custom_call.1} parent=0
    _
  %s17 = ssub.s32 1, %s15
  %s18 = scalar_select 0, %s17, %s15
  $region1: #{tpu_custom_call.1} parent=0
    #allocation3 [shape = 'u8[8192]{0}', space=vmem, size = 0x2000, scoped, tag = 'output window, operand 0, single buffered']
    #allocation4 [shape = 's32[2]{0}', space=sflag, size = 0x8, scoped, tag = 'scoped memory for tpu_custom_call.1']
    %19 = vsyncpa [#allocation4], 0
    loop: start=0, step=1, limit=4
    $region2: #{tpu_custom_call.1} parent=1 // loop_pre_header
      _
    $region3: #{tpu_custom_call.1} parent=1 // loop_header
      %s21 = sphi 0, %s25
      %p22 = scmp.ge.s32.totalorder %s21, 4
      %s29 = sphi 0, %s29
      %s31 = sphi 0, %s29
      %s32 = sphi 0, %s31
      %s46 = sphi 0, %s32
      %s50 = sphi 0, %s50
      %s52 = sphi 0, %s50
      %s53 = sphi 0, %s52
      %s67 = sphi 0, %s53
      %s73 = sphi 0, %s75
      %s76 = sphi 0, %s73
      %s77 = sphi 0, %s76
      %s93 = sphi 0, %s77
      %s99 = sphi 0, %s101
      %s102 = sphi 0, %s99
      %s103 = sphi 0, %s102
      %s119 = sphi 0, %s103
      %s125 = sphi 0, %s127
      %s128 = sphi 0, %s125
      %s129 = sphi 0, %s128
      %s145 = sphi 0, %s129
      %s151 = sphi 0, %s153
      %s154 = sphi 0, %s151
      %s155 = sphi 0, %s154
      %s171 = sphi 0, %s155
      %s177 = sphi 0, %s179
      %s180 = sphi 0, %s177
      %s181 = sphi 0, %s180
      %s197 = sphi 0, %s181
      %s203 = sphi 0, %s205
      %s206 = sphi 0, %s203
      %s207 = sphi 0, %s206
      %s223 = sphi 0, %s207
      %s229 = sphi 0, %s231
      %s232 = sphi 0, %s229
      %s233 = sphi 0, %s232
      %s249 = sphi 0, %s233
      %s255 = sphi 0, %s257
      %s258 = sphi 0, %s255
      %s259 = sphi 0, %s258
      %s275 = sphi 0, %s259
      %s281 = sphi 0, %s283
      %s284 = sphi 0, %s281
      %s285 = sphi 0, %s284
      %s301 = sphi 0, %s285
      %s307 = sphi 0, %s309
      %s310 = sphi 0, %s307
      %s311 = sphi 0, %s310
      %s327 = sphi 0, %s311
      %s333 = sphi 0, %s335
      %s336 = sphi 0, %s333
      %s337 = sphi 0, %s336
      %s353 = sphi 0, %s337
      %s359 = sphi 0, %s361
      %s362 = sphi 0, %s359
      %s363 = sphi 0, %s362
      %s379 = sphi 0, %s363
      %s383 = sphi 0, %s383
      %s385 = sphi 0, %s383
      %s386 = sphi 0, %s385
      %s400 = sphi 0, %s386
    $region4: #{tpu_custom_call.1} parent=1 // loop_header_branch
      %24 = sbr.rel (%p22) target = $region8
    $region5: #{tpu_custom_call.1} parent=1 // loop_body
      %s26 = ssub.s32 %s21, 1
      %s27 = ssub.s32 %s21, 2
      %s28 = sadd.s32 %s21, 1
      %s30 = sadd.s32 %s29, 1
      %p33 = scmp.eq.s32.totalorder %s21, 1
      %p34 = scmp.ne.s32.totalorder %s29, %s31
      %p35 = scmp.eq.s32.totalorder %s21, 0
      %p36 = por %p34, %p35
      %p37 = scmp.ne.s32.totalorder %s29, %s31
      %p38 = scmp.eq.s32.totalorder %s26, 1
      %p39 = por %p37, %p38
      %p40 = scmp.ne.s32.totalorder %s31, %s32
      %p41 = scmp.eq.s32.totalorder %s26, 0
      %p42 = por %p40, %p41
      %p43 = scmp.ne.s32.totalorder %s31, %s32
      %p44 = scmp.eq.s32.totalorder %s27, 1
      %p45 = por %p43, %p44
      %p47 = scmp.ne.s32.totalorder %s32, %s46
      %p48 = scmp.eq.s32.totalorder %s27, 0
      %p49 = por %p47, %p48
      %s51 = sadd.s32 %s50, 1
      %p54 = scmp.eq.s32.totalorder %s21, 1
      %p55 = scmp.ne.s32.totalorder %s50, %s52
      %p56 = scmp.eq.s32.totalorder %s21, 0
      %p57 = por %p55, %p56
      %p58 = scmp.ne.s32.totalorder %s50, %s52
      %p59 = scmp.eq.s32.totalorder %s26, 1
      %p60 = por %p58, %p59
      %p61 = scmp.ne.s32.totalorder %s52, %s53
      %p62 = scmp.eq.s32.totalorder %s26, 0
      %p63 = por %p61, %p62
      %p64 = scmp.ne.s32.totalorder %s52, %s53
      %p65 = scmp.eq.s32.totalorder %s27, 1
      %p66 = por %p64, %p65
      %p68 = scmp.ne.s32.totalorder %s53, %s67
      %p69 = scmp.eq.s32.totalorder %s27, 0
      %p70 = por %p68, %p69
      %s71 = ssub.s32 %s21, %s28
      %p72 = scmp.eq.s32.totalorder %s71, 0
      %s74 = sadd.s32 %s73, 1
      %s75 = scalar_select %p72, %s73, %s74
      %p78 = pneg %p72
      %p79 = scmp.eq.s32.totalorder %s21, 1
      %p80 = por %p78, %p79
      %p81 = scmp.ne.s32.totalorder %s73, %s76
      %p82 = scmp.eq.s32.totalorder %s21, 0
      %p83 = por %p81, %p82
      %p84 = scmp.ne.s32.totalorder %s73, %s76
      %p85 = scmp.eq.s32.totalorder %s26, 1
      %p86 = por %p84, %p85
      %p87 = scmp.ne.s32.totalorder %s76, %s77
      %p88 = scmp.eq.s32.totalorder %s26, 0
      %p89 = por %p87, %p88
      %p90 = scmp.ne.s32.totalorder %s76, %s77
      %p91 = scmp.eq.s32.totalorder %s27, 1
      %p92 = por %p90, %p91
      %p94 = scmp.ne.s32.totalorder %s77, %s93
      %p95 = scmp.eq.s32.totalorder %s27, 0
      %p96 = por %p94, %p95
      %s97 = ssub.s32 %s21, %s28
      %p98 = scmp.eq.s32.totalorder %s97, 0
      %s100 = sadd.s32 %s99, 1
      %s101 = scalar_select %p98, %s99, %s100
      %p104 = pneg %p98
      %p105 = scmp.eq.s32.totalorder %s21, 1
      %p106 = por %p104, %p105
      %p107 = scmp.ne.s32.totalorder %s99, %s102
      %p108 = scmp.eq.s32.totalorder %s21, 0
      %p109 = por %p107, %p108
      %p110 = scmp.ne.s32.totalorder %s99, %s102
      %p111 = scmp.eq.s32.totalorder %s26, 1
      %p112 = por %p110, %p111
      %p113 = scmp.ne.s32.totalorder %s102, %s103
      %p114 = scmp.eq.s32.totalorder %s26, 0
      %p115 = por %p113, %p114
      %p116 = scmp.ne.s32.totalorder %s102, %s103
      %p117 = scmp.eq.s32.totalorder %s27, 1
      %p118 = por %p116, %p117
      %p120 = scmp.ne.s32.totalorder %s103, %s119
      %p121 = scmp.eq.s32.totalorder %s27, 0
      %p122 = por %p120, %p121
      %s123 = ssub.s32 %s21, %s28
      %p124 = scmp.eq.s32.totalorder %s123, 0
      %s126 = sadd.s32 %s125, 1
      %s127 = scalar_select %p124, %s125, %s126
      %p130 = pneg %p124
      %p131 = scmp.eq.s32.totalorder %s21, 1
      %p132 = por %p130, %p131
      %p133 = scmp.ne.s32.totalorder %s125, %s128
      %p134 = scmp.eq.s32.totalorder %s21, 0
      %p135 = por %p133, %p134
      %p136 = scmp.ne.s32.totalorder %s125, %s128
      %p137 = scmp.eq.s32.totalorder %s26, 1
      %p138 = por %p136, %p137
      %p139 = scmp.ne.s32.totalorder %s128, %s129
      %p140 = scmp.eq.s32.totalorder %s26, 0
      %p141 = por %p139, %p140
      %p142 = scmp.ne.s32.totalorder %s128, %s129
      %p143 = scmp.eq.s32.totalorder %s27, 1
      %p144 = por %p142, %p143
      %p146 = scmp.ne.s32.totalorder %s129, %s145
      %p147 = scmp.eq.s32.totalorder %s27, 0
      %p148 = por %p146, %p147
      %s149 = ssub.s32 %s21, %s28
      %p150 = scmp.eq.s32.totalorder %s149, 0
      %s152 = sadd.s32 %s151, 1
      %s153 = scalar_select %p150, %s151, %s152
      %p156 = pneg %p150
      %p157 = scmp.eq.s32.totalorder %s21, 1
      %p158 = por %p156, %p157
      %p159 = scmp.ne.s32.totalorder %s151, %s154
      %p160 = scmp.eq.s32.totalorder %s21, 0
      %p161 = por %p159, %p160
      %p162 = scmp.ne.s32.totalorder %s151, %s154
      %p163 = scmp.eq.s32.totalorder %s26, 1
      %p164 = por %p162, %p163
      %p165 = scmp.ne.s32.totalorder %s154, %s155
      %p166 = scmp.eq.s32.totalorder %s26, 0
      %p167 = por %p165, %p166
      %p168 = scmp.ne.s32.totalorder %s154, %s155
      %p169 = scmp.eq.s32.totalorder %s27, 1
      %p170 = por %p168, %p169
      %p172 = scmp.ne.s32.totalorder %s155, %s171
      %p173 = scmp.eq.s32.totalorder %s27, 0
      %p174 = por %p172, %p173
      %s175 = ssub.s32 %s21, %s28
      %p176 = scmp.eq.s32.totalorder %s175, 0
      %s178 = sadd.s32 %s177, 1
      %s179 = scalar_select %p176, %s177, %s178
      %p182 = pneg %p176
      %p183 = scmp.eq.s32.totalorder %s21, 1
      %p184 = por %p182, %p183
      %p185 = scmp.ne.s32.totalorder %s177, %s180
      %p186 = scmp.eq.s32.totalorder %s21, 0
      %p187 = por %p185, %p186
      %p188 = scmp.ne.s32.totalorder %s177, %s180
      %p189 = scmp.eq.s32.totalorder %s26, 1
      %p190 = por %p188, %p189
      %p191 = scmp.ne.s32.totalorder %s180, %s181
      %p192 = scmp.eq.s32.totalorder %s26, 0
      %p193 = por %p191, %p192
      %p194 = scmp.ne.s32.totalorder %s180, %s181
      %p195 = scmp.eq.s32.totalorder %s27, 1
      %p196 = por %p194, %p195
      %p198 = scmp.ne.s32.totalorder %s181, %s197
      %p199 = scmp.eq.s32.totalorder %s27, 0
      %p200 = por %p198, %p199
      %s201 = ssub.s32 %s21, %s28
      %p202 = scmp.eq.s32.totalorder %s201, 0
      %s204 = sadd.s32 %s203, 1
      %s205 = scalar_select %p202, %s203, %s204
      %p208 = pneg %p202
      %p209 = scmp.eq.s32.totalorder %s21, 1
      %p210 = por %p208, %p209
      %p211 = scmp.ne.s32.totalorder %s203, %s206
      %p212 = scmp.eq.s32.totalorder %s21, 0
      %p213 = por %p211, %p212
      %p214 = scmp.ne.s32.totalorder %s203, %s206
      %p215 = scmp.eq.s32.totalorder %s26, 1
      %p216 = por %p214, %p215
      %p217 = scmp.ne.s32.totalorder %s206, %s207
      %p218 = scmp.eq.s32.totalorder %s26, 0
      %p219 = por %p217, %p218
      %p220 = scmp.ne.s32.totalorder %s206, %s207
      %p221 = scmp.eq.s32.totalorder %s27, 1
      %p222 = por %p220, %p221
      %p224 = scmp.ne.s32.totalorder %s207, %s223
      %p225 = scmp.eq.s32.totalorder %s27, 0
      %p226 = por %p224, %p225
      %s227 = ssub.s32 %s21, %s28
      %p228 = scmp.eq.s32.totalorder %s227, 0
      %s230 = sadd.s32 %s229, 1
      %s231 = scalar_select %p228, %s229, %s230
      %p234 = pneg %p228
      %p235 = scmp.eq.s32.totalorder %s21, 1
      %p236 = por %p234, %p235
      %p237 = scmp.ne.s32.totalorder %s229, %s232
      %p238 = scmp.eq.s32.totalorder %s21, 0
      %p239 = por %p237, %p238
      %p240 = scmp.ne.s32.totalorder %s229, %s232
      %p241 = scmp.eq.s32.totalorder %s26, 1
      %p242 = por %p240, %p241
      %p243 = scmp.ne.s32.totalorder %s232, %s233
      %p244 = scmp.eq.s32.totalorder %s26, 0
      %p245 = por %p243, %p244
      %p246 = scmp.ne.s32.totalorder %s232, %s233
      %p247 = scmp.eq.s32.totalorder %s27, 1
      %p248 = por %p246, %p247
      %p250 = scmp.ne.s32.totalorder %s233, %s249
      %p251 = scmp.eq.s32.totalorder %s27, 0
      %p252 = por %p250, %p251
      %s253 = ssub.s32 %s21, %s28
      %p254 = scmp.eq.s32.totalorder %s253, 0
      %s256 = sadd.s32 %s255, 1
      %s257 = scalar_select %p254, %s255, %s256
      %p260 = pneg %p254
      %p261 = scmp.eq.s32.totalorder %s21, 1
      %p262 = por %p260, %p261
      %p263 = scmp.ne.s32.totalorder %s255, %s258
      %p264 = scmp.eq.s32.totalorder %s21, 0
      %p265 = por %p263, %p264
      %p266 = scmp.ne.s32.totalorder %s255, %s258
      %p267 = scmp.eq.s32.totalorder %s26, 1
      %p268 = por %p266, %p267
      %p269 = scmp.ne.s32.totalorder %s258, %s259
      %p270 = scmp.eq.s32.totalorder %s26, 0
      %p271 = por %p269, %p270
      %p272 = scmp.ne.s32.totalorder %s258, %s259
      %p273 = scmp.eq.s32.totalorder %s27, 1
      %p274 = por %p272, %p273
      %p276 = scmp.ne.s32.totalorder %s259, %s275
      %p277 = scmp.eq.s32.totalorder %s27, 0
      %p278 = por %p276, %p277
      %s279 = ssub.s32 %s21, %s28
      %p280 = scmp.eq.s32.totalorder %s279, 0
      %s282 = sadd.s32 %s281, 1
      %s283 = scalar_select %p280, %s281, %s282
      %p286 = pneg %p280
      %p287 = scmp.eq.s32.totalorder %s21, 1
      %p288 = por %p286, %p287
      %p289 = scmp.ne.s32.totalorder %s281, %s284
      %p290 = scmp.eq.s32.totalorder %s21, 0
      %p291 = por %p289, %p290
      %p292 = scmp.ne.s32.totalorder %s281, %s284
      %p293 = scmp.eq.s32.totalorder %s26, 1
      %p294 = por %p292, %p293
      %p295 = scmp.ne.s32.totalorder %s284, %s285
      %p296 = scmp.eq.s32.totalorder %s26, 0
      %p297 = por %p295, %p296
      %p298 = scmp.ne.s32.totalorder %s284, %s285
      %p299 = scmp.eq.s32.totalorder %s27, 1
      %p300 = por %p298, %p299
      %p302 = scmp.ne.s32.totalorder %s285, %s301
      %p303 = scmp.eq.s32.totalorder %s27, 0
      %p304 = por %p302, %p303
      %s305 = ssub.s32 %s21, %s28
      %p306 = scmp.eq.s32.totalorder %s305, 0
      %s308 = sadd.s32 %s307, 1
      %s309 = scalar_select %p306, %s307, %s308
      %p312 = pneg %p306
      %p313 = scmp.eq.s32.totalorder %s21, 1
      %p314 = por %p312, %p313
      %p315 = scmp.ne.s32.totalorder %s307, %s310
      %p316 = scmp.eq.s32.totalorder %s21, 0
      %p317 = por %p315, %p316
      %p318 = scmp.ne.s32.totalorder %s307, %s310
      %p319 = scmp.eq.s32.totalorder %s26, 1
      %p320 = por %p318, %p319
      %p321 = scmp.ne.s32.totalorder %s310, %s311
      %p322 = scmp.eq.s32.totalorder %s26, 0
      %p323 = por %p321, %p322
      %p324 = scmp.ne.s32.totalorder %s310, %s311
      %p325 = scmp.eq.s32.totalorder %s27, 1
      %p326 = por %p324, %p325
      %p328 = scmp.ne.s32.totalorder %s311, %s327
      %p329 = scmp.eq.s32.totalorder %s27, 0
      %p330 = por %p328, %p329
      %s331 = ssub.s32 %s21, %s28
      %p332 = scmp.eq.s32.totalorder %s331, 0
      %s334 = sadd.s32 %s333, 1
      %s335 = scalar_select %p332, %s333, %s334
      %p338 = pneg %p332
      %p339 = scmp.eq.s32.totalorder %s21, 1
      %p340 = por %p338, %p339
      %p341 = scmp.ne.s32.totalorder %s333, %s336
      %p342 = scmp.eq.s32.totalorder %s21, 0
      %p343 = por %p341, %p342
      %p344 = scmp.ne.s32.totalorder %s333, %s336
      %p345 = scmp.eq.s32.totalorder %s26, 1
      %p346 = por %p344, %p345
      %p347 = scmp.ne.s32.totalorder %s336, %s337
      %p348 = scmp.eq.s32.totalorder %s26, 0
      %p349 = por %p347, %p348
      %p350 = scmp.ne.s32.totalorder %s336, %s337
      %p351 = scmp.eq.s32.totalorder %s27, 1
      %p352 = por %p350, %p351
      %p354 = scmp.ne.s32.totalorder %s337, %s353
      %p355 = scmp.eq.s32.totalorder %s27, 0
      %p356 = por %p354, %p355
      %s357 = ssub.s32 %s21, %s28
      %p358 = scmp.eq.s32.totalorder %s357, 0
      %s360 = sadd.s32 %s359, 1
      %s361 = scalar_select %p358, %s359, %s360
      %p364 = pneg %p358
      %p365 = scmp.eq.s32.totalorder %s21, 1
      %p366 = por %p364, %p365
      %p367 = scmp.ne.s32.totalorder %s359, %s362
      %p368 = scmp.eq.s32.totalorder %s21, 0
      %p369 = por %p367, %p368
      %p370 = scmp.ne.s32.totalorder %s359, %s362
      %p371 = scmp.eq.s32.totalorder %s26, 1
      %p372 = por %p370, %p371
      %p373 = scmp.ne.s32.totalorder %s362, %s363
      %p374 = scmp.eq.s32.totalorder %s26, 0
      %p375 = por %p373, %p374
      %p376 = scmp.ne.s32.totalorder %s362, %s363
      %p377 = scmp.eq.s32.totalorder %s27, 1
      %p378 = por %p376, %p377
      %p380 = scmp.ne.s32.totalorder %s363, %s379
      %p381 = scmp.eq.s32.totalorder %s27, 0
      %p382 = por %p380, %p381
      %s384 = sadd.s32 %s383, 1
      %p387 = scmp.eq.s32.totalorder %s21, 1
      %p388 = scmp.ne.s32.totalorder %s383, %s385
      %p389 = scmp.eq.s32.totalorder %s21, 0
      %p390 = por %p388, %p389
      %p391 = scmp.ne.s32.totalorder %s383, %s385
      %p392 = scmp.eq.s32.totalorder %s26, 1
      %p393 = por %p391, %p392
      %p394 = scmp.ne.s32.totalorder %s385, %s386
      %p395 = scmp.eq.s32.totalorder %s26, 0
      %p396 = por %p394, %p395
      %p397 = scmp.ne.s32.totalorder %s385, %s386
      %p398 = scmp.eq.s32.totalorder %s27, 1
      %p399 = por %p397, %p398
      %p401 = scmp.ne.s32.totalorder %s386, %s400
      %p402 = scmp.eq.s32.totalorder %s27, 0
      %p403 = por %p401, %p402
      %p404 = scmp.le.s32.totalorder 1, %s21
      %p405 = scmp.lt.s32.totalorder %s21, 3
      %p406 = pnand %p404, %p405
      %p407 = pneg %p406
      // Predicated region
      $region9: #{tpu_custom_call.1} parent=5 // pred_check
        _
      $region10: #{tpu_custom_call.1} parent=5 // pred_check_branch
        %409 = sbr.rel (%p406) target = $region12
      $region11: #{tpu_custom_call.1} parent=5 // pred_region
        %s410 = ssub.s32 %s21, 1
        // Predicated region
        $region13: #{tpu_custom_call.1} parent=11 // pred_check
          %p411 = pneg %p42
        $region14: #{tpu_custom_call.1} parent=11 // pred_check_branch
          %413 = sbr.rel (%p411) target = $region16
        $region15: #{tpu_custom_call.1} parent=11 // pred_region
          _
        $region16: #{tpu_custom_call.1} parent=11 // pred_fallthru
          _
        // Predicated region
        $region17: #{tpu_custom_call.1} parent=11 // pred_check
          %p414 = pneg %p63
        $region18: #{tpu_custom_call.1} parent=11 // pred_check_branch
          %416 = sbr.rel (%p414) target = $region20
        $region19: #{tpu_custom_call.1} parent=11 // pred_region
          _
        $region20: #{tpu_custom_call.1} parent=11 // pred_fallthru
          _
      $region12: #{tpu_custom_call.1} parent=5 // pred_fallthru
        _
      %p417 = scmp.lt.s32.totalorder %s21, 2
      // Predicated region
      $region21: #{tpu_custom_call.1} parent=5 // pred_check
        %p418 = pneg %p417
      $region22: #{tpu_custom_call.1} parent=5 // pred_check_branch
        %420 = sbr.rel (%p418) target = $region24
      $region23: #{tpu_custom_call.1} parent=5 // pred_region
        // Predicated region
        $region25: #{tpu_custom_call.1} parent=23 // pred_check
          %p421 = pneg %p83
        $region26: #{tpu_custom_call.1} parent=23 // pred_check_branch
          %423 = sbr.rel (%p421) target = $region28
        $region27: #{tpu_custom_call.1} parent=23 // pred_region
          %p424 = scmp.lt.s32.totalorder %s21, 1
          %s425 = scalar_select %p424, %s21, 1
          %s426 = smul.addr %s425, 16
          %s427 = smul.addr %s426, 8
          %s428 = scalar_lea.vmem %s2, %s427
        $region28: #{tpu_custom_call.1} parent=23 // pred_fallthru
          _
        // Predicated region
        $region29: #{tpu_custom_call.1} parent=23 // pred_check
          %p429 = pneg %p109
        $region30: #{tpu_custom_call.1} parent=23 // pred_check_branch
          %431 = sbr.rel (%p429) target = $region32
        $region31: #{tpu_custom_call.1} parent=23 // pred_region
          %p432 = scmp.lt.s32.totalorder %s21, 1
          %s433 = scalar_select %p432, %s21, 1
          %s434 = smul.addr %s433, 16
          %s435 = smul.addr %s434, 8
          %s436 = scalar_lea.vmem %s3, %s435
        $region32: #{tpu_custom_call.1} parent=23 // pred_fallthru
          _
        // Predicated region
        $region33: #{tpu_custom_call.1} parent=23 // pred_check
          %p437 = pneg %p135
        $region34: #{tpu_custom_call.1} parent=23 // pred_check_branch
          %439 = sbr.rel (%p437) target = $region36
        $region35: #{tpu_custom_call.1} parent=23 // pred_region
          %p440 = scmp.lt.s32.totalorder %s21, 1
          %s441 = scalar_select %p440, %s21, 1
          %s442 = smul.addr %s441, 16
          %s443 = smul.addr %s442, 8
          %s444 = scalar_lea.vmem %s4, %s443
        $region36: #{tpu_custom_call.1} parent=23 // pred_fallthru
          _
        // Predicated region
        $region37: #{tpu_custom_call.1} parent=23 // pred_check
          %p445 = pneg %p161
        $region38: #{tpu_custom_call.1} parent=23 // pred_check_branch
          %447 = sbr.rel (%p445) target = $region40
        $region39: #{tpu_custom_call.1} parent=23 // pred_region
          %p448 = scmp.lt.s32.totalorder %s21, 1
          %s449 = scalar_select %p448, %s21, 1
          %s450 = smul.addr %s449, 4
          %s451 = smul.addr %s450, 8
          %s452 = scalar_lea.vmem %s5, %s451
        $region40: #{tpu_custom_call.1} parent=23 // pred_fallthru
          _
        // Predicated region
        $region41: #{tpu_custom_call.1} parent=23 // pred_check
          %p453 = pneg %p187
        $region42: #{tpu_custom_call.1} parent=23 // pred_check_branch
          %455 = sbr.rel (%p453) target = $region44
        $region43: #{tpu_custom_call.1} parent=23 // pred_region
          %p456 = scmp.lt.s32.totalorder %s21, 1
          %s457 = scalar_select %p456, %s21, 1
          %s458 = scalar_lea.vmem %s6, %s457
        $region44: #{tpu_custom_call.1} parent=23 // pred_fallthru
          _
        // Predicated region
        $region45: #{tpu_custom_call.1} parent=23 // pred_check
          %p459 = pneg %p213
        $region46: #{tpu_custom_call.1} parent=23 // pred_check_branch
          %461 = sbr.rel (%p459) target = $region48
        $region47: #{tpu_custom_call.1} parent=23 // pred_region
          %p462 = scmp.lt.s32.totalorder %s21, 1
          %s463 = scalar_select %p462, %s21, 1
          %s464 = scalar_lea.vmem %s7, %s463
        $region48: #{tpu_custom_call.1} parent=23 // pred_fallthru
          _
        // Predicated region
        $region49: #{tpu_custom_call.1} parent=23 // pred_check
          %p465 = pneg %p239
        $region50: #{tpu_custom_call.1} parent=23 // pred_check_branch
          %467 = sbr.rel (%p465) target = $region52
        $region51: #{tpu_custom_call.1} parent=23 // pred_region
          %p468 = scmp.lt.s32.totalorder %s21, 1
          %s469 = scalar_select %p468, %s21, 1
          %s470 = smul.addr %s469, 4
          %s471 = smul.addr %s470, 8
          %s472 = scalar_lea.vmem %s8, %s471
        $region52: #{tpu_custom_call.1} parent=23 // pred_fallthru
          _
        // Predicated region
        $region53: #{tpu_custom_call.1} parent=23 // pred_check
          %p473 = pneg %p265
        $region54: #{tpu_custom_call.1} parent=23 // pred_check_branch
          %475 = sbr.rel (%p473) target = $region56
        $region55: #{tpu_custom_call.1} parent=23 // pred_region
          %p476 = scmp.lt.s32.totalorder %s21, 1
          %s477 = scalar_select %p476, %s21, 1
          %s478 = scalar_lea.vmem %s9, %s477
        $region56: #{tpu_custom_call.1} parent=23 // pred_fallthru
          _
        // Predicated region
        $region57: #{tpu_custom_call.1} parent=23 // pred_check
          %p479 = pneg %p291
        $region58: #{tpu_custom_call.1} parent=23 // pred_check_branch
          %481 = sbr.rel (%p479) target = $region60
        $region59: #{tpu_custom_call.1} parent=23 // pred_region
          %p482 = scmp.lt.s32.totalorder %s21, 1
          %s483 = scalar_select %p482, %s21, 1
          %s484 = smul.addr %s483, 8
          %s485 = smul.addr %s484, 8
          %s486 = scalar_lea.vmem %s10, %s485
        $region60: #{tpu_custom_call.1} parent=23 // pred_fallthru
          _
        // Predicated region
        $region61: #{tpu_custom_call.1} parent=23 // pred_check
          %p487 = pneg %p317
        $region62: #{tpu_custom_call.1} parent=23 // pred_check_branch
          %489 = sbr.rel (%p487) target = $region64
        $region63: #{tpu_custom_call.1} parent=23 // pred_region
          %p490 = scmp.lt.s32.totalorder %s21, 1
          %s491 = scalar_select %p490, %s21, 1
          %s492 = scalar_lea.vmem %s11, %s491
        $region64: #{tpu_custom_call.1} parent=23 // pred_fallthru
          _
        // Predicated region
        $region65: #{tpu_custom_call.1} parent=23 // pred_check
          %p493 = pneg %p343
        $region66: #{tpu_custom_call.1} parent=23 // pred_check_branch
          %495 = sbr.rel (%p493) target = $region68
        $region67: #{tpu_custom_call.1} parent=23 // pred_region
          %p496 = scmp.lt.s32.totalorder %s21, 1
          %s497 = scalar_select %p496, %s21, 1
          %s498 = scalar_lea.vmem %s12, %s497
        $region68: #{tpu_custom_call.1} parent=23 // pred_fallthru
          _
        // Predicated region
        $region69: #{tpu_custom_call.1} parent=23 // pred_check
          %p499 = pneg %p369
        $region70: #{tpu_custom_call.1} parent=23 // pred_check_branch
          %501 = sbr.rel (%p499) target = $region72
        $region71: #{tpu_custom_call.1} parent=23 // pred_region
          %p502 = scmp.lt.s32.totalorder %s21, 1
          %s503 = scalar_select %p502, %s21, 1
          %s504 = scalar_lea.vmem %s13, %s503
        $region72: #{tpu_custom_call.1} parent=23 // pred_fallthru
          _
      $region24: #{tpu_custom_call.1} parent=5 // pred_fallthru
        _
      %p505 = scmp.le.s32.totalorder 1, %s21
      %p506 = scmp.lt.s32.totalorder %s21, 3
      %p507 = pnand %p505, %p506
      %p508 = pneg %p507
      // Predicated region
      $region73: #{tpu_custom_call.1} parent=5 // pred_check
        _
      $region74: #{tpu_custom_call.1} parent=5 // pred_check_branch
        %510 = sbr.rel (%p507) target = $region76
      $region75: #{tpu_custom_call.1} parent=5 // pred_region
        %s511 = ssub.s32 %s21, 1
        %p512 = pneg %p42
        %p513 = pneg %p39
        %p514 = pneg %p63
        %p515 = pneg %p60
        %p516 = scmp.lt.s32.totalorder %s26, 1
        %s517 = scalar_select %p516, %s26, 1
        %s518 = smul.addr %s517, 16
        %s519 = smul.addr %s518, 8
        %s520 = scalar_lea.vmem %s2, %s519
        %p521 = pneg %p89
        %p522 = pneg %p86
        %p523 = scmp.lt.s32.totalorder %s26, 1
        %s524 = scalar_select %p523, %s26, 1
        %s525 = smul.addr %s524, 16
        %s526 = smul.addr %s525, 8
        %s527 = scalar_lea.vmem %s3, %s526
        %p528 = pneg %p115
        %p529 = pneg %p112
        %p530 = scmp.lt.s32.totalorder %s26, 1
        %s531 = scalar_select %p530, %s26, 1
        %s532 = smul.addr %s531, 16
        %s533 = smul.addr %s532, 8
        %s534 = scalar_lea.vmem %s4, %s533
        %p535 = pneg %p141
        %p536 = pneg %p138
        %p537 = scmp.lt.s32.totalorder %s26, 1
        %s538 = scalar_select %p537, %s26, 1
        %s539 = smul.addr %s538, 4
        %s540 = smul.addr %s539, 8
        %s541 = scalar_lea.vmem %s5, %s540
        %p542 = pneg %p167
        %p543 = pneg %p164
        %p544 = scmp.lt.s32.totalorder %s26, 1
        %s545 = scalar_select %p544, %s26, 1
        %s546 = scalar_lea.vmem %s6, %s545
        %p547 = pneg %p193
        %p548 = pneg %p190
        %p549 = scmp.lt.s32.totalorder %s26, 1
        %s550 = scalar_select %p549, %s26, 1
        %s551 = scalar_lea.vmem %s7, %s550
        %p552 = pneg %p219
        %p553 = pneg %p216
        %p554 = scmp.lt.s32.totalorder %s26, 1
        %s555 = scalar_select %p554, %s26, 1
        %s556 = smul.addr %s555, 4
        %s557 = smul.addr %s556, 8
        %s558 = scalar_lea.vmem %s8, %s557
        %p559 = pneg %p245
        %p560 = pneg %p242
        %p561 = scmp.lt.s32.totalorder %s26, 1
        %s562 = scalar_select %p561, %s26, 1
        %s563 = scalar_lea.vmem %s9, %s562
        %p564 = pneg %p271
        %p565 = pneg %p268
        %p566 = scmp.lt.s32.totalorder %s26, 1
        %s567 = scalar_select %p566, %s26, 1
        %s568 = smul.addr %s567, 8
        %s569 = smul.addr %s568, 8
        %s570 = scalar_lea.vmem %s10, %s569
        %p571 = pneg %p297
        %p572 = pneg %p294
        %p573 = scmp.lt.s32.totalorder %s26, 1
        %s574 = scalar_select %p573, %s26, 1
        %s575 = scalar_lea.vmem %s11, %s574
        %p576 = pneg %p323
        %p577 = pneg %p320
        %p578 = scmp.lt.s32.totalorder %s26, 1
        %s579 = scalar_select %p578, %s26, 1
        %s580 = scalar_lea.vmem %s12, %s579
        %p581 = pneg %p349
        %p582 = pneg %p346
        %p583 = scmp.lt.s32.totalorder %s26, 1
        %s584 = scalar_select %p583, %s26, 1
        %s585 = scalar_lea.vmem %s13, %s584
        %p586 = pneg %p375
        %p587 = pneg %p372
        %p588 = pneg %p396
        %p589 = pneg %p393
        %p590 = scmp.lt.s32.totalorder %s26, 1
        %s591 = scalar_select %p590, %s26, 1
        %s592 = smul.addr %s591, 16
        %s593 = smul.addr %s592, 8
        %s594 = scalar_lea.vmem %s2, %s593
        %p595 = scmp.lt.s32.totalorder %s26, 1
        %s596 = scalar_select %p595, %s26, 1
        %s597 = smul.addr %s596, 16
        %s598 = smul.addr %s597, 8
        %s599 = scalar_lea.vmem %s3, %s598
        %p600 = scmp.lt.s32.totalorder %s26, 1
        %s601 = scalar_select %p600, %s26, 1
        %s602 = smul.addr %s601, 16
        %s603 = smul.addr %s602, 8
        %s604 = scalar_lea.vmem %s4, %s603
        %p605 = scmp.lt.s32.totalorder %s26, 1
        %s606 = scalar_select %p605, %s26, 1
        %s607 = smul.addr %s606, 4
        %s608 = smul.addr %s607, 8
        %s609 = scalar_lea.vmem %s5, %s608
        %p610 = scmp.lt.s32.totalorder %s26, 1
        %s611 = scalar_select %p610, %s26, 1
        %s612 = scalar_lea.vmem %s6, %s611
        %p613 = scmp.lt.s32.totalorder %s26, 1
        %s614 = scalar_select %p613, %s26, 1
        %s615 = scalar_lea.vmem %s7, %s614
        %p616 = scmp.lt.s32.totalorder %s26, 1
        %s617 = scalar_select %p616, %s26, 1
        %s618 = smul.addr %s617, 4
        %s619 = smul.addr %s618, 8
        %s620 = scalar_lea.vmem %s8, %s619
        %p621 = scmp.lt.s32.totalorder %s26, 1
        %s622 = scalar_select %p621, %s26, 1
        %s623 = scalar_lea.vmem %s9, %s622
        %p624 = scmp.lt.s32.totalorder %s26, 1
        %s625 = scalar_select %p624, %s26, 1
        %s626 = smul.addr %s625, 8
        %s627 = smul.addr %s626, 8
        %s628 = scalar_lea.vmem %s10, %s627
        %p629 = scmp.lt.s32.totalorder %s26, 1
        %s630 = scalar_select %p629, %s26, 1
        %s631 = scalar_lea.vmem %s11, %s630
        %p632 = scmp.lt.s32.totalorder %s26, 1
        %s633 = scalar_select %p632, %s26, 1
        %s634 = scalar_lea.vmem %s12, %s633
        %p635 = scmp.lt.s32.totalorder %s26, 1
        %s636 = scalar_select %p635, %s26, 1
        %s637 = scalar_lea.vmem %s13, %s636
        %p638 = scmp.eq.s32.totalorder %s26, 0
        // Predicated region
        $region77: #{tpu_custom_call.1} parent=75 // pred_check
          %p639 = pneg %p638
        $region78: #{tpu_custom_call.1} parent=75 // pred_check_branch
          %641 = sbr.rel (%p639) target = $region80
        $region79: #{tpu_custom_call.1} parent=75 // pred_region
          %v642 = vld [vmem:[%s0] sm:$0xff]
          %v643 = vld [vmem:[%s0 + $0x8] sm:$0xff]
          %vm644 = vcmask 261120
          %645 = vst.msk [vmem:[#allocation2] sm:$0xff] %vm644, %v642
          %646 = vst.msk [vmem:[#allocation2 + $0x8] sm:$0xff] %vm644, %v643
        $region80: #{tpu_custom_call.1} parent=75 // pred_fallthru
          _
        %v647 = vld [vmem:[#allocation2] sm:$0xff]
        %v648 = vld [vmem:[#allocation2 + $0x8] sm:$0xff]
        %v649 = vld [vmem:[%s594] sm:$0xff]
        %v650 = vld [vmem:[%s594 + $0x8] sm:$0xff]
        %v651 = vld [vmem:[%s594 + $0x10] sm:$0xff]
        %v652 = vld [vmem:[%s594 + $0x18] sm:$0xff]
        %v653 = vld [vmem:[%s594 + $0x20] sm:$0xff]
        %v654 = vld [vmem:[%s594 + $0x28] sm:$0xff]
        %v655 = vld [vmem:[%s594 + $0x30] sm:$0xff]
        %v656 = vld [vmem:[%s594 + $0x38] sm:$0xff]
        %v657 = vld [vmem:[%s594 + $0x40] sm:$0xff]
        %v658 = vld [vmem:[%s594 + $0x48] sm:$0xff]
        %v659 = vld [vmem:[%s594 + $0x50] sm:$0xff]
        %v660 = vld [vmem:[%s594 + $0x58] sm:$0xff]
        %v661 = vld [vmem:[%s594 + $0x60] sm:$0xff]
        %v662 = vld [vmem:[%s594 + $0x68] sm:$0xff]
        %v663 = vld [vmem:[%s594 + $0x70] sm:$0xff]
        %v664 = vld [vmem:[%s594 + $0x78] sm:$0xff]
        %vm665 = vcmask 261120
        %v667 = vsel %vm665, %v647, 0
        %v670 = vsel %vm665, %v648, 0
        %672 = vmatprep.subr.mxu0 0.0
        %673 = vmatpush1.msra.mxu0 0.0
        %674 = vmatprep.subr.mxu0 0.0
        %675 = vmatpush1.msra.mxu0 0.0
        %676 = vmatprep.subr.mxu0 0.0
        %677 = vmatpush1.msra.mxu0 0.0
        %678 = vmatprep.subr.mxu0 0.0
        %679 = vmatpush1.msra.mxu0 0.0
        %680 = vmatprep.subr.mxu0 0.0
        %681 = vmatpush1.msra.mxu0 0.0
        %682 = vmatprep.subr.mxu0 0.0
        %683 = vmatpush1.msra.mxu0 0.0
        %684 = vmatprep.subr.mxu0 0.0
        %685 = vmatpush1.msra.mxu0 0.0
        %686 = vmatprep.subr.mxu0 0.0
        %687 = vmatpush1.msra.mxu0 0.0
        %688 = vmatprep.subr.mxu0 0.0
        %689 = vmatpush1.msra.mxu0 0.0
        %690 = vmatprep.subr.mxu0 0.0
        %691 = vmatpush1.msra.mxu0 0.0
        %692 = vmatprep.subr.mxu0 0.0
        %693 = vmatpush1.msra.mxu0 0.0
        %694 = vmatprep.subr.mxu0 0.0
        %695 = vmatpush1.msra.mxu0 0.0
        %696 = vmatprep.subr.mxu0 0.0
        %697 = vmatpush1.msra.mxu0 %v652
        %698 = vmatprep.subr.mxu0 0.0
        %699 = vmatpush1.msra.mxu0 %v651
        %700 = vmatprep.subr.mxu0 0.0
        %701 = vmatpush1.msra.mxu0 %v650
        %702 = vmatprep.subr.mxu0 0.0
        %703 = vmatpush1.msra.mxu0 %v649
        %704 = vmatprep.subr.mxu0 0.0
        %705 = vmatpush2.msra.mxu0 0.0
        %706 = vmatprep.subr.mxu0 0.0
        %707 = vmatpush2.msra.mxu0 0.0
        %708 = vmatprep.subr.mxu0 0.0
        %709 = vmatpush2.msra.mxu0 0.0
        %710 = vmatprep.subr.mxu0 0.0
        %711 = vmatpush2.msra.mxu0 0.0
        %712 = vmatprep.subr.mxu0 0.0
        %713 = vmatpush2.msra.mxu0 0.0
        %714 = vmatprep.subr.mxu0 0.0
        %715 = vmatpush2.msra.mxu0 0.0
        %716 = vmatprep.subr.mxu0 0.0
        %717 = vmatpush2.msra.mxu0 0.0
        %718 = vmatprep.subr.mxu0 0.0
        %719 = vmatpush2.msra.mxu0 0.0
        %720 = vmatprep.subr.mxu0 0.0
        %721 = vmatpush2.msra.mxu0 0.0
        %722 = vmatprep.subr.mxu0 0.0
        %723 = vmatpush2.msra.mxu0 0.0
        %724 = vmatprep.subr.mxu0 0.0
        %725 = vmatpush2.msra.mxu0 0.0
        %726 = vmatprep.subr.mxu0 0.0
        %727 = vmatpush2.msra.mxu0 0.0
        %728 = vmatprep.subr.mxu0 0.0
        %729 = vmatpush2.msra.mxu0 0.0
        %730 = vmatprep.subr.mxu0 0.0
        %731 = vmatpush2.msra.mxu0 0.0
        %732 = vmatprep.subr.mxu0 0.0
        %733 = vmatpush2.msra.mxu0 0.0
        %734 = vmatprep.subr.mxu0 0.0
        %735 = vmatpush2.msra.mxu0 0.0
        %736 = vmatprep.mubr.f32.mxu0 0.0
        %737 = vmatmul.mubr.f32.gmra.mxu0 %v667
        %v738 = vpop.f32.mrf.mxu0
        %v739 = vadd.f32 0.0, %v738
        %v740 = vpop.f32.mrf.mxu0
        %741 = vmatprep.mubr.f32.mxu0 0.0
        %742 = vmatmul.mubr.f32.gmra.mxu0 %v670
        %v743 = vpop.f32.mrf.mxu0
        %v744 = vadd.f32 0.0, %v743
        %v745 = vpop.f32.mrf.mxu0
        %746 = vdwg.mxu0
        %747 = vmatprep.subr.mxu0 0.0
        %748 = vmatpush1.msra.mxu0 0.0
        %749 = vmatprep.subr.mxu0 0.0
        %750 = vmatpush1.msra.mxu0 0.0
        %751 = vmatprep.subr.mxu0 0.0
        %752 = vmatpush1.msra.mxu0 0.0
        %753 = vmatprep.subr.mxu0 0.0
        %754 = vmatpush1.msra.mxu0 0.0
        %755 = vmatprep.subr.mxu0 0.0
        %756 = vmatpush1.msra.mxu0 0.0
        %757 = vmatprep.subr.mxu0 0.0
        %758 = vmatpush1.msra.mxu0 0.0
        %759 = vmatprep.subr.mxu0 0.0
        %760 = vmatpush1.msra.mxu0 0.0
        %761 = vmatprep.subr.mxu0 0.0
        %762 = vmatpush1.msra.mxu0 0.0
        %763 = vmatprep.subr.mxu0 0.0
        %764 = vmatpush1.msra.mxu0 0.0
        %765 = vmatprep.subr.mxu0 0.0
        %766 = vmatpush1.msra.mxu0 0.0
        %767 = vmatprep.subr.mxu0 0.0
        %768 = vmatpush1.msra.mxu0 0.0
        %769 = vmatprep.subr.mxu0 0.0
        %770 = vmatpush1.msra.mxu0 0.0
        %771 = vmatprep.subr.mxu0 0.0
        %772 = vmatpush1.msra.mxu0 %v656
        %773 = vmatprep.subr.mxu0 0.0
        %774 = vmatpush1.msra.mxu0 %v655
        %775 = vmatprep.subr.mxu0 0.0
        %776 = vmatpush1.msra.mxu0 %v654
        %777 = vmatprep.subr.mxu0 0.0
        %778 = vmatpush1.msra.mxu0 %v653
        %779 = vmatprep.subr.mxu0 0.0
        %780 = vmatpush2.msra.mxu0 0.0
        %781 = vmatprep.subr.mxu0 0.0
        %782 = vmatpush2.msra.mxu0 0.0
        %783 = vmatprep.subr.mxu0 0.0
        %784 = vmatpush2.msra.mxu0 0.0
        %785 = vmatprep.subr.mxu0 0.0
        %786 = vmatpush2.msra.mxu0 0.0
        %787 = vmatprep.subr.mxu0 0.0
        %788 = vmatpush2.msra.mxu0 0.0
        %789 = vmatprep.subr.mxu0 0.0
        %790 = vmatpush2.msra.mxu0 0.0
        %791 = vmatprep.subr.mxu0 0.0
        %792 = vmatpush2.msra.mxu0 0.0
        %793 = vmatprep.subr.mxu0 0.0
        %794 = vmatpush2.msra.mxu0 0.0
        %795 = vmatprep.subr.mxu0 0.0
        %796 = vmatpush2.msra.mxu0 0.0
        %797 = vmatprep.subr.mxu0 0.0
        %798 = vmatpush2.msra.mxu0 0.0
        %799 = vmatprep.subr.mxu0 0.0
        %800 = vmatpush2.msra.mxu0 0.0
        %801 = vmatprep.subr.mxu0 0.0
        %802 = vmatpush2.msra.mxu0 0.0
        %803 = vmatprep.subr.mxu0 0.0
        %804 = vmatpush2.msra.mxu0 0.0
        %805 = vmatprep.subr.mxu0 0.0
        %806 = vmatpush2.msra.mxu0 0.0
        %807 = vmatprep.subr.mxu0 0.0
        %808 = vmatpush2.msra.mxu0 0.0
        %809 = vmatprep.subr.mxu0 0.0
        %810 = vmatpush2.msra.mxu0 0.0
        %811 = vmatprep.mubr.f32.mxu0 0.0
        %812 = vmatmul.mubr.f32.gmra.mxu0 %v667
        %v813 = vpop.f32.mrf.mxu0
        %v814 = vadd.f32 0.0, %v813
        %v815 = vpop.f32.mrf.mxu0
        %816 = vmatprep.mubr.f32.mxu0 0.0
        %817 = vmatmul.mubr.f32.gmra.mxu0 %v670
        %v818 = vpop.f32.mrf.mxu0
        %v819 = vadd.f32 0.0, %v818
        %v820 = vpop.f32.mrf.mxu0
        %821 = vdwg.mxu0
        %822 = vmatprep.subr.mxu0 0.0
        %823 = vmatpush1.msra.mxu0 0.0
        %824 = vmatprep.subr.mxu0 0.0
        %825 = vmatpush1.msra.mxu0 0.0
        %826 = vmatprep.subr.mxu0 0.0
        %827 = vmatpush1.msra.mxu0 0.0
        %828 = vmatprep.subr.mxu0 0.0
        %829 = vmatpush1.msra.mxu0 0.0
        %830 = vmatprep.subr.mxu0 0.0
        %831 = vmatpush1.msra.mxu0 0.0
        %832 = vmatprep.subr.mxu0 0.0
        %833 = vmatpush1.msra.mxu0 0.0
        %834 = vmatprep.subr.mxu0 0.0
        %835 = vmatpush1.msra.mxu0 0.0
        %836 = vmatprep.subr.mxu0 0.0
        %837 = vmatpush1.msra.mxu0 0.0
        %838 = vmatprep.subr.mxu0 0.0
        %839 = vmatpush1.msra.mxu0 0.0
        %840 = vmatprep.subr.mxu0 0.0
        %841 = vmatpush1.msra.mxu0 0.0
        %842 = vmatprep.subr.mxu0 0.0
        %843 = vmatpush1.msra.mxu0 0.0
        %844 = vmatprep.subr.mxu0 0.0
        %845 = vmatpush1.msra.mxu0 0.0
        %846 = vmatprep.subr.mxu0 0.0
        %847 = vmatpush1.msra.mxu0 %v660
        %848 = vmatprep.subr.mxu0 0.0
        %849 = vmatpush1.msra.mxu0 %v659
        %850 = vmatprep.subr.mxu0 0.0
        %851 = vmatpush1.msra.mxu0 %v658
        %852 = vmatprep.subr.mxu0 0.0
        %853 = vmatpush1.msra.mxu0 %v657
        %854 = vmatprep.subr.mxu0 0.0
        %855 = vmatpush2.msra.mxu0 0.0
        %856 = vmatprep.subr.mxu0 0.0
        %857 = vmatpush2.msra.mxu0 0.0
        %858 = vmatprep.subr.mxu0 0.0
        %859 = vmatpush2.msra.mxu0 0.0
        %860 = vmatprep.subr.mxu0 0.0
        %861 = vmatpush2.msra.mxu0 0.0
        %862 = vmatprep.subr.mxu0 0.0
        %863 = vmatpush2.msra.mxu0 0.0
        %864 = vmatprep.subr.mxu0 0.0
        %865 = vmatpush2.msra.mxu0 0.0
        %866 = vmatprep.subr.mxu0 0.0
        %867 = vmatpush2.msra.mxu0 0.0
        %868 = vmatprep.subr.mxu0 0.0
        %869 = vmatpush2.msra.mxu0 0.0
        %870 = vmatprep.subr.mxu0 0.0
        %871 = vmatpush2.msra.mxu0 0.0
        %872 = vmatprep.subr.mxu0 0.0
        %873 = vmatpush2.msra.mxu0 0.0
        %874 = vmatprep.subr.mxu0 0.0
        %875 = vmatpush2.msra.mxu0 0.0
        %876 = vmatprep.subr.mxu0 0.0
        %877 = vmatpush2.msra.mxu0 0.0
        %878 = vmatprep.subr.mxu0 0.0
        %879 = vmatpush2.msra.mxu0 0.0
        %880 = vmatprep.subr.mxu0 0.0
        %881 = vmatpush2.msra.mxu0 0.0
        %882 = vmatprep.subr.mxu0 0.0
        %883 = vmatpush2.msra.mxu0 0.0
        %884 = vmatprep.subr.mxu0 0.0
        %885 = vmatpush2.msra.mxu0 0.0
        %886 = vmatprep.mubr.f32.mxu0 0.0
        %887 = vmatmul.mubr.f32.gmra.mxu0 %v667
        %v888 = vpop.f32.mrf.mxu0
        %v889 = vadd.f32 0.0, %v888
        %v890 = vpop.f32.mrf.mxu0
        %891 = vmatprep.mubr.f32.mxu0 0.0
        %892 = vmatmul.mubr.f32.gmra.mxu0 %v670
        %v893 = vpop.f32.mrf.mxu0
        %v894 = vadd.f32 0.0, %v893
        %v895 = vpop.f32.mrf.mxu0
        %896 = vdwg.mxu0
        %897 = vmatprep.subr.mxu0 0.0
        %898 = vmatpush1.msra.mxu0 0.0
        %899 = vmatprep.subr.mxu0 0.0
        %900 = vmatpush1.msra.mxu0 0.0
        %901 = vmatprep.subr.mxu0 0.0
        %902 = vmatpush1.msra.mxu0 0.0
        %903 = vmatprep.subr.mxu0 0.0
        %904 = vmatpush1.msra.mxu0 0.0
        %905 = vmatprep.subr.mxu0 0.0
        %906 = vmatpush1.msra.mxu0 0.0
        %907 = vmatprep.subr.mxu0 0.0
        %908 = vmatpush1.msra.mxu0 0.0
        %909 = vmatprep.subr.mxu0 0.0
        %910 = vmatpush1.msra.mxu0 0.0
        %911 = vmatprep.subr.mxu0 0.0
        %912 = vmatpush1.msra.mxu0 0.0
        %913 = vmatprep.subr.mxu0 0.0
        %914 = vmatpush1.msra.mxu0 0.0
        %915 = vmatprep.subr.mxu0 0.0
        %916 = vmatpush1.msra.mxu0 0.0
        %917 = vmatprep.subr.mxu0 0.0
        %918 = vmatpush1.msra.mxu0 0.0
        %919 = vmatprep.subr.mxu0 0.0
        %920 = vmatpush1.msra.mxu0 0.0
        %921 = vmatprep.subr.mxu0 0.0
        %922 = vmatpush1.msra.mxu0 %v664
        %923 = vmatprep.subr.mxu0 0.0
        %924 = vmatpush1.msra.mxu0 %v663
        %925 = vmatprep.subr.mxu0 0.0
        %926 = vmatpush1.msra.mxu0 %v662
        %927 = vmatprep.subr.mxu0 0.0
        %928 = vmatpush1.msra.mxu0 %v661
        %929 = vmatprep.subr.mxu0 0.0
        %930 = vmatpush2.msra.mxu0 0.0
        %931 = vmatprep.subr.mxu0 0.0
        %932 = vmatpush2.msra.mxu0 0.0
        %933 = vmatprep.subr.mxu0 0.0
        %934 = vmatpush2.msra.mxu0 0.0
        %935 = vmatprep.subr.mxu0 0.0
        %936 = vmatpush2.msra.mxu0 0.0
        %937 = vmatprep.subr.mxu0 0.0
        %938 = vmatpush2.msra.mxu0 0.0
        %939 = vmatprep.subr.mxu0 0.0
        %940 = vmatpush2.msra.mxu0 0.0
        %941 = vmatprep.subr.mxu0 0.0
        %942 = vmatpush2.msra.mxu0 0.0
        %943 = vmatprep.subr.mxu0 0.0
        %944 = vmatpush2.msra.mxu0 0.0
        %945 = vmatprep.subr.mxu0 0.0
        %946 = vmatpush2.msra.mxu0 0.0
        %947 = vmatprep.subr.mxu0 0.0
        %948 = vmatpush2.msra.mxu0 0.0
        %949 = vmatprep.subr.mxu0 0.0
        %950 = vmatpush2.msra.mxu0 0.0
        %951 = vmatprep.subr.mxu0 0.0
        %952 = vmatpush2.msra.mxu0 0.0
        %953 = vmatprep.subr.mxu0 0.0
        %954 = vmatpush2.msra.mxu0 0.0
        %955 = vmatprep.subr.mxu0 0.0
        %956 = vmatpush2.msra.mxu0 0.0
        %957 = vmatprep.subr.mxu0 0.0
        %958 = vmatpush2.msra.mxu0 0.0
        %959 = vmatprep.subr.mxu0 0.0
        %960 = vmatpush2.msra.mxu0 0.0
        %961 = vmatprep.mubr.f32.mxu0 0.0
        %962 = vmatmul.mubr.f32.gmra.mxu0 %v667
        %v963 = vpop.f32.mrf.mxu0
        %v964 = vadd.f32 0.0, %v963
        %v965 = vpop.f32.mrf.mxu0
        %966 = vmatprep.mubr.f32.mxu0 0.0
        %967 = vmatmul.mubr.f32.gmra.mxu0 %v670
        %v968 = vpop.f32.mrf.mxu0
        %v969 = vadd.f32 0.0, %v968
        %v970 = vpop.f32.mrf.mxu0
        %971 = vdwg.mxu0
        %v972 = vmul.f32 %v739, 0.35355338
        %v973 = vmul.f32 %v744, 0.35355338
        %v974 = vmul.f32 %v814, 0.35355338
        %v975 = vmul.f32 %v819, 0.35355338
        %v976 = vmul.f32 %v889, 0.35355338
        %v977 = vmul.f32 %v894, 0.35355338
        %v978 = vmul.f32 %v964, 0.35355338
        %v979 = vmul.f32 %v969, 0.35355338
        %v980 = vld [vmem:[%s599] sm:$0xff]
        %v981 = vld [vmem:[%s599 + $0x8] sm:$0xff]
        %v982 = vld [vmem:[%s599 + $0x10] sm:$0xff]
        %v983 = vld [vmem:[%s599 + $0x18] sm:$0xff]
        %v984 = vld [vmem:[%s599 + $0x20] sm:$0xff]
        %v985 = vld [vmem:[%s599 + $0x28] sm:$0xff]
        %v986 = vld [vmem:[%s599 + $0x30] sm:$0xff]
        %v987 = vld [vmem:[%s599 + $0x38] sm:$0xff]
        %v988 = vld [vmem:[%s599 + $0x40] sm:$0xff]
        %v989 = vld [vmem:[%s599 + $0x48] sm:$0xff]
        %v990 = vld [vmem:[%s599 + $0x50] sm:$0xff]
        %v991 = vld [vmem:[%s599 + $0x58] sm:$0xff]
        %v992 = vld [vmem:[%s599 + $0x60] sm:$0xff]
        %v993 = vld [vmem:[%s599 + $0x68] sm:$0xff]
        %v994 = vld [vmem:[%s599 + $0x70] sm:$0xff]
        %v995 = vld [vmem:[%s599 + $0x78] sm:$0xff]
        %996 = vmatprep.subr.mxu0 0.0
        %997 = vmatpush1.msra.mxu0 0.0
        %998 = vmatprep.subr.mxu0 0.0
        %999 = vmatpush1.msra.mxu0 0.0
        %1000 = vmatprep.subr.mxu0 0.0
        %1001 = vmatpush1.msra.mxu0 0.0
        %1002 = vmatprep.subr.mxu0 0.0
        %1003 = vmatpush1.msra.mxu0 0.0
        %1004 = vmatprep.subr.mxu0 0.0
        %1005 = vmatpush1.msra.mxu0 0.0
        %1006 = vmatprep.subr.mxu0 0.0
        %1007 = vmatpush1.msra.mxu0 0.0
        %1008 = vmatprep.subr.mxu0 0.0
        %1009 = vmatpush1.msra.mxu0 0.0
        %1010 = vmatprep.subr.mxu0 0.0
        %1011 = vmatpush1.msra.mxu0 0.0
        %1012 = vmatprep.subr.mxu0 0.0
        %1013 = vmatpush1.msra.mxu0 0.0
        %1014 = vmatprep.subr.mxu0 0.0
        %1015 = vmatpush1.msra.mxu0 0.0
        %1016 = vmatprep.subr.mxu0 0.0
        %1017 = vmatpush1.msra.mxu0 0.0
        %1018 = vmatprep.subr.mxu0 0.0
        %1019 = vmatpush1.msra.mxu0 0.0
        %1020 = vmatprep.subr.mxu0 0.0
        %1021 = vmatpush1.msra.mxu0 %v983
        %1022 = vmatprep.subr.mxu0 0.0
        %1023 = vmatpush1.msra.mxu0 %v982
        %1024 = vmatprep.subr.mxu0 0.0
        %1025 = vmatpush1.msra.mxu0 %v981
        %1026 = vmatprep.subr.mxu0 0.0
        %1027 = vmatpush1.msra.mxu0 %v980
        %1028 = vmatprep.subr.mxu0 0.0
        %1029 = vmatpush2.msra.mxu0 0.0
        %1030 = vmatprep.subr.mxu0 0.0
        %1031 = vmatpush2.msra.mxu0 0.0
        %1032 = vmatprep.subr.mxu0 0.0
        %1033 = vmatpush2.msra.mxu0 0.0
        %1034 = vmatprep.subr.mxu0 0.0
        %1035 = vmatpush2.msra.mxu0 0.0
        %1036 = vmatprep.subr.mxu0 0.0
        %1037 = vmatpush2.msra.mxu0 0.0
        %1038 = vmatprep.subr.mxu0 0.0
        %1039 = vmatpush2.msra.mxu0 0.0
        %1040 = vmatprep.subr.mxu0 0.0
        %1041 = vmatpush2.msra.mxu0 0.0
        %1042 = vmatprep.subr.mxu0 0.0
        %1043 = vmatpush2.msra.mxu0 0.0
        %1044 = vmatprep.subr.mxu0 0.0
        %1045 = vmatpush2.msra.mxu0 0.0
        %1046 = vmatprep.subr.mxu0 0.0
        %1047 = vmatpush2.msra.mxu0 0.0
        %1048 = vmatprep.subr.mxu0 0.0
        %1049 = vmatpush2.msra.mxu0 0.0
        %1050 = vmatprep.subr.mxu0 0.0
        %1051 = vmatpush2.msra.mxu0 0.0
        %1052 = vmatprep.subr.mxu0 0.0
        %1053 = vmatpush2.msra.mxu0 0.0
        %1054 = vmatprep.subr.mxu0 0.0
        %1055 = vmatpush2.msra.mxu0 0.0
        %1056 = vmatprep.subr.mxu0 0.0
        %1057 = vmatpush2.msra.mxu0 0.0
        %1058 = vmatprep.subr.mxu0 0.0
        %1059 = vmatpush2.msra.mxu0 0.0
        %1060 = vmatprep.mubr.f32.mxu0 0.0
        %1061 = vmatmul.mubr.f32.gmra.mxu0 %v667
        %v1062 = vpop.f32.mrf.mxu0
        %v1063 = vadd.f32 0.0, %v1062
        %v1064 = vpop.f32.mrf.mxu0
        %1065 = vmatprep.mubr.f32.mxu0 0.0
        %1066 = vmatmul.mubr.f32.gmra.mxu0 %v670
        %v1067 = vpop.f32.mrf.mxu0
        %v1068 = vadd.f32 0.0, %v1067
        %v1069 = vpop.f32.mrf.mxu0
        %1070 = vdwg.mxu0
        %1071 = vmatprep.subr.mxu0 0.0
        %1072 = vmatpush1.msra.mxu0 0.0
        %1073 = vmatprep.subr.mxu0 0.0
        %1074 = vmatpush1.msra.mxu0 0.0
        %1075 = vmatprep.subr.mxu0 0.0
        %1076 = vmatpush1.msra.mxu0 0.0
        %1077 = vmatprep.subr.mxu0 0.0
        %1078 = vmatpush1.msra.mxu0 0.0
        %1079 = vmatprep.subr.mxu0 0.0
        %1080 = vmatpush1.msra.mxu0 0.0
        %1081 = vmatprep.subr.mxu0 0.0
        %1082 = vmatpush1.msra.mxu0 0.0
        %1083 = vmatprep.subr.mxu0 0.0
        %1084 = vmatpush1.msra.mxu0 0.0
        %1085 = vmatprep.subr.mxu0 0.0
        %1086 = vmatpush1.msra.mxu0 0.0
        %1087 = vmatprep.subr.mxu0 0.0
        %1088 = vmatpush1.msra.mxu0 0.0
        %1089 = vmatprep.subr.mxu0 0.0
        %1090 = vmatpush1.msra.mxu0 0.0
        %1091 = vmatprep.subr.mxu0 0.0
        %1092 = vmatpush1.msra.mxu0 0.0
        %1093 = vmatprep.subr.mxu0 0.0
        %1094 = vmatpush1.msra.mxu0 0.0
        %1095 = vmatprep.subr.mxu0 0.0
        %1096 = vmatpush1.msra.mxu0 %v987
        %1097 = vmatprep.subr.mxu0 0.0
        %1098 = vmatpush1.msra.mxu0 %v986
        %1099 = vmatprep.subr.mxu0 0.0
        %1100 = vmatpush1.msra.mxu0 %v985
        %1101 = vmatprep.subr.mxu0 0.0
        %1102 = vmatpush1.msra.mxu0 %v984
        %1103 = vmatprep.subr.mxu0 0.0
        %1104 = vmatpush2.msra.mxu0 0.0
        %1105 = vmatprep.subr.mxu0 0.0
        %1106 = vmatpush2.msra.mxu0 0.0
        %1107 = vmatprep.subr.mxu0 0.0
        %1108 = vmatpush2.msra.mxu0 0.0
        %1109 = vmatprep.subr.mxu0 0.0
        %1110 = vmatpush2.msra.mxu0 0.0
        %1111 = vmatprep.subr.mxu0 0.0
        %1112 = vmatpush2.msra.mxu0 0.0
        %1113 = vmatprep.subr.mxu0 0.0
        %1114 = vmatpush2.msra.mxu0 0.0
        %1115 = vmatprep.subr.mxu0 0.0
        %1116 = vmatpush2.msra.mxu0 0.0
        %1117 = vmatprep.subr.mxu0 0.0
        %1118 = vmatpush2.msra.mxu0 0.0
        %1119 = vmatprep.subr.mxu0 0.0
        %1120 = vmatpush2.msra.mxu0 0.0
        %1121 = vmatprep.subr.mxu0 0.0
        %1122 = vmatpush2.msra.mxu0 0.0
        %1123 = vmatprep.subr.mxu0 0.0
        %1124 = vmatpush2.msra.mxu0 0.0
        %1125 = vmatprep.subr.mxu0 0.0
        %1126 = vmatpush2.msra.mxu0 0.0
        %1127 = vmatprep.subr.mxu0 0.0
        %1128 = vmatpush2.msra.mxu0 0.0
        %1129 = vmatprep.subr.mxu0 0.0
        %1130 = vmatpush2.msra.mxu0 0.0
        %1131 = vmatprep.subr.mxu0 0.0
        %1132 = vmatpush2.msra.mxu0 0.0
        %1133 = vmatprep.subr.mxu0 0.0
        %1134 = vmatpush2.msra.mxu0 0.0
        %1135 = vmatprep.mubr.f32.mxu0 0.0
        %1136 = vmatmul.mubr.f32.gmra.mxu0 %v667
        %v1137 = vpop.f32.mrf.mxu0
        %v1138 = vadd.f32 0.0, %v1137
        %v1139 = vpop.f32.mrf.mxu0
        %1140 = vmatprep.mubr.f32.mxu0 0.0
        %1141 = vmatmul.mubr.f32.gmra.mxu0 %v670
        %v1142 = vpop.f32.mrf.mxu0
        %v1143 = vadd.f32 0.0, %v1142
        %v1144 = vpop.f32.mrf.mxu0
        %1145 = vdwg.mxu0
        %1146 = vmatprep.subr.mxu0 0.0
        %1147 = vmatpush1.msra.mxu0 0.0
        %1148 = vmatprep.subr.mxu0 0.0
        %1149 = vmatpush1.msra.mxu0 0.0
        %1150 = vmatprep.subr.mxu0 0.0
        %1151 = vmatpush1.msra.mxu0 0.0
        %1152 = vmatprep.subr.mxu0 0.0
        %1153 = vmatpush1.msra.mxu0 0.0
        %1154 = vmatprep.subr.mxu0 0.0
        %1155 = vmatpush1.msra.mxu0 0.0
        %1156 = vmatprep.subr.mxu0 0.0
        %1157 = vmatpush1.msra.mxu0 0.0
        %1158 = vmatprep.subr.mxu0 0.0
        %1159 = vmatpush1.msra.mxu0 0.0
        %1160 = vmatprep.subr.mxu0 0.0
        %1161 = vmatpush1.msra.mxu0 0.0
        %1162 = vmatprep.subr.mxu0 0.0
        %1163 = vmatpush1.msra.mxu0 0.0
        %1164 = vmatprep.subr.mxu0 0.0
        %1165 = vmatpush1.msra.mxu0 0.0
        %1166 = vmatprep.subr.mxu0 0.0
        %1167 = vmatpush1.msra.mxu0 0.0
        %1168 = vmatprep.subr.mxu0 0.0
        %1169 = vmatpush1.msra.mxu0 0.0
        %1170 = vmatprep.subr.mxu0 0.0
        %1171 = vmatpush1.msra.mxu0 %v991
        %1172 = vmatprep.subr.mxu0 0.0
        %1173 = vmatpush1.msra.mxu0 %v990
        %1174 = vmatprep.subr.mxu0 0.0
        %1175 = vmatpush1.msra.mxu0 %v989
        %1176 = vmatprep.subr.mxu0 0.0
        %1177 = vmatpush1.msra.mxu0 %v988
        %1178 = vmatprep.subr.mxu0 0.0
        %1179 = vmatpush2.msra.mxu0 0.0
        %1180 = vmatprep.subr.mxu0 0.0
        %1181 = vmatpush2.msra.mxu0 0.0
        %1182 = vmatprep.subr.mxu0 0.0
        %1183 = vmatpush2.msra.mxu0 0.0
        %1184 = vmatprep.subr.mxu0 0.0
        %1185 = vmatpush2.msra.mxu0 0.0
        %1186 = vmatprep.subr.mxu0 0.0
        %1187 = vmatpush2.msra.mxu0 0.0
        %1188 = vmatprep.subr.mxu0 0.0
        %1189 = vmatpush2.msra.mxu0 0.0
        %1190 = vmatprep.subr.mxu0 0.0
        %1191 = vmatpush2.msra.mxu0 0.0
        %1192 = vmatprep.subr.mxu0 0.0
        %1193 = vmatpush2.msra.mxu0 0.0
        %1194 = vmatprep.subr.mxu0 0.0
        %1195 = vmatpush2.msra.mxu0 0.0
        %1196 = vmatprep.subr.mxu0 0.0
        %1197 = vmatpush2.msra.mxu0 0.0
        %1198 = vmatprep.subr.mxu0 0.0
        %1199 = vmatpush2.msra.mxu0 0.0
        %1200 = vmatprep.subr.mxu0 0.0
        %1201 = vmatpush2.msra.mxu0 0.0
        %1202 = vmatprep.subr.mxu0 0.0
        %1203 = vmatpush2.msra.mxu0 0.0
        %1204 = vmatprep.subr.mxu0 0.0
        %1205 = vmatpush2.msra.mxu0 0.0
        %1206 = vmatprep.subr.mxu0 0.0
        %1207 = vmatpush2.msra.mxu0 0.0
        %1208 = vmatprep.subr.mxu0 0.0
        %1209 = vmatpush2.msra.mxu0 0.0
        %1210 = vmatprep.mubr.f32.mxu0 0.0
        %1211 = vmatmul.mubr.f32.gmra.mxu0 %v667
        %v1212 = vpop.f32.mrf.mxu0
        %v1213 = vadd.f32 0.0, %v1212
        %v1214 = vpop.f32.mrf.mxu0
        %1215 = vmatprep.mubr.f32.mxu0 0.0
        %1216 = vmatmul.mubr.f32.gmra.mxu0 %v670
        %v1217 = vpop.f32.mrf.mxu0
        %v1218 = vadd.f32 0.0, %v1217
        %v1219 = vpop.f32.mrf.mxu0
        %1220 = vdwg.mxu0
        %1221 = vmatprep.subr.mxu0 0.0
        %1222 = vmatpush1.msra.mxu0 0.0
        %1223 = vmatprep.subr.mxu0 0.0
        %1224 = vmatpush1.msra.mxu0 0.0
        %1225 = vmatprep.subr.mxu0 0.0
        %1226 = vmatpush1.msra.mxu0 0.0
        %1227 = vmatprep.subr.mxu0 0.0
        %1228 = vmatpush1.msra.mxu0 0.0
        %1229 = vmatprep.subr.mxu0 0.0
        %1230 = vmatpush1.msra.mxu0 0.0
        %1231 = vmatprep.subr.mxu0 0.0
        %1232 = vmatpush1.msra.mxu0 0.0
        %1233 = vmatprep.subr.mxu0 0.0
        %1234 = vmatpush1.msra.mxu0 0.0
        %1235 = vmatprep.subr.mxu0 0.0
        %1236 = vmatpush1.msra.mxu0 0.0
        %1237 = vmatprep.subr.mxu0 0.0
        %1238 = vmatpush1.msra.mxu0 0.0
        %1239 = vmatprep.subr.mxu0 0.0
        %1240 = vmatpush1.msra.mxu0 0.0
        %1241 = vmatprep.subr.mxu0 0.0
        %1242 = vmatpush1.msra.mxu0 0.0
        %1243 = vmatprep.subr.mxu0 0.0
        %1244 = vmatpush1.msra.mxu0 0.0
        %1245 = vmatprep.subr.mxu0 0.0
        %1246 = vmatpush1.msra.mxu0 %v995
        %1247 = vmatprep.subr.mxu0 0.0
        %1248 = vmatpush1.msra.mxu0 %v994
        %1249 = vmatprep.subr.mxu0 0.0
        %1250 = vmatpush1.msra.mxu0 %v993
        %1251 = vmatprep.subr.mxu0 0.0
        %1252 = vmatpush1.msra.mxu0 %v992
        %1253 = vmatprep.subr.mxu0 0.0
        %1254 = vmatpush2.msra.mxu0 0.0
        %1255 = vmatprep.subr.mxu0 0.0
        %1256 = vmatpush2.msra.mxu0 0.0
        %1257 = vmatprep.subr.mxu0 0.0
        %1258 = vmatpush2.msra.mxu0 0.0
        %1259 = vmatprep.subr.mxu0 0.0
        %1260 = vmatpush2.msra.mxu0 0.0
        %1261 = vmatprep.subr.mxu0 0.0
        %1262 = vmatpush2.msra.mxu0 0.0
        %1263 = vmatprep.subr.mxu0 0.0
        %1264 = vmatpush2.msra.mxu0 0.0
        %1265 = vmatprep.subr.mxu0 0.0
        %1266 = vmatpush2.msra.mxu0 0.0
        %1267 = vmatprep.subr.mxu0 0.0
        %1268 = vmatpush2.msra.mxu0 0.0
        %1269 = vmatprep.subr.mxu0 0.0
        %1270 = vmatpush2.msra.mxu0 0.0
        %1271 = vmatprep.subr.mxu0 0.0
        %1272 = vmatpush2.msra.mxu0 0.0
        %1273 = vmatprep.subr.mxu0 0.0
        %1274 = vmatpush2.msra.mxu0 0.0
        %1275 = vmatprep.subr.mxu0 0.0
        %1276 = vmatpush2.msra.mxu0 0.0
        %1277 = vmatprep.subr.mxu0 0.0
        %1278 = vmatpush2.msra.mxu0 0.0
        %1279 = vmatprep.subr.mxu0 0.0
        %1280 = vmatpush2.msra.mxu0 0.0
        %1281 = vmatprep.subr.mxu0 0.0
        %1282 = vmatpush2.msra.mxu0 0.0
        %1283 = vmatprep.subr.mxu0 0.0
        %1284 = vmatpush2.msra.mxu0 0.0
        %1285 = vmatprep.mubr.f32.mxu0 0.0
        %1286 = vmatmul.mubr.f32.gmra.mxu0 %v667
        %v1287 = vpop.f32.mrf.mxu0
        %v1288 = vadd.f32 0.0, %v1287
        %v1289 = vpop.f32.mrf.mxu0
        %1290 = vmatprep.mubr.f32.mxu0 0.0
        %1291 = vmatmul.mubr.f32.gmra.mxu0 %v670
        %v1292 = vpop.f32.mrf.mxu0
        %v1293 = vadd.f32 0.0, %v1292
        %v1294 = vpop.f32.mrf.mxu0
        %1295 = vdwg.mxu0
        %v1296 = vld [vmem:[%s604] sm:$0xff]
        %v1297 = vld [vmem:[%s604 + $0x8] sm:$0xff]
        %v1298 = vld [vmem:[%s604 + $0x10] sm:$0xff]
        %v1299 = vld [vmem:[%s604 + $0x18] sm:$0xff]
        %v1300 = vld [vmem:[%s604 + $0x20] sm:$0xff]
        %v1301 = vld [vmem:[%s604 + $0x28] sm:$0xff]
        %v1302 = vld [vmem:[%s604 + $0x30] sm:$0xff]
        %v1303 = vld [vmem:[%s604 + $0x38] sm:$0xff]
        %v1304 = vld [vmem:[%s604 + $0x40] sm:$0xff]
        %v1305 = vld [vmem:[%s604 + $0x48] sm:$0xff]
        %v1306 = vld [vmem:[%s604 + $0x50] sm:$0xff]
        %v1307 = vld [vmem:[%s604 + $0x58] sm:$0xff]
        %v1308 = vld [vmem:[%s604 + $0x60] sm:$0xff]
        %v1309 = vld [vmem:[%s604 + $0x68] sm:$0xff]
        %v1310 = vld [vmem:[%s604 + $0x70] sm:$0xff]
        %v1311 = vld [vmem:[%s604 + $0x78] sm:$0xff]
        %1312 = vmatprep.subr.mxu0 0.0
        %1313 = vmatpush1.msra.mxu0 0.0
        %1314 = vmatprep.subr.mxu0 0.0
        %1315 = vmatpush1.msra.mxu0 0.0
        %1316 = vmatprep.subr.mxu0 0.0
        %1317 = vmatpush1.msra.mxu0 0.0
        %1318 = vmatprep.subr.mxu0 0.0
        %1319 = vmatpush1.msra.mxu0 0.0
        %1320 = vmatprep.subr.mxu0 0.0
        %1321 = vmatpush1.msra.mxu0 0.0
        %1322 = vmatprep.subr.mxu0 0.0
        %1323 = vmatpush1.msra.mxu0 0.0
        %1324 = vmatprep.subr.mxu0 0.0
        %1325 = vmatpush1.msra.mxu0 0.0
        %1326 = vmatprep.subr.mxu0 0.0
        %1327 = vmatpush1.msra.mxu0 0.0
        %1328 = vmatprep.subr.mxu0 0.0
        %1329 = vmatpush1.msra.mxu0 0.0
        %1330 = vmatprep.subr.mxu0 0.0
        %1331 = vmatpush1.msra.mxu0 0.0
        %1332 = vmatprep.subr.mxu0 0.0
        %1333 = vmatpush1.msra.mxu0 0.0
        %1334 = vmatprep.subr.mxu0 0.0
        %1335 = vmatpush1.msra.mxu0 0.0
        %1336 = vmatprep.subr.mxu0 0.0
        %1337 = vmatpush1.msra.mxu0 %v1299
        %1338 = vmatprep.subr.mxu0 0.0
        %1339 = vmatpush1.msra.mxu0 %v1298
        %1340 = vmatprep.subr.mxu0 0.0
        %1341 = vmatpush1.msra.mxu0 %v1297
        %1342 = vmatprep.subr.mxu0 0.0
        %1343 = vmatpush1.msra.mxu0 %v1296
        %1344 = vmatprep.subr.mxu0 0.0
        %1345 = vmatpush2.msra.mxu0 0.0
        %1346 = vmatprep.subr.mxu0 0.0
        %1347 = vmatpush2.msra.mxu0 0.0
        %1348 = vmatprep.subr.mxu0 0.0
        %1349 = vmatpush2.msra.mxu0 0.0
        %1350 = vmatprep.subr.mxu0 0.0
        %1351 = vmatpush2.msra.mxu0 0.0
        %1352 = vmatprep.subr.mxu0 0.0
        %1353 = vmatpush2.msra.mxu0 0.0
        %1354 = vmatprep.subr.mxu0 0.0
        %1355 = vmatpush2.msra.mxu0 0.0
        %1356 = vmatprep.subr.mxu0 0.0
        %1357 = vmatpush2.msra.mxu0 0.0
        %1358 = vmatprep.subr.mxu0 0.0
        %1359 = vmatpush2.msra.mxu0 0.0
        %1360 = vmatprep.subr.mxu0 0.0
        %1361 = vmatpush2.msra.mxu0 0.0
        %1362 = vmatprep.subr.mxu0 0.0
        %1363 = vmatpush2.msra.mxu0 0.0
        %1364 = vmatprep.subr.mxu0 0.0
        %1365 = vmatpush2.msra.mxu0 0.0
        %1366 = vmatprep.subr.mxu0 0.0
        %1367 = vmatpush2.msra.mxu0 0.0
        %1368 = vmatprep.subr.mxu0 0.0
        %1369 = vmatpush2.msra.mxu0 0.0
        %1370 = vmatprep.subr.mxu0 0.0
        %1371 = vmatpush2.msra.mxu0 0.0
        %1372 = vmatprep.subr.mxu0 0.0
        %1373 = vmatpush2.msra.mxu0 0.0
        %1374 = vmatprep.subr.mxu0 0.0
        %1375 = vmatpush2.msra.mxu0 0.0
        %1376 = vmatprep.mubr.f32.mxu0 0.0
        %1377 = vmatmul.mubr.f32.gmra.mxu0 %v667
        %v1378 = vpop.f32.mrf.mxu0
        %v1379 = vadd.f32 0.0, %v1378
        %v1380 = vpop.f32.mrf.mxu0
        %1381 = vmatprep.mubr.f32.mxu0 0.0
        %1382 = vmatmul.mubr.f32.gmra.mxu0 %v670
        %v1383 = vpop.f32.mrf.mxu0
        %v1384 = vadd.f32 0.0, %v1383
        %v1385 = vpop.f32.mrf.mxu0
        %1386 = vdwg.mxu0
        %1387 = vmatprep.subr.mxu0 0.0
        %1388 = vmatpush1.msra.mxu0 0.0
        %1389 = vmatprep.subr.mxu0 0.0
        %1390 = vmatpush1.msra.mxu0 0.0
        %1391 = vmatprep.subr.mxu0 0.0
        %1392 = vmatpush1.msra.mxu0 0.0
        %1393 = vmatprep.subr.mxu0 0.0
        %1394 = vmatpush1.msra.mxu0 0.0
        %1395 = vmatprep.subr.mxu0 0.0
        %1396 = vmatpush1.msra.mxu0 0.0
        %1397 = vmatprep.subr.mxu0 0.0
        %1398 = vmatpush1.msra.mxu0 0.0
        %1399 = vmatprep.subr.mxu0 0.0
        %1400 = vmatpush1.msra.mxu0 0.0
        %1401 = vmatprep.subr.mxu0 0.0
        %1402 = vmatpush1.msra.mxu0 0.0
        %1403 = vmatprep.subr.mxu0 0.0
        %1404 = vmatpush1.msra.mxu0 0.0
        %1405 = vmatprep.subr.mxu0 0.0
        %1406 = vmatpush1.msra.mxu0 0.0
        %1407 = vmatprep.subr.mxu0 0.0
        %1408 = vmatpush1.msra.mxu0 0.0
        %1409 = vmatprep.subr.mxu0 0.0
        %1410 = vmatpush1.msra.mxu0 0.0
        %1411 = vmatprep.subr.mxu0 0.0
        %1412 = vmatpush1.msra.mxu0 %v1303
        %1413 = vmatprep.subr.mxu0 0.0
        %1414 = vmatpush1.msra.mxu0 %v1302
        %1415 = vmatprep.subr.mxu0 0.0
        %1416 = vmatpush1.msra.mxu0 %v1301
        %1417 = vmatprep.subr.mxu0 0.0
        %1418 = vmatpush1.msra.mxu0 %v1300
        %1419 = vmatprep.subr.mxu0 0.0
        %1420 = vmatpush2.msra.mxu0 0.0
        %1421 = vmatprep.subr.mxu0 0.0
        %1422 = vmatpush2.msra.mxu0 0.0
        %1423 = vmatprep.subr.mxu0 0.0
        %1424 = vmatpush2.msra.mxu0 0.0
        %1425 = vmatprep.subr.mxu0 0.0
        %1426 = vmatpush2.msra.mxu0 0.0
        %1427 = vmatprep.subr.mxu0 0.0
        %1428 = vmatpush2.msra.mxu0 0.0
        %1429 = vmatprep.subr.mxu0 0.0
        %1430 = vmatpush2.msra.mxu0 0.0
        %1431 = vmatprep.subr.mxu0 0.0
        %1432 = vmatpush2.msra.mxu0 0.0
        %1433 = vmatprep.subr.mxu0 0.0
        %1434 = vmatpush2.msra.mxu0 0.0
        %1435 = vmatprep.subr.mxu0 0.0
        %1436 = vmatpush2.msra.mxu0 0.0
        %1437 = vmatprep.subr.mxu0 0.0
        %1438 = vmatpush2.msra.mxu0 0.0
        %1439 = vmatprep.subr.mxu0 0.0
        %1440 = vmatpush2.msra.mxu0 0.0
        %1441 = vmatprep.subr.mxu0 0.0
        %1442 = vmatpush2.msra.mxu0 0.0
        %1443 = vmatprep.subr.mxu0 0.0
        %1444 = vmatpush2.msra.mxu0 0.0
        %1445 = vmatprep.subr.mxu0 0.0
        %1446 = vmatpush2.msra.mxu0 0.0
        %1447 = vmatprep.subr.mxu0 0.0
        %1448 = vmatpush2.msra.mxu0 0.0
        %1449 = vmatprep.subr.mxu0 0.0
        %1450 = vmatpush2.msra.mxu0 0.0
        %1451 = vmatprep.mubr.f32.mxu0 0.0
        %1452 = vmatmul.mubr.f32.gmra.mxu0 %v667
        %v1453 = vpop.f32.mrf.mxu0
        %v1454 = vadd.f32 0.0, %v1453
        %v1455 = vpop.f32.mrf.mxu0
        %1456 = vmatprep.mubr.f32.mxu0 0.0
        %1457 = vmatmul.mubr.f32.gmra.mxu0 %v670
        %v1458 = vpop.f32.mrf.mxu0
        %v1459 = vadd.f32 0.0, %v1458
        %v1460 = vpop.f32.mrf.mxu0
        %1461 = vdwg.mxu0
        %1462 = vmatprep.subr.mxu0 0.0
        %1463 = vmatpush1.msra.mxu0 0.0
        %1464 = vmatprep.subr.mxu0 0.0
        %1465 = vmatpush1.msra.mxu0 0.0
        %1466 = vmatprep.subr.mxu0 0.0
        %1467 = vmatpush1.msra.mxu0 0.0
        %1468 = vmatprep.subr.mxu0 0.0
        %1469 = vmatpush1.msra.mxu0 0.0
        %1470 = vmatprep.subr.mxu0 0.0
        %1471 = vmatpush1.msra.mxu0 0.0
        %1472 = vmatprep.subr.mxu0 0.0
        %1473 = vmatpush1.msra.mxu0 0.0
        %1474 = vmatprep.subr.mxu0 0.0
        %1475 = vmatpush1.msra.mxu0 0.0
        %1476 = vmatprep.subr.mxu0 0.0
        %1477 = vmatpush1.msra.mxu0 0.0
        %1478 = vmatprep.subr.mxu0 0.0
        %1479 = vmatpush1.msra.mxu0 0.0
        %1480 = vmatprep.subr.mxu0 0.0
        %1481 = vmatpush1.msra.mxu0 0.0
        %1482 = vmatprep.subr.mxu0 0.0
        %1483 = vmatpush1.msra.mxu0 0.0
        %1484 = vmatprep.subr.mxu0 0.0
        %1485 = vmatpush1.msra.mxu0 0.0
        %1486 = vmatprep.subr.mxu0 0.0
        %1487 = vmatpush1.msra.mxu0 %v1307
        %1488 = vmatprep.subr.mxu0 0.0
        %1489 = vmatpush1.msra.mxu0 %v1306
        %1490 = vmatprep.subr.mxu0 0.0
        %1491 = vmatpush1.msra.mxu0 %v1305
        %1492 = vmatprep.subr.mxu0 0.0
        %1493 = vmatpush1.msra.mxu0 %v1304
        %1494 = vmatprep.subr.mxu0 0.0
        %1495 = vmatpush2.msra.mxu0 0.0
        %1496 = vmatprep.subr.mxu0 0.0
        %1497 = vmatpush2.msra.mxu0 0.0
        %1498 = vmatprep.subr.mxu0 0.0
        %1499 = vmatpush2.msra.mxu0 0.0
        %1500 = vmatprep.subr.mxu0 0.0
        %1501 = vmatpush2.msra.mxu0 0.0
        %1502 = vmatprep.subr.mxu0 0.0
        %1503 = vmatpush2.msra.mxu0 0.0
        %1504 = vmatprep.subr.mxu0 0.0
        %1505 = vmatpush2.msra.mxu0 0.0
        %1506 = vmatprep.subr.mxu0 0.0
        %1507 = vmatpush2.msra.mxu0 0.0
        %1508 = vmatprep.subr.mxu0 0.0
        %1509 = vmatpush2.msra.mxu0 0.0
        %1510 = vmatprep.subr.mxu0 0.0
        %1511 = vmatpush2.msra.mxu0 0.0
        %1512 = vmatprep.subr.mxu0 0.0
        %1513 = vmatpush2.msra.mxu0 0.0
        %1514 = vmatprep.subr.mxu0 0.0
        %1515 = vmatpush2.msra.mxu0 0.0
        %1516 = vmatprep.subr.mxu0 0.0
        %1517 = vmatpush2.msra.mxu0 0.0
        %1518 = vmatprep.subr.mxu0 0.0
        %1519 = vmatpush2.msra.mxu0 0.0
        %1520 = vmatprep.subr.mxu0 0.0
        %1521 = vmatpush2.msra.mxu0 0.0
        %1522 = vmatprep.subr.mxu0 0.0
        %1523 = vmatpush2.msra.mxu0 0.0
        %1524 = vmatprep.subr.mxu0 0.0
        %1525 = vmatpush2.msra.mxu0 0.0
        %1526 = vmatprep.mubr.f32.mxu0 0.0
        %1527 = vmatmul.mubr.f32.gmra.mxu0 %v667
        %v1528 = vpop.f32.mrf.mxu0
        %v1529 = vadd.f32 0.0, %v1528
        %v1530 = vpop.f32.mrf.mxu0
        %1531 = vmatprep.mubr.f32.mxu0 0.0
        %1532 = vmatmul.mubr.f32.gmra.mxu0 %v670
        %v1533 = vpop.f32.mrf.mxu0
        %v1534 = vadd.f32 0.0, %v1533
        %v1535 = vpop.f32.mrf.mxu0
        %1536 = vdwg.mxu0
        %1537 = vmatprep.subr.mxu0 0.0
        %1538 = vmatpush1.msra.mxu0 0.0
        %1539 = vmatprep.subr.mxu0 0.0
        %1540 = vmatpush1.msra.mxu0 0.0
        %1541 = vmatprep.subr.mxu0 0.0
        %1542 = vmatpush1.msra.mxu0 0.0
        %1543 = vmatprep.subr.mxu0 0.0
        %1544 = vmatpush1.msra.mxu0 0.0
        %1545 = vmatprep.subr.mxu0 0.0
        %1546 = vmatpush1.msra.mxu0 0.0
        %1547 = vmatprep.subr.mxu0 0.0
        %1548 = vmatpush1.msra.mxu0 0.0
        %1549 = vmatprep.subr.mxu0 0.0
        %1550 = vmatpush1.msra.mxu0 0.0
        %1551 = vmatprep.subr.mxu0 0.0
        %1552 = vmatpush1.msra.mxu0 0.0
        %1553 = vmatprep.subr.mxu0 0.0
        %1554 = vmatpush1.msra.mxu0 0.0
        %1555 = vmatprep.subr.mxu0 0.0
        %1556 = vmatpush1.msra.mxu0 0.0
        %1557 = vmatprep.subr.mxu0 0.0
        %1558 = vmatpush1.msra.mxu0 0.0
        %1559 = vmatprep.subr.mxu0 0.0
        %1560 = vmatpush1.msra.mxu0 0.0
        %1561 = vmatprep.subr.mxu0 0.0
        %1562 = vmatpush1.msra.mxu0 %v1311
        %1563 = vmatprep.subr.mxu0 0.0
        %1564 = vmatpush1.msra.mxu0 %v1310
        %1565 = vmatprep.subr.mxu0 0.0
        %1566 = vmatpush1.msra.mxu0 %v1309
        %1567 = vmatprep.subr.mxu0 0.0
        %1568 = vmatpush1.msra.mxu0 %v1308
        %1569 = vmatprep.subr.mxu0 0.0
        %1570 = vmatpush2.msra.mxu0 0.0
        %1571 = vmatprep.subr.mxu0 0.0
        %1572 = vmatpush2.msra.mxu0 0.0
        %1573 = vmatprep.subr.mxu0 0.0
        %1574 = vmatpush2.msra.mxu0 0.0
        %1575 = vmatprep.subr.mxu0 0.0
        %1576 = vmatpush2.msra.mxu0 0.0
        %1577 = vmatprep.subr.mxu0 0.0
        %1578 = vmatpush2.msra.mxu0 0.0
        %1579 = vmatprep.subr.mxu0 0.0
        %1580 = vmatpush2.msra.mxu0 0.0
        %1581 = vmatprep.subr.mxu0 0.0
        %1582 = vmatpush2.msra.mxu0 0.0
        %1583 = vmatprep.subr.mxu0 0.0
        %1584 = vmatpush2.msra.mxu0 0.0
        %1585 = vmatprep.subr.mxu0 0.0
        %1586 = vmatpush2.msra.mxu0 0.0
        %1587 = vmatprep.subr.mxu0 0.0
        %1588 = vmatpush2.msra.mxu0 0.0
        %1589 = vmatprep.subr.mxu0 0.0
        %1590 = vmatpush2.msra.mxu0 0.0
        %1591 = vmatprep.subr.mxu0 0.0
        %1592 = vmatpush2.msra.mxu0 0.0
        %1593 = vmatprep.subr.mxu0 0.0
        %1594 = vmatpush2.msra.mxu0 0.0
        %1595 = vmatprep.subr.mxu0 0.0
        %1596 = vmatpush2.msra.mxu0 0.0
        %1597 = vmatprep.subr.mxu0 0.0
        %1598 = vmatpush2.msra.mxu0 0.0
        %1599 = vmatprep.subr.mxu0 0.0
        %1600 = vmatpush2.msra.mxu0 0.0
        %1601 = vmatprep.mubr.f32.mxu0 0.0
        %1602 = vmatmul.mubr.f32.gmra.mxu0 %v667
        %v1603 = vpop.f32.mrf.mxu0
        %v1604 = vadd.f32 0.0, %v1603
        %v1605 = vpop.f32.mrf.mxu0
        %1606 = vmatprep.mubr.f32.mxu0 0.0
        %1607 = vmatmul.mubr.f32.gmra.mxu0 %v670
        %v1608 = vpop.f32.mrf.mxu0
        %v1609 = vadd.f32 0.0, %v1608
        %v1610 = vpop.f32.mrf.mxu0
        %1611 = vdwg.mxu0
        %v1612 = vld [vmem:[%s1] sm:$0xff]
        %v1613 = vld [vmem:[%s1 + $0x8] sm:$0xff]
        %vm1614 = vcmask 64512
        %v1616 = vsel %vm1614, %v972, 0
        %v1619 = vsel %vm1614, %v973, 0
        %v1622 = vsel %vm1614, %v1063, 0
        %v1625 = vsel %vm1614, %v1068, 0
        %1627 = vmatprep.subr.mxu0 0.0
        %1628 = vmatpush1.xpose.msra.mxu0 0.0
        %1629 = vmatprep.subr.mxu0 0.0
        %1630 = vmatpush1.xpose.msra.mxu0 0.0
        %1631 = vmatprep.subr.mxu0 0.0
        %1632 = vmatpush1.xpose.msra.mxu0 0.0
        %1633 = vmatprep.subr.mxu0 0.0
        %1634 = vmatpush1.xpose.msra.mxu0 0.0
        %1635 = vmatprep.subr.mxu0 0.0
        %1636 = vmatpush1.xpose.msra.mxu0 0.0
        %1637 = vmatprep.subr.mxu0 0.0
        %1638 = vmatpush1.xpose.msra.mxu0 0.0
        %1639 = vmatprep.subr.mxu0 0.0
        %1640 = vmatpush1.xpose.msra.mxu0 0.0
        %1641 = vmatprep.subr.mxu0 0.0
        %1642 = vmatpush1.xpose.msra.mxu0 0.0
        %1643 = vmatprep.subr.mxu0 0.0
        %1644 = vmatpush1.xpose.msra.mxu0 0.0
        %1645 = vmatprep.subr.mxu0 0.0
        %1646 = vmatpush1.xpose.msra.mxu0 0.0
        %1647 = vmatprep.subr.mxu0 0.0
        %1648 = vmatpush1.xpose.msra.mxu0 0.0
        %1649 = vmatprep.subr.mxu0 0.0
        %1650 = vmatpush1.xpose.msra.mxu0 0.0
        %1651 = vmatprep.subr.mxu0 0.0
        %1652 = vmatpush1.xpose.msra.mxu0 0.0
        %1653 = vmatprep.subr.mxu0 0.0
        %1654 = vmatpush1.xpose.msra.mxu0 0.0
        %1655 = vmatprep.subr.mxu0 0.0
        %1656 = vmatpush1.xpose.msra.mxu0 %v1625
        %1657 = vmatprep.subr.mxu0 0.0
        %1658 = vmatpush1.xpose.msra.mxu0 %v1622
        %1659 = vmatprep.subr.mxu0 0.0
        %1660 = vmatpush2.xpose.msra.mxu0 0.0
        %1661 = vmatprep.subr.mxu0 0.0
        %1662 = vmatpush2.xpose.msra.mxu0 0.0
        %1663 = vmatprep.subr.mxu0 0.0
        %1664 = vmatpush2.xpose.msra.mxu0 0.0
        %1665 = vmatprep.subr.mxu0 0.0
        %1666 = vmatpush2.xpose.msra.mxu0 0.0
        %1667 = vmatprep.subr.mxu0 0.0
        %1668 = vmatpush2.xpose.msra.mxu0 0.0
        %1669 = vmatprep.subr.mxu0 0.0
        %1670 = vmatpush2.xpose.msra.mxu0 0.0
        %1671 = vmatprep.subr.mxu0 0.0
        %1672 = vmatpush2.xpose.msra.mxu0 0.0
        %1673 = vmatprep.subr.mxu0 0.0
        %1674 = vmatpush2.xpose.msra.mxu0 0.0
        %1675 = vmatprep.subr.mxu0 0.0
        %1676 = vmatpush2.xpose.msra.mxu0 0.0
        %1677 = vmatprep.subr.mxu0 0.0
        %1678 = vmatpush2.xpose.msra.mxu0 0.0
        %1679 = vmatprep.subr.mxu0 0.0
        %1680 = vmatpush2.xpose.msra.mxu0 0.0
        %1681 = vmatprep.subr.mxu0 0.0
        %1682 = vmatpush2.xpose.msra.mxu0 0.0
        %1683 = vmatprep.subr.mxu0 0.0
        %1684 = vmatpush2.xpose.msra.mxu0 0.0
        %1685 = vmatprep.subr.mxu0 0.0
        %1686 = vmatpush2.xpose.msra.mxu0 0.0
        %1687 = vmatprep.subr.mxu0 0.0
        %1688 = vmatpush2.xpose.msra.mxu0 0.0
        %1689 = vmatprep.subr.mxu0 0.0
        %1690 = vmatpush2.xpose.msra.mxu0 0.0
        %1691 = vmatprep.mubr.f32.mxu0 0.0
        %1692 = vmatmul.mubr.f32.gmra.mxu0 %v1616
        %v1693 = vpop.f32.mrf.mxu0
        %v1694 = vadd.f32 %v1612, %v1693
        %v1695 = vpop.f32.mrf.mxu0
        %1696 = vmatprep.mubr.f32.mxu0 0.0
        %1697 = vmatmul.mubr.f32.gmra.mxu0 %v1619
        %v1698 = vpop.f32.mrf.mxu0
        %v1699 = vadd.f32 %v1613, %v1698
        %v1700 = vpop.f32.mrf.mxu0
        %1701 = vdwg.mxu0
        %v1703 = vsel %vm1614, %v974, 0
        %v1706 = vsel %vm1614, %v975, 0
        %v1709 = vsel %vm1614, %v1138, 0
        %v1712 = vsel %vm1614, %v1143, 0
        %1714 = vmatprep.subr.mxu0 0.0
        %1715 = vmatpush1.xpose.msra.mxu0 0.0
        %1716 = vmatprep.subr.mxu0 0.0
        %1717 = vmatpush1.xpose.msra.mxu0 0.0
        %1718 = vmatprep.subr.mxu0 0.0
        %1719 = vmatpush1.xpose.msra.mxu0 0.0
        %1720 = vmatprep.subr.mxu0 0.0
        %1721 = vmatpush1.xpose.msra.mxu0 0.0
        %1722 = vmatprep.subr.mxu0 0.0
        %1723 = vmatpush1.xpose.msra.mxu0 0.0
        %1724 = vmatprep.subr.mxu0 0.0
        %1725 = vmatpush1.xpose.msra.mxu0 0.0
        %1726 = vmatprep.subr.mxu0 0.0
        %1727 = vmatpush1.xpose.msra.mxu0 0.0
        %1728 = vmatprep.subr.mxu0 0.0
        %1729 = vmatpush1.xpose.msra.mxu0 0.0
        %1730 = vmatprep.subr.mxu0 0.0
        %1731 = vmatpush1.xpose.msra.mxu0 0.0
        %1732 = vmatprep.subr.mxu0 0.0
        %1733 = vmatpush1.xpose.msra.mxu0 0.0
        %1734 = vmatprep.subr.mxu0 0.0
        %1735 = vmatpush1.xpose.msra.mxu0 0.0
        %1736 = vmatprep.subr.mxu0 0.0
        %1737 = vmatpush1.xpose.msra.mxu0 0.0
        %1738 = vmatprep.subr.mxu0 0.0
        %1739 = vmatpush1.xpose.msra.mxu0 0.0
        %1740 = vmatprep.subr.mxu0 0.0
        %1741 = vmatpush1.xpose.msra.mxu0 0.0
        %1742 = vmatprep.subr.mxu0 0.0
        %1743 = vmatpush1.xpose.msra.mxu0 %v1712
        %1744 = vmatprep.subr.mxu0 0.0
        %1745 = vmatpush1.xpose.msra.mxu0 %v1709
        %1746 = vmatprep.subr.mxu0 0.0
        %1747 = vmatpush2.xpose.msra.mxu0 0.0
        %1748 = vmatprep.subr.mxu0 0.0
        %1749 = vmatpush2.xpose.msra.mxu0 0.0
        %1750 = vmatprep.subr.mxu0 0.0
        %1751 = vmatpush2.xpose.msra.mxu0 0.0
        %1752 = vmatprep.subr.mxu0 0.0
        %1753 = vmatpush2.xpose.msra.mxu0 0.0
        %1754 = vmatprep.subr.mxu0 0.0
        %1755 = vmatpush2.xpose.msra.mxu0 0.0
        %1756 = vmatprep.subr.mxu0 0.0
        %1757 = vmatpush2.xpose.msra.mxu0 0.0
        %1758 = vmatprep.subr.mxu0 0.0
        %1759 = vmatpush2.xpose.msra.mxu0 0.0
        %1760 = vmatprep.subr.mxu0 0.0
        %1761 = vmatpush2.xpose.msra.mxu0 0.0
        %1762 = vmatprep.subr.mxu0 0.0
        %1763 = vmatpush2.xpose.msra.mxu0 0.0
        %1764 = vmatprep.subr.mxu0 0.0
        %1765 = vmatpush2.xpose.msra.mxu0 0.0
        %1766 = vmatprep.subr.mxu0 0.0
        %1767 = vmatpush2.xpose.msra.mxu0 0.0
        %1768 = vmatprep.subr.mxu0 0.0
        %1769 = vmatpush2.xpose.msra.mxu0 0.0
        %1770 = vmatprep.subr.mxu0 0.0
        %1771 = vmatpush2.xpose.msra.mxu0 0.0
        %1772 = vmatprep.subr.mxu0 0.0
        %1773 = vmatpush2.xpose.msra.mxu0 0.0
        %1774 = vmatprep.subr.mxu0 0.0
        %1775 = vmatpush2.xpose.msra.mxu0 0.0
        %1776 = vmatprep.subr.mxu0 0.0
        %1777 = vmatpush2.xpose.msra.mxu0 0.0
        %1778 = vmatprep.mubr.f32.mxu0 0.0
        %1779 = vmatmul.mubr.f32.gmra.mxu0 %v1703
        %v1780 = vpop.f32.mrf.mxu0
        %v1781 = vadd.f32 %v1612, %v1780
        %v1782 = vpop.f32.mrf.mxu0
        %1783 = vmatprep.mubr.f32.mxu0 0.0
        %1784 = vmatmul.mubr.f32.gmra.mxu0 %v1706
        %v1785 = vpop.f32.mrf.mxu0
        %v1786 = vadd.f32 %v1613, %v1785
        %v1787 = vpop.f32.mrf.mxu0
        %1788 = vdwg.mxu0
        %v1790 = vsel %vm1614, %v976, 0
        %v1793 = vsel %vm1614, %v977, 0
        %v1796 = vsel %vm1614, %v1213, 0
        %v1799 = vsel %vm1614, %v1218, 0
        %1801 = vmatprep.subr.mxu0 0.0
        %1802 = vmatpush1.xpose.msra.mxu0 0.0
        %1803 = vmatprep.subr.mxu0 0.0
        %1804 = vmatpush1.xpose.msra.mxu0 0.0
        %1805 = vmatprep.subr.mxu0 0.0
        %1806 = vmatpush1.xpose.msra.mxu0 0.0
        %1807 = vmatprep.subr.mxu0 0.0
        %1808 = vmatpush1.xpose.msra.mxu0 0.0
        %1809 = vmatprep.subr.mxu0 0.0
        %1810 = vmatpush1.xpose.msra.mxu0 0.0
        %1811 = vmatprep.subr.mxu0 0.0
        %1812 = vmatpush1.xpose.msra.mxu0 0.0
        %1813 = vmatprep.subr.mxu0 0.0
        %1814 = vmatpush1.xpose.msra.mxu0 0.0
        %1815 = vmatprep.subr.mxu0 0.0
        %1816 = vmatpush1.xpose.msra.mxu0 0.0
        %1817 = vmatprep.subr.mxu0 0.0
        %1818 = vmatpush1.xpose.msra.mxu0 0.0
        %1819 = vmatprep.subr.mxu0 0.0
        %1820 = vmatpush1.xpose.msra.mxu0 0.0
        %1821 = vmatprep.subr.mxu0 0.0
        %1822 = vmatpush1.xpose.msra.mxu0 0.0
        %1823 = vmatprep.subr.mxu0 0.0
        %1824 = vmatpush1.xpose.msra.mxu0 0.0
        %1825 = vmatprep.subr.mxu0 0.0
        %1826 = vmatpush1.xpose.msra.mxu0 0.0
        %1827 = vmatprep.subr.mxu0 0.0
        %1828 = vmatpush1.xpose.msra.mxu0 0.0
        %1829 = vmatprep.subr.mxu0 0.0
        %1830 = vmatpush1.xpose.msra.mxu0 %v1799
        %1831 = vmatprep.subr.mxu0 0.0
        %1832 = vmatpush1.xpose.msra.mxu0 %v1796
        %1833 = vmatprep.subr.mxu0 0.0
        %1834 = vmatpush2.xpose.msra.mxu0 0.0
        %1835 = vmatprep.subr.mxu0 0.0
        %1836 = vmatpush2.xpose.msra.mxu0 0.0
        %1837 = vmatprep.subr.mxu0 0.0
        %1838 = vmatpush2.xpose.msra.mxu0 0.0
        %1839 = vmatprep.subr.mxu0 0.0
        %1840 = vmatpush2.xpose.msra.mxu0 0.0
        %1841 = vmatprep.subr.mxu0 0.0
        %1842 = vmatpush2.xpose.msra.mxu0 0.0
        %1843 = vmatprep.subr.mxu0 0.0
        %1844 = vmatpush2.xpose.msra.mxu0 0.0
        %1845 = vmatprep.subr.mxu0 0.0
        %1846 = vmatpush2.xpose.msra.mxu0 0.0
        %1847 = vmatprep.subr.mxu0 0.0
        %1848 = vmatpush2.xpose.msra.mxu0 0.0
        %1849 = vmatprep.subr.mxu0 0.0
        %1850 = vmatpush2.xpose.msra.mxu0 0.0
        %1851 = vmatprep.subr.mxu0 0.0
        %1852 = vmatpush2.xpose.msra.mxu0 0.0
        %1853 = vmatprep.subr.mxu0 0.0
        %1854 = vmatpush2.xpose.msra.mxu0 0.0
        %1855 = vmatprep.subr.mxu0 0.0
        %1856 = vmatpush2.xpose.msra.mxu0 0.0
        %1857 = vmatprep.subr.mxu0 0.0
        %1858 = vmatpush2.xpose.msra.mxu0 0.0
        %1859 = vmatprep.subr.mxu0 0.0
        %1860 = vmatpush2.xpose.msra.mxu0 0.0
        %1861 = vmatprep.subr.mxu0 0.0
        %1862 = vmatpush2.xpose.msra.mxu0 0.0
        %1863 = vmatprep.subr.mxu0 0.0
        %1864 = vmatpush2.xpose.msra.mxu0 0.0
        %1865 = vmatprep.mubr.f32.mxu0 0.0
        %1866 = vmatmul.mubr.f32.gmra.mxu0 %v1790
        %v1867 = vpop.f32.mrf.mxu0
        %v1868 = vadd.f32 %v1612, %v1867
        %v1869 = vpop.f32.mrf.mxu0
        %1870 = vmatprep.mubr.f32.mxu0 0.0
        %1871 = vmatmul.mubr.f32.gmra.mxu0 %v1793
        %v1872 = vpop.f32.mrf.mxu0
        %v1873 = vadd.f32 %v1613, %v1872
        %v1874 = vpop.f32.mrf.mxu0
        %1875 = vdwg.mxu0
        %v1877 = vsel %vm1614, %v978, 0
        %v1880 = vsel %vm1614, %v979, 0
        %v1883 = vsel %vm1614, %v1288, 0
        %v1886 = vsel %vm1614, %v1293, 0
        %1888 = vmatprep.subr.mxu0 0.0
        %1889 = vmatpush1.xpose.msra.mxu0 0.0
        %1890 = vmatprep.subr.mxu0 0.0
        %1891 = vmatpush1.xpose.msra.mxu0 0.0
        %1892 = vmatprep.subr.mxu0 0.0
        %1893 = vmatpush1.xpose.msra.mxu0 0.0
        %1894 = vmatprep.subr.mxu0 0.0
        %1895 = vmatpush1.xpose.msra.mxu0 0.0
        %1896 = vmatprep.subr.mxu0 0.0
        %1897 = vmatpush1.xpose.msra.mxu0 0.0
        %1898 = vmatprep.subr.mxu0 0.0
        %1899 = vmatpush1.xpose.msra.mxu0 0.0
        %1900 = vmatprep.subr.mxu0 0.0
        %1901 = vmatpush1.xpose.msra.mxu0 0.0
        %1902 = vmatprep.subr.mxu0 0.0
        %1903 = vmatpush1.xpose.msra.mxu0 0.0
        %1904 = vmatprep.subr.mxu0 0.0
        %1905 = vmatpush1.xpose.msra.mxu0 0.0
        %1906 = vmatprep.subr.mxu0 0.0
        %1907 = vmatpush1.xpose.msra.mxu0 0.0
        %1908 = vmatprep.subr.mxu0 0.0
        %1909 = vmatpush1.xpose.msra.mxu0 0.0
        %1910 = vmatprep.subr.mxu0 0.0
        %1911 = vmatpush1.xpose.msra.mxu0 0.0
        %1912 = vmatprep.subr.mxu0 0.0
        %1913 = vmatpush1.xpose.msra.mxu0 0.0
        %1914 = vmatprep.subr.mxu0 0.0
        %1915 = vmatpush1.xpose.msra.mxu0 0.0
        %1916 = vmatprep.subr.mxu0 0.0
        %1917 = vmatpush1.xpose.msra.mxu0 %v1886
        %1918 = vmatprep.subr.mxu0 0.0
        %1919 = vmatpush1.xpose.msra.mxu0 %v1883
        %1920 = vmatprep.subr.mxu0 0.0
        %1921 = vmatpush2.xpose.msra.mxu0 0.0
        %1922 = vmatprep.subr.mxu0 0.0
        %1923 = vmatpush2.xpose.msra.mxu0 0.0
        %1924 = vmatprep.subr.mxu0 0.0
        %1925 = vmatpush2.xpose.msra.mxu0 0.0
        %1926 = vmatprep.subr.mxu0 0.0
        %1927 = vmatpush2.xpose.msra.mxu0 0.0
        %1928 = vmatprep.subr.mxu0 0.0
        %1929 = vmatpush2.xpose.msra.mxu0 0.0
        %1930 = vmatprep.subr.mxu0 0.0
        %1931 = vmatpush2.xpose.msra.mxu0 0.0
        %1932 = vmatprep.subr.mxu0 0.0
        %1933 = vmatpush2.xpose.msra.mxu0 0.0
        %1934 = vmatprep.subr.mxu0 0.0
        %1935 = vmatpush2.xpose.msra.mxu0 0.0
        %1936 = vmatprep.subr.mxu0 0.0
        %1937 = vmatpush2.xpose.msra.mxu0 0.0
        %1938 = vmatprep.subr.mxu0 0.0
        %1939 = vmatpush2.xpose.msra.mxu0 0.0
        %1940 = vmatprep.subr.mxu0 0.0
        %1941 = vmatpush2.xpose.msra.mxu0 0.0
        %1942 = vmatprep.subr.mxu0 0.0
        %1943 = vmatpush2.xpose.msra.mxu0 0.0
        %1944 = vmatprep.subr.mxu0 0.0
        %1945 = vmatpush2.xpose.msra.mxu0 0.0
        %1946 = vmatprep.subr.mxu0 0.0
        %1947 = vmatpush2.xpose.msra.mxu0 0.0
        %1948 = vmatprep.subr.mxu0 0.0
        %1949 = vmatpush2.xpose.msra.mxu0 0.0
        %1950 = vmatprep.subr.mxu0 0.0
        %1951 = vmatpush2.xpose.msra.mxu0 0.0
        %1952 = vmatprep.mubr.f32.mxu0 0.0
        %1953 = vmatmul.mubr.f32.gmra.mxu0 %v1877
        %v1954 = vpop.f32.mrf.mxu0
        %v1955 = vadd.f32 %v1612, %v1954
        %v1956 = vpop.f32.mrf.mxu0
        %1957 = vmatprep.mubr.f32.mxu0 0.0
        %1958 = vmatmul.mubr.f32.gmra.mxu0 %v1880
        %v1959 = vpop.f32.mrf.mxu0
        %v1960 = vadd.f32 %v1613, %v1959
        %v1961 = vpop.f32.mrf.mxu0
        %1962 = vdwg.mxu0
        %vm1963 = vcmask 130048
        %v1964 = vsel %vm1963, %v1694, -inf
        %1965 = vmax.xlane.f32.xlu0 %v1964
        %v1966 = vpop.xlane.xlu0 %1965
        %v1967 = vsel %vm1963, %v1699, -inf
        %1968 = vmax.xlane.f32.xlu0 %v1967
        %v1969 = vpop.xlane.xlu0 %1968
        %v1970 = vsel %vm1963, %v1781, -inf
        %1971 = vmax.xlane.f32.xlu0 %v1970
        %v1972 = vpop.xlane.xlu0 %1971
        %v1973 = vsel %vm1963, %v1786, -inf
        %1974 = vmax.xlane.f32.xlu0 %v1973
        %v1975 = vpop.xlane.xlu0 %1974
        %v1976 = vsel %vm1963, %v1868, -inf
        %1977 = vmax.xlane.f32.xlu0 %v1976
        %v1978 = vpop.xlane.xlu0 %1977
        %v1979 = vsel %vm1963, %v1873, -inf
        %1980 = vmax.xlane.f32.xlu0 %v1979
        %v1981 = vpop.xlane.xlu0 %1980
        %v1982 = vsel %vm1963, %v1955, -inf
        %1983 = vmax.xlane.f32.xlu0 %v1982
        %v1984 = vpop.xlane.xlu0 %1983
        %v1985 = vsel %vm1963, %v1960, -inf
        %1986 = vmax.xlane.f32.xlu0 %v1985
        %v1987 = vpop.xlane.xlu0 %1986
        %v1988 = vsub.f32 %v1694, %v1966
        %v1989 = vsub.f32 %v1699, %v1969
        %v1990 = vsub.f32 %v1781, %v1972
        %v1991 = vsub.f32 %v1786, %v1975
        %v1992 = vsub.f32 %v1868, %v1978
        %v1993 = vsub.f32 %v1873, %v1981
        %v1994 = vsub.f32 %v1955, %v1984
        %v1995 = vsub.f32 %v1960, %v1987
        %v1996 = vmul.f32 %v1988, 1.442695
        %v1997 = vpow.pop %v1996
        %v1998 = vmul.f32 %v1989, 1.442695
        %v1999 = vpow.pop %v1998
        %v2000 = vmul.f32 %v1990, 1.442695
        %v2001 = vpow.pop %v2000
        %v2002 = vmul.f32 %v1991, 1.442695
        %v2003 = vpow.pop %v2002
        %v2004 = vmul.f32 %v1992, 1.442695
        %v2005 = vpow.pop %v2004
        %v2006 = vmul.f32 %v1993, 1.442695
        %v2007 = vpow.pop %v2006
        %v2008 = vmul.f32 %v1994, 1.442695
        %v2009 = vpow.pop %v2008
        %v2010 = vmul.f32 %v1995, 1.442695
        %v2011 = vpow.pop %v2010
        %v2012 = vsel %vm1963, %v1997, 0.0
        %2013 = vadd.xlane.f32.xlu0 %v2012
        %v2014 = vpop.xlane.xlu0 %2013
        %v2015 = vsel %vm1963, %v1999, 0.0
        %2016 = vadd.xlane.f32.xlu0 %v2015
        %v2017 = vpop.xlane.xlu0 %2016
        %v2018 = vsel %vm1963, %v2001, 0.0
        %2019 = vadd.xlane.f32.xlu0 %v2018
        %v2020 = vpop.xlane.xlu0 %2019
        %v2021 = vsel %vm1963, %v2003, 0.0
        %2022 = vadd.xlane.f32.xlu0 %v2021
        %v2023 = vpop.xlane.xlu0 %2022
        %v2024 = vsel %vm1963, %v2005, 0.0
        %2025 = vadd.xlane.f32.xlu0 %v2024
        %v2026 = vpop.xlane.xlu0 %2025
        %v2027 = vsel %vm1963, %v2007, 0.0
        %2028 = vadd.xlane.f32.xlu0 %v2027
        %v2029 = vpop.xlane.xlu0 %2028
        %v2030 = vsel %vm1963, %v2009, 0.0
        %2031 = vadd.xlane.f32.xlu0 %v2030
        %v2032 = vpop.xlane.xlu0 %2031
        %v2033 = vsel %vm1963, %v2011, 0.0
        %2034 = vadd.xlane.f32.xlu0 %v2033
        %v2035 = vpop.xlane.xlu0 %2034
        %v2036 = vrcp.pop %v2014
        %v2037 = vrcp.pop %v2017
        %v2038 = vrcp.pop %v2020
        %v2039 = vrcp.pop %v2023
        %v2040 = vrcp.pop %v2026
        %v2041 = vrcp.pop %v2029
        %v2042 = vrcp.pop %v2032
        %v2043 = vrcp.pop %v2035
        %v2044 = vmul.f32 %v1997, %v2036
        %v2045 = vmul.f32 %v1999, %v2037
        %v2046 = vmul.f32 %v2001, %v2038
        %v2047 = vmul.f32 %v2003, %v2039
        %v2048 = vmul.f32 %v2005, %v2040
        %v2049 = vmul.f32 %v2007, %v2041
        %v2050 = vmul.f32 %v2009, %v2042
        %v2051 = vmul.f32 %v2011, %v2043
        %v2053 = vsel %vm1963, %v2044, 0
        %v2056 = vsel %vm1963, %v2045, 0
        %2058 = vmatprep.subr.mxu0 0.0
        %2059 = vmatpush1.msra.mxu0 0.0
        %2060 = vmatprep.subr.mxu0 0.0
        %2061 = vmatpush1.msra.mxu0 0.0
        %2062 = vmatprep.subr.mxu0 0.0
        %2063 = vmatpush1.msra.mxu0 0.0
        %2064 = vmatprep.subr.mxu0 0.0
        %2065 = vmatpush1.msra.mxu0 0.0
        %2066 = vmatprep.subr.mxu0 0.0
        %2067 = vmatpush1.msra.mxu0 0.0
        %2068 = vmatprep.subr.mxu0 0.0
        %2069 = vmatpush1.msra.mxu0 0.0
        %2070 = vmatprep.subr.mxu0 0.0
        %2071 = vmatpush1.msra.mxu0 0.0
        %2072 = vmatprep.subr.mxu0 0.0
        %2073 = vmatpush1.msra.mxu0 0.0
        %2074 = vmatprep.subr.mxu0 0.0
        %2075 = vmatpush1.msra.mxu0 0.0
        %2076 = vmatprep.subr.mxu0 0.0
        %2077 = vmatpush1.msra.mxu0 0.0
        %2078 = vmatprep.subr.mxu0 0.0
        %2079 = vmatpush1.msra.mxu0 0.0
        %2080 = vmatprep.subr.mxu0 0.0
        %2081 = vmatpush1.msra.mxu0 0.0
        %2082 = vmatprep.subr.mxu0 0.0
        %2083 = vmatpush1.msra.mxu0 0.0
        %2084 = vmatprep.subr.mxu0 0.0
        %2085 = vmatpush1.msra.mxu0 0.0
        %2086 = vmatprep.subr.mxu0 0.0
        %2087 = vmatpush1.msra.mxu0 %v1384
        %2088 = vmatprep.subr.mxu0 0.0
        %2089 = vmatpush1.msra.mxu0 %v1379
        %2090 = vmatprep.subr.mxu0 0.0
        %2091 = vmatpush2.msra.mxu0 0.0
        %2092 = vmatprep.subr.mxu0 0.0
        %2093 = vmatpush2.msra.mxu0 0.0
        %2094 = vmatprep.subr.mxu0 0.0
        %2095 = vmatpush2.msra.mxu0 0.0
        %2096 = vmatprep.subr.mxu0 0.0
        %2097 = vmatpush2.msra.mxu0 0.0
        %2098 = vmatprep.subr.mxu0 0.0
        %2099 = vmatpush2.msra.mxu0 0.0
        %2100 = vmatprep.subr.mxu0 0.0
        %2101 = vmatpush2.msra.mxu0 0.0
        %2102 = vmatprep.subr.mxu0 0.0
        %2103 = vmatpush2.msra.mxu0 0.0
        %2104 = vmatprep.subr.mxu0 0.0
        %2105 = vmatpush2.msra.mxu0 0.0
        %2106 = vmatprep.subr.mxu0 0.0
        %2107 = vmatpush2.msra.mxu0 0.0
        %2108 = vmatprep.subr.mxu0 0.0
        %2109 = vmatpush2.msra.mxu0 0.0
        %2110 = vmatprep.subr.mxu0 0.0
        %2111 = vmatpush2.msra.mxu0 0.0
        %2112 = vmatprep.subr.mxu0 0.0
        %2113 = vmatpush2.msra.mxu0 0.0
        %2114 = vmatprep.subr.mxu0 0.0
        %2115 = vmatpush2.msra.mxu0 0.0
        %2116 = vmatprep.subr.mxu0 0.0
        %2117 = vmatpush2.msra.mxu0 0.0
        %2118 = vmatprep.subr.mxu0 0.0
        %2119 = vmatpush2.msra.mxu0 0.0
        %2120 = vmatprep.subr.mxu0 0.0
        %2121 = vmatpush2.msra.mxu0 0.0
        %2122 = vmatprep.mubr.f32.mxu0 0.0
        %2123 = vmatmul.mubr.f32.gmra.mxu0 %v2053
        %v2124 = vpop.f32.mrf.mxu0
        %v2125 = vadd.f32 0.0, %v2124
        %v2126 = vpop.f32.mrf.mxu0
        %2127 = vmatprep.mubr.f32.mxu0 0.0
        %2128 = vmatmul.mubr.f32.gmra.mxu0 %v2056
        %v2129 = vpop.f32.mrf.mxu0
        %v2130 = vadd.f32 0.0, %v2129
        %v2131 = vpop.f32.mrf.mxu0
        %2132 = vdwg.mxu0
        %v2134 = vsel %vm1963, %v2046, 0
        %v2137 = vsel %vm1963, %v2047, 0
        %2139 = vmatprep.subr.mxu0 0.0
        %2140 = vmatpush1.msra.mxu0 0.0
        %2141 = vmatprep.subr.mxu0 0.0
        %2142 = vmatpush1.msra.mxu0 0.0
        %2143 = vmatprep.subr.mxu0 0.0
        %2144 = vmatpush1.msra.mxu0 0.0
        %2145 = vmatprep.subr.mxu0 0.0
        %2146 = vmatpush1.msra.mxu0 0.0
        %2147 = vmatprep.subr.mxu0 0.0
        %2148 = vmatpush1.msra.mxu0 0.0
        %2149 = vmatprep.subr.mxu0 0.0
        %2150 = vmatpush1.msra.mxu0 0.0
        %2151 = vmatprep.subr.mxu0 0.0
        %2152 = vmatpush1.msra.mxu0 0.0
        %2153 = vmatprep.subr.mxu0 0.0
        %2154 = vmatpush1.msra.mxu0 0.0
        %2155 = vmatprep.subr.mxu0 0.0
        %2156 = vmatpush1.msra.mxu0 0.0
        %2157 = vmatprep.subr.mxu0 0.0
        %2158 = vmatpush1.msra.mxu0 0.0
        %2159 = vmatprep.subr.mxu0 0.0
        %2160 = vmatpush1.msra.mxu0 0.0
        %2161 = vmatprep.subr.mxu0 0.0
        %2162 = vmatpush1.msra.mxu0 0.0
        %2163 = vmatprep.subr.mxu0 0.0
        %2164 = vmatpush1.msra.mxu0 0.0
        %2165 = vmatprep.subr.mxu0 0.0
        %2166 = vmatpush1.msra.mxu0 0.0
        %2167 = vmatprep.subr.mxu0 0.0
        %2168 = vmatpush1.msra.mxu0 %v1459
        %2169 = vmatprep.subr.mxu0 0.0
        %2170 = vmatpush1.msra.mxu0 %v1454
        %2171 = vmatprep.subr.mxu0 0.0
        %2172 = vmatpush2.msra.mxu0 0.0
        %2173 = vmatprep.subr.mxu0 0.0
        %2174 = vmatpush2.msra.mxu0 0.0
        %2175 = vmatprep.subr.mxu0 0.0
        %2176 = vmatpush2.msra.mxu0 0.0
        %2177 = vmatprep.subr.mxu0 0.0
        %2178 = vmatpush2.msra.mxu0 0.0
        %2179 = vmatprep.subr.mxu0 0.0
        %2180 = vmatpush2.msra.mxu0 0.0
        %2181 = vmatprep.subr.mxu0 0.0
        %2182 = vmatpush2.msra.mxu0 0.0
        %2183 = vmatprep.subr.mxu0 0.0
        %2184 = vmatpush2.msra.mxu0 0.0
        %2185 = vmatprep.subr.mxu0 0.0
        %2186 = vmatpush2.msra.mxu0 0.0
        %2187 = vmatprep.subr.mxu0 0.0
        %2188 = vmatpush2.msra.mxu0 0.0
        %2189 = vmatprep.subr.mxu0 0.0
        %2190 = vmatpush2.msra.mxu0 0.0
        %2191 = vmatprep.subr.mxu0 0.0
        %2192 = vmatpush2.msra.mxu0 0.0
        %2193 = vmatprep.subr.mxu0 0.0
        %2194 = vmatpush2.msra.mxu0 0.0
        %2195 = vmatprep.subr.mxu0 0.0
        %2196 = vmatpush2.msra.mxu0 0.0
        %2197 = vmatprep.subr.mxu0 0.0
        %2198 = vmatpush2.msra.mxu0 0.0
        %2199 = vmatprep.subr.mxu0 0.0
        %2200 = vmatpush2.msra.mxu0 0.0
        %2201 = vmatprep.subr.mxu0 0.0
        %2202 = vmatpush2.msra.mxu0 0.0
        %2203 = vmatprep.mubr.f32.mxu0 0.0
        %2204 = vmatmul.mubr.f32.gmra.mxu0 %v2134
        %v2205 = vpop.f32.mrf.mxu0
        %v2206 = vadd.f32 0.0, %v2205
        %v2207 = vpop.f32.mrf.mxu0
        %2208 = vmatprep.mubr.f32.mxu0 0.0
        %2209 = vmatmul.mubr.f32.gmra.mxu0 %v2137
        %v2210 = vpop.f32.mrf.mxu0
        %v2211 = vadd.f32 0.0, %v2210
        %v2212 = vpop.f32.mrf.mxu0
        %2213 = vdwg.mxu0
        %v2215 = vsel %vm1963, %v2048, 0
        %v2218 = vsel %vm1963, %v2049, 0
        %2220 = vmatprep.subr.mxu0 0.0
        %2221 = vmatpush1.msra.mxu0 0.0
        %2222 = vmatprep.subr.mxu0 0.0
        %2223 = vmatpush1.msra.mxu0 0.0
        %2224 = vmatprep.subr.mxu0 0.0
        %2225 = vmatpush1.msra.mxu0 0.0
        %2226 = vmatprep.subr.mxu0 0.0
        %2227 = vmatpush1.msra.mxu0 0.0
        %2228 = vmatprep.subr.mxu0 0.0
        %2229 = vmatpush1.msra.mxu0 0.0
        %2230 = vmatprep.subr.mxu0 0.0
        %2231 = vmatpush1.msra.mxu0 0.0
        %2232 = vmatprep.subr.mxu0 0.0
        %2233 = vmatpush1.msra.mxu0 0.0
        %2234 = vmatprep.subr.mxu0 0.0
        %2235 = vmatpush1.msra.mxu0 0.0
        %2236 = vmatprep.subr.mxu0 0.0
        %2237 = vmatpush1.msra.mxu0 0.0
        %2238 = vmatprep.subr.mxu0 0.0
        %2239 = vmatpush1.msra.mxu0 0.0
        %2240 = vmatprep.subr.mxu0 0.0
        %2241 = vmatpush1.msra.mxu0 0.0
        %2242 = vmatprep.subr.mxu0 0.0
        %2243 = vmatpush1.msra.mxu0 0.0
        %2244 = vmatprep.subr.mxu0 0.0
        %2245 = vmatpush1.msra.mxu0 0.0
        %2246 = vmatprep.subr.mxu0 0.0
        %2247 = vmatpush1.msra.mxu0 0.0
        %2248 = vmatprep.subr.mxu0 0.0
        %2249 = vmatpush1.msra.mxu0 %v1534
        %2250 = vmatprep.subr.mxu0 0.0
        %2251 = vmatpush1.msra.mxu0 %v1529
        %2252 = vmatprep.subr.mxu0 0.0
        %2253 = vmatpush2.msra.mxu0 0.0
        %2254 = vmatprep.subr.mxu0 0.0
        %2255 = vmatpush2.msra.mxu0 0.0
        %2256 = vmatprep.subr.mxu0 0.0
        %2257 = vmatpush2.msra.mxu0 0.0
        %2258 = vmatprep.subr.mxu0 0.0
        %2259 = vmatpush2.msra.mxu0 0.0
        %2260 = vmatprep.subr.mxu0 0.0
        %2261 = vmatpush2.msra.mxu0 0.0
        %2262 = vmatprep.subr.mxu0 0.0
        %2263 = vmatpush2.msra.mxu0 0.0
        %2264 = vmatprep.subr.mxu0 0.0
        %2265 = vmatpush2.msra.mxu0 0.0
        %2266 = vmatprep.subr.mxu0 0.0
        %2267 = vmatpush2.msra.mxu0 0.0
        %2268 = vmatprep.subr.mxu0 0.0
        %2269 = vmatpush2.msra.mxu0 0.0
        %2270 = vmatprep.subr.mxu0 0.0
        %2271 = vmatpush2.msra.mxu0 0.0
        %2272 = vmatprep.subr.mxu0 0.0
        %2273 = vmatpush2.msra.mxu0 0.0
        %2274 = vmatprep.subr.mxu0 0.0
        %2275 = vmatpush2.msra.mxu0 0.0
        %2276 = vmatprep.subr.mxu0 0.0
        %2277 = vmatpush2.msra.mxu0 0.0
        %2278 = vmatprep.subr.mxu0 0.0
        %2279 = vmatpush2.msra.mxu0 0.0
        %2280 = vmatprep.subr.mxu0 0.0
        %2281 = vmatpush2.msra.mxu0 0.0
        %2282 = vmatprep.subr.mxu0 0.0
        %2283 = vmatpush2.msra.mxu0 0.0
        %2284 = vmatprep.mubr.f32.mxu0 0.0
        %2285 = vmatmul.mubr.f32.gmra.mxu0 %v2215
        %v2286 = vpop.f32.mrf.mxu0
        %v2287 = vadd.f32 0.0, %v2286
        %v2288 = vpop.f32.mrf.mxu0
        %2289 = vmatprep.mubr.f32.mxu0 0.0
        %2290 = vmatmul.mubr.f32.gmra.mxu0 %v2218
        %v2291 = vpop.f32.mrf.mxu0
        %v2292 = vadd.f32 0.0, %v2291
        %v2293 = vpop.f32.mrf.mxu0
        %2294 = vdwg.mxu0
        %v2296 = vsel %vm1963, %v2050, 0
        %v2299 = vsel %vm1963, %v2051, 0
        %2301 = vmatprep.subr.mxu0 0.0
        %2302 = vmatpush1.msra.mxu0 0.0
        %2303 = vmatprep.subr.mxu0 0.0
        %2304 = vmatpush1.msra.mxu0 0.0
        %2305 = vmatprep.subr.mxu0 0.0
        %2306 = vmatpush1.msra.mxu0 0.0
        %2307 = vmatprep.subr.mxu0 0.0
        %2308 = vmatpush1.msra.mxu0 0.0
        %2309 = vmatprep.subr.mxu0 0.0
        %2310 = vmatpush1.msra.mxu0 0.0
        %2311 = vmatprep.subr.mxu0 0.0
        %2312 = vmatpush1.msra.mxu0 0.0
        %2313 = vmatprep.subr.mxu0 0.0
        %2314 = vmatpush1.msra.mxu0 0.0
        %2315 = vmatprep.subr.mxu0 0.0
        %2316 = vmatpush1.msra.mxu0 0.0
        %2317 = vmatprep.subr.mxu0 0.0
        %2318 = vmatpush1.msra.mxu0 0.0
        %2319 = vmatprep.subr.mxu0 0.0
        %2320 = vmatpush1.msra.mxu0 0.0
        %2321 = vmatprep.subr.mxu0 0.0
        %2322 = vmatpush1.msra.mxu0 0.0
        %2323 = vmatprep.subr.mxu0 0.0
        %2324 = vmatpush1.msra.mxu0 0.0
        %2325 = vmatprep.subr.mxu0 0.0
        %2326 = vmatpush1.msra.mxu0 0.0
        %2327 = vmatprep.subr.mxu0 0.0
        %2328 = vmatpush1.msra.mxu0 0.0
        %2329 = vmatprep.subr.mxu0 0.0
        %2330 = vmatpush1.msra.mxu0 %v1609
        %2331 = vmatprep.subr.mxu0 0.0
        %2332 = vmatpush1.msra.mxu0 %v1604
        %2333 = vmatprep.subr.mxu0 0.0
        %2334 = vmatpush2.msra.mxu0 0.0
        %2335 = vmatprep.subr.mxu0 0.0
        %2336 = vmatpush2.msra.mxu0 0.0
        %2337 = vmatprep.subr.mxu0 0.0
        %2338 = vmatpush2.msra.mxu0 0.0
        %2339 = vmatprep.subr.mxu0 0.0
        %2340 = vmatpush2.msra.mxu0 0.0
        %2341 = vmatprep.subr.mxu0 0.0
        %2342 = vmatpush2.msra.mxu0 0.0
        %2343 = vmatprep.subr.mxu0 0.0
        %2344 = vmatpush2.msra.mxu0 0.0
        %2345 = vmatprep.subr.mxu0 0.0
        %2346 = vmatpush2.msra.mxu0 0.0
        %2347 = vmatprep.subr.mxu0 0.0
        %2348 = vmatpush2.msra.mxu0 0.0
        %2349 = vmatprep.subr.mxu0 0.0
        %2350 = vmatpush2.msra.mxu0 0.0
        %2351 = vmatprep.subr.mxu0 0.0
        %2352 = vmatpush2.msra.mxu0 0.0
        %2353 = vmatprep.subr.mxu0 0.0
        %2354 = vmatpush2.msra.mxu0 0.0
        %2355 = vmatprep.subr.mxu0 0.0
        %2356 = vmatpush2.msra.mxu0 0.0
        %2357 = vmatprep.subr.mxu0 0.0
        %2358 = vmatpush2.msra.mxu0 0.0
        %2359 = vmatprep.subr.mxu0 0.0
        %2360 = vmatpush2.msra.mxu0 0.0
        %2361 = vmatprep.subr.mxu0 0.0
        %2362 = vmatpush2.msra.mxu0 0.0
        %2363 = vmatprep.subr.mxu0 0.0
        %2364 = vmatpush2.msra.mxu0 0.0
        %2365 = vmatprep.mubr.f32.mxu0 0.0
        %2366 = vmatmul.mubr.f32.gmra.mxu0 %v2296
        %v2367 = vpop.f32.mrf.mxu0
        %v2368 = vadd.f32 0.0, %v2367
        %v2369 = vpop.f32.mrf.mxu0
        %2370 = vmatprep.mubr.f32.mxu0 0.0
        %2371 = vmatmul.mubr.f32.gmra.mxu0 %v2299
        %v2372 = vpop.f32.mrf.mxu0
        %v2373 = vadd.f32 0.0, %v2372
        %v2374 = vpop.f32.mrf.mxu0
        %2375 = vdwg.mxu0
        %v2376 = vld [vmem:[%s609] sm:$0xff]
        %v2377 = vld [vmem:[%s609 + $0x8] sm:$0xff]
        %v2378 = vld [vmem:[%s609 + $0x10] sm:$0xff]
        %v2379 = vld [vmem:[%s609 + $0x18] sm:$0xff]
        %v2381 = vsel %vm1614, %v2125, 0
        %v2384 = vsel %vm1614, %v2130, 0
        %2386 = vmatprep.subr.mxu0 0.0
        %2387 = vmatpush1.msra.mxu0 0.0
        %2388 = vmatprep.subr.mxu0 0.0
        %2389 = vmatpush1.msra.mxu0 0.0
        %2390 = vmatprep.subr.mxu0 0.0
        %2391 = vmatpush1.msra.mxu0 0.0
        %2392 = vmatprep.subr.mxu0 0.0
        %2393 = vmatpush1.msra.mxu0 0.0
        %2394 = vmatprep.subr.mxu0 0.0
        %2395 = vmatpush1.msra.mxu0 0.0
        %2396 = vmatprep.subr.mxu0 0.0
        %2397 = vmatpush1.msra.mxu0 0.0
        %2398 = vmatprep.subr.mxu0 0.0
        %2399 = vmatpush1.msra.mxu0 0.0
        %2400 = vmatprep.subr.mxu0 0.0
        %2401 = vmatpush1.msra.mxu0 0.0
        %2402 = vmatprep.subr.mxu0 0.0
        %2403 = vmatpush1.msra.mxu0 0.0
        %2404 = vmatprep.subr.mxu0 0.0
        %2405 = vmatpush1.msra.mxu0 0.0
        %2406 = vmatprep.subr.mxu0 0.0
        %2407 = vmatpush1.msra.mxu0 0.0
        %2408 = vmatprep.subr.mxu0 0.0
        %2409 = vmatpush1.msra.mxu0 0.0
        %2410 = vmatprep.subr.mxu0 0.0
        %2411 = vmatpush1.msra.mxu0 0.0
        %2412 = vmatprep.subr.mxu0 0.0
        %2413 = vmatpush1.msra.mxu0 0.0
        %2414 = vmatprep.subr.mxu0 0.0
        %2415 = vmatpush1.msra.mxu0 0.0
        %2416 = vmatprep.subr.mxu0 0.0
        %2417 = vmatpush1.msra.mxu0 %v2376
        %2418 = vmatprep.subr.mxu0 0.0
        %2419 = vmatpush2.msra.mxu0 0.0
        %2420 = vmatprep.subr.mxu0 0.0
        %2421 = vmatpush2.msra.mxu0 0.0
        %2422 = vmatprep.subr.mxu0 0.0
        %2423 = vmatpush2.msra.mxu0 0.0
        %2424 = vmatprep.subr.mxu0 0.0
        %2425 = vmatpush2.msra.mxu0 0.0
        %2426 = vmatprep.subr.mxu0 0.0
        %2427 = vmatpush2.msra.mxu0 0.0
        %2428 = vmatprep.subr.mxu0 0.0
        %2429 = vmatpush2.msra.mxu0 0.0
        %2430 = vmatprep.subr.mxu0 0.0
        %2431 = vmatpush2.msra.mxu0 0.0
        %2432 = vmatprep.subr.mxu0 0.0
        %2433 = vmatpush2.msra.mxu0 0.0
        %2434 = vmatprep.subr.mxu0 0.0
        %2435 = vmatpush2.msra.mxu0 0.0
        %2436 = vmatprep.subr.mxu0 0.0
        %2437 = vmatpush2.msra.mxu0 0.0
        %2438 = vmatprep.subr.mxu0 0.0
        %2439 = vmatpush2.msra.mxu0 0.0
        %2440 = vmatprep.subr.mxu0 0.0
        %2441 = vmatpush2.msra.mxu0 0.0
        %2442 = vmatprep.subr.mxu0 0.0
        %2443 = vmatpush2.msra.mxu0 0.0
        %2444 = vmatprep.subr.mxu0 0.0
        %2445 = vmatpush2.msra.mxu0 0.0
        %2446 = vmatprep.subr.mxu0 0.0
        %2447 = vmatpush2.msra.mxu0 0.0
        %2448 = vmatprep.subr.mxu0 0.0
        %2449 = vmatpush2.msra.mxu0 0.0
        %2450 = vmatprep.mubr.f32.mxu0 0.0
        %2451 = vmatmul.mubr.f32.gmra.mxu0 %v2381
        %v2452 = vpop.f32.mrf.mxu0
        %v2453 = vadd.f32 0.0, %v2452
        %v2454 = vpop.f32.mrf.mxu0
        %2455 = vmatprep.mubr.f32.mxu0 0.0
        %2456 = vmatmul.mubr.f32.gmra.mxu0 %v2384
        %v2457 = vpop.f32.mrf.mxu0
        %v2458 = vadd.f32 0.0, %v2457
        %v2459 = vpop.f32.mrf.mxu0
        %2460 = vdwg.mxu0
        %v2462 = vsel %vm1614, %v2206, 0
        %v2465 = vsel %vm1614, %v2211, 0
        %2467 = vmatprep.subr.mxu0 0.0
        %2468 = vmatpush1.msra.mxu0 0.0
        %2469 = vmatprep.subr.mxu0 0.0
        %2470 = vmatpush1.msra.mxu0 0.0
        %2471 = vmatprep.subr.mxu0 0.0
        %2472 = vmatpush1.msra.mxu0 0.0
        %2473 = vmatprep.subr.mxu0 0.0
        %2474 = vmatpush1.msra.mxu0 0.0
        %2475 = vmatprep.subr.mxu0 0.0
        %2476 = vmatpush1.msra.mxu0 0.0
        %2477 = vmatprep.subr.mxu0 0.0
        %2478 = vmatpush1.msra.mxu0 0.0
        %2479 = vmatprep.subr.mxu0 0.0
        %2480 = vmatpush1.msra.mxu0 0.0
        %2481 = vmatprep.subr.mxu0 0.0
        %2482 = vmatpush1.msra.mxu0 0.0
        %2483 = vmatprep.subr.mxu0 0.0
        %2484 = vmatpush1.msra.mxu0 0.0
        %2485 = vmatprep.subr.mxu0 0.0
        %2486 = vmatpush1.msra.mxu0 0.0
        %2487 = vmatprep.subr.mxu0 0.0
        %2488 = vmatpush1.msra.mxu0 0.0
        %2489 = vmatprep.subr.mxu0 0.0
        %2490 = vmatpush1.msra.mxu0 0.0
        %2491 = vmatprep.subr.mxu0 0.0
        %2492 = vmatpush1.msra.mxu0 0.0
        %2493 = vmatprep.subr.mxu0 0.0
        %2494 = vmatpush1.msra.mxu0 0.0
        %2495 = vmatprep.subr.mxu0 0.0
        %2496 = vmatpush1.msra.mxu0 0.0
        %2497 = vmatprep.subr.mxu0 0.0
        %2498 = vmatpush1.msra.mxu0 %v2377
        %2499 = vmatprep.subr.mxu0 0.0
        %2500 = vmatpush2.msra.mxu0 0.0
        %2501 = vmatprep.subr.mxu0 0.0
        %2502 = vmatpush2.msra.mxu0 0.0
        %2503 = vmatprep.subr.mxu0 0.0
        %2504 = vmatpush2.msra.mxu0 0.0
        %2505 = vmatprep.subr.mxu0 0.0
        %2506 = vmatpush2.msra.mxu0 0.0
        %2507 = vmatprep.subr.mxu0 0.0
        %2508 = vmatpush2.msra.mxu0 0.0
        %2509 = vmatprep.subr.mxu0 0.0
        %2510 = vmatpush2.msra.mxu0 0.0
        %2511 = vmatprep.subr.mxu0 0.0
        %2512 = vmatpush2.msra.mxu0 0.0
        %2513 = vmatprep.subr.mxu0 0.0
        %2514 = vmatpush2.msra.mxu0 0.0
        %2515 = vmatprep.subr.mxu0 0.0
        %2516 = vmatpush2.msra.mxu0 0.0
        %2517 = vmatprep.subr.mxu0 0.0
        %2518 = vmatpush2.msra.mxu0 0.0
        %2519 = vmatprep.subr.mxu0 0.0
        %2520 = vmatpush2.msra.mxu0 0.0
        %2521 = vmatprep.subr.mxu0 0.0
        %2522 = vmatpush2.msra.mxu0 0.0
        %2523 = vmatprep.subr.mxu0 0.0
        %2524 = vmatpush2.msra.mxu0 0.0
        %2525 = vmatprep.subr.mxu0 0.0
        %2526 = vmatpush2.msra.mxu0 0.0
        %2527 = vmatprep.subr.mxu0 0.0
        %2528 = vmatpush2.msra.mxu0 0.0
        %2529 = vmatprep.subr.mxu0 0.0
        %2530 = vmatpush2.msra.mxu0 0.0
        %2531 = vmatprep.mubr.f32.mxu0 0.0
        %2532 = vmatmul.mubr.f32.gmra.mxu0 %v2462
        %v2533 = vpop.f32.mrf.mxu0
        %v2534 = vadd.f32 0.0, %v2533
        %v2535 = vpop.f32.mrf.mxu0
        %2536 = vmatprep.mubr.f32.mxu0 0.0
        %2537 = vmatmul.mubr.f32.gmra.mxu0 %v2465
        %v2538 = vpop.f32.mrf.mxu0
        %v2539 = vadd.f32 0.0, %v2538
        %v2540 = vpop.f32.mrf.mxu0
        %2541 = vdwg.mxu0
        %v2543 = vsel %vm1614, %v2287, 0
        %v2546 = vsel %vm1614, %v2292, 0
        %2548 = vmatprep.subr.mxu0 0.0
        %2549 = vmatpush1.msra.mxu0 0.0
        %2550 = vmatprep.subr.mxu0 0.0
        %2551 = vmatpush1.msra.mxu0 0.0
        %2552 = vmatprep.subr.mxu0 0.0
        %2553 = vmatpush1.msra.mxu0 0.0
        %2554 = vmatprep.subr.mxu0 0.0
        %2555 = vmatpush1.msra.mxu0 0.0
        %2556 = vmatprep.subr.mxu0 0.0
        %2557 = vmatpush1.msra.mxu0 0.0
        %2558 = vmatprep.subr.mxu0 0.0
        %2559 = vmatpush1.msra.mxu0 0.0
        %2560 = vmatprep.subr.mxu0 0.0
        %2561 = vmatpush1.msra.mxu0 0.0
        %2562 = vmatprep.subr.mxu0 0.0
        %2563 = vmatpush1.msra.mxu0 0.0
        %2564 = vmatprep.subr.mxu0 0.0
        %2565 = vmatpush1.msra.mxu0 0.0
        %2566 = vmatprep.subr.mxu0 0.0
        %2567 = vmatpush1.msra.mxu0 0.0
        %2568 = vmatprep.subr.mxu0 0.0
        %2569 = vmatpush1.msra.mxu0 0.0
        %2570 = vmatprep.subr.mxu0 0.0
        %2571 = vmatpush1.msra.mxu0 0.0
        %2572 = vmatprep.subr.mxu0 0.0
        %2573 = vmatpush1.msra.mxu0 0.0
        %2574 = vmatprep.subr.mxu0 0.0
        %2575 = vmatpush1.msra.mxu0 0.0
        %2576 = vmatprep.subr.mxu0 0.0
        %2577 = vmatpush1.msra.mxu0 0.0
        %2578 = vmatprep.subr.mxu0 0.0
        %2579 = vmatpush1.msra.mxu0 %v2378
        %2580 = vmatprep.subr.mxu0 0.0
        %2581 = vmatpush2.msra.mxu0 0.0
        %2582 = vmatprep.subr.mxu0 0.0
        %2583 = vmatpush2.msra.mxu0 0.0
        %2584 = vmatprep.subr.mxu0 0.0
        %2585 = vmatpush2.msra.mxu0 0.0
        %2586 = vmatprep.subr.mxu0 0.0
        %2587 = vmatpush2.msra.mxu0 0.0
        %2588 = vmatprep.subr.mxu0 0.0
        %2589 = vmatpush2.msra.mxu0 0.0
        %2590 = vmatprep.subr.mxu0 0.0
        %2591 = vmatpush2.msra.mxu0 0.0
        %2592 = vmatprep.subr.mxu0 0.0
        %2593 = vmatpush2.msra.mxu0 0.0
        %2594 = vmatprep.subr.mxu0 0.0
        %2595 = vmatpush2.msra.mxu0 0.0
        %2596 = vmatprep.subr.mxu0 0.0
        %2597 = vmatpush2.msra.mxu0 0.0
        %2598 = vmatprep.subr.mxu0 0.0
        %2599 = vmatpush2.msra.mxu0 0.0
        %2600 = vmatprep.subr.mxu0 0.0
        %2601 = vmatpush2.msra.mxu0 0.0
        %2602 = vmatprep.subr.mxu0 0.0
        %2603 = vmatpush2.msra.mxu0 0.0
        %2604 = vmatprep.subr.mxu0 0.0
        %2605 = vmatpush2.msra.mxu0 0.0
        %2606 = vmatprep.subr.mxu0 0.0
        %2607 = vmatpush2.msra.mxu0 0.0
        %2608 = vmatprep.subr.mxu0 0.0
        %2609 = vmatpush2.msra.mxu0 0.0
        %2610 = vmatprep.subr.mxu0 0.0
        %2611 = vmatpush2.msra.mxu0 0.0
        %2612 = vmatprep.mubr.f32.mxu0 0.0
        %2613 = vmatmul.mubr.f32.gmra.mxu0 %v2543
        %v2614 = vpop.f32.mrf.mxu0
        %v2615 = vadd.f32 0.0, %v2614
        %v2616 = vpop.f32.mrf.mxu0
        %2617 = vmatprep.mubr.f32.mxu0 0.0
        %2618 = vmatmul.mubr.f32.gmra.mxu0 %v2546
        %v2619 = vpop.f32.mrf.mxu0
        %v2620 = vadd.f32 0.0, %v2619
        %v2621 = vpop.f32.mrf.mxu0
        %2622 = vdwg.mxu0
        %v2624 = vsel %vm1614, %v2368, 0
        %v2627 = vsel %vm1614, %v2373, 0
        %2629 = vmatprep.subr.mxu0 0.0
        %2630 = vmatpush1.msra.mxu0 0.0
        %2631 = vmatprep.subr.mxu0 0.0
        %2632 = vmatpush1.msra.mxu0 0.0
        %2633 = vmatprep.subr.mxu0 0.0
        %2634 = vmatpush1.msra.mxu0 0.0
        %2635 = vmatprep.subr.mxu0 0.0
        %2636 = vmatpush1.msra.mxu0 0.0
        %2637 = vmatprep.subr.mxu0 0.0
        %2638 = vmatpush1.msra.mxu0 0.0
        %2639 = vmatprep.subr.mxu0 0.0
        %2640 = vmatpush1.msra.mxu0 0.0
        %2641 = vmatprep.subr.mxu0 0.0
        %2642 = vmatpush1.msra.mxu0 0.0
        %2643 = vmatprep.subr.mxu0 0.0
        %2644 = vmatpush1.msra.mxu0 0.0
        %2645 = vmatprep.subr.mxu0 0.0
        %2646 = vmatpush1.msra.mxu0 0.0
        %2647 = vmatprep.subr.mxu0 0.0
        %2648 = vmatpush1.msra.mxu0 0.0
        %2649 = vmatprep.subr.mxu0 0.0
        %2650 = vmatpush1.msra.mxu0 0.0
        %2651 = vmatprep.subr.mxu0 0.0
        %2652 = vmatpush1.msra.mxu0 0.0
        %2653 = vmatprep.subr.mxu0 0.0
        %2654 = vmatpush1.msra.mxu0 0.0
        %2655 = vmatprep.subr.mxu0 0.0
        %2656 = vmatpush1.msra.mxu0 0.0
        %2657 = vmatprep.subr.mxu0 0.0
        %2658 = vmatpush1.msra.mxu0 0.0
        %2659 = vmatprep.subr.mxu0 0.0
        %2660 = vmatpush1.msra.mxu0 %v2379
        %2661 = vmatprep.subr.mxu0 0.0
        %2662 = vmatpush2.msra.mxu0 0.0
        %2663 = vmatprep.subr.mxu0 0.0
        %2664 = vmatpush2.msra.mxu0 0.0
        %2665 = vmatprep.subr.mxu0 0.0
        %2666 = vmatpush2.msra.mxu0 0.0
        %2667 = vmatprep.subr.mxu0 0.0
        %2668 = vmatpush2.msra.mxu0 0.0
        %2669 = vmatprep.subr.mxu0 0.0
        %2670 = vmatpush2.msra.mxu0 0.0
        %2671 = vmatprep.subr.mxu0 0.0
        %2672 = vmatpush2.msra.mxu0 0.0
        %2673 = vmatprep.subr.mxu0 0.0
        %2674 = vmatpush2.msra.mxu0 0.0
        %2675 = vmatprep.subr.mxu0 0.0
        %2676 = vmatpush2.msra.mxu0 0.0
        %2677 = vmatprep.subr.mxu0 0.0
        %2678 = vmatpush2.msra.mxu0 0.0
        %2679 = vmatprep.subr.mxu0 0.0
        %2680 = vmatpush2.msra.mxu0 0.0
        %2681 = vmatprep.subr.mxu0 0.0
        %2682 = vmatpush2.msra.mxu0 0.0
        %2683 = vmatprep.subr.mxu0 0.0
        %2684 = vmatpush2.msra.mxu0 0.0
        %2685 = vmatprep.subr.mxu0 0.0
        %2686 = vmatpush2.msra.mxu0 0.0
        %2687 = vmatprep.subr.mxu0 0.0
        %2688 = vmatpush2.msra.mxu0 0.0
        %2689 = vmatprep.subr.mxu0 0.0
        %2690 = vmatpush2.msra.mxu0 0.0
        %2691 = vmatprep.subr.mxu0 0.0
        %2692 = vmatpush2.msra.mxu0 0.0
        %2693 = vmatprep.mubr.f32.mxu0 0.0
        %2694 = vmatmul.mubr.f32.gmra.mxu0 %v2624
        %v2695 = vpop.f32.mrf.mxu0
        %v2696 = vadd.f32 0.0, %v2695
        %v2697 = vpop.f32.mrf.mxu0
        %2698 = vmatprep.mubr.f32.mxu0 0.0
        %2699 = vmatmul.mubr.f32.gmra.mxu0 %v2627
        %v2700 = vpop.f32.mrf.mxu0
        %v2701 = vadd.f32 0.0, %v2700
        %v2702 = vpop.f32.mrf.mxu0
        %2703 = vdwg.mxu0
        %v2704 = vsel %vm665, %v2453, 0.0
        %v2705 = vsel %vm665, %v2534, 0.0
        %v2706 = vadd.f32 %v2704, %v2705
        %v2707 = vsel %vm665, %v2615, 0.0
        %v2708 = vadd.f32 %v2706, %v2707
        %v2709 = vsel %vm665, %v2696, 0.0
        %v2710 = vadd.f32 %v2708, %v2709
        %v2711 = vsel %vm665, %v2458, 0.0
        %v2712 = vsel %vm665, %v2539, 0.0
        %v2713 = vadd.f32 %v2711, %v2712
        %v2714 = vsel %vm665, %v2620, 0.0
        %v2715 = vadd.f32 %v2713, %v2714
        %v2716 = vsel %vm665, %v2701, 0.0
        %v2717 = vadd.f32 %v2715, %v2716
        %v2718 = vadd.f32 %v2710, %v647
        %v2719 = vadd.f32 %v2717, %v648
        %v2720 = vsel %vm665, %v2718, 0.0
        %2721 = vadd.xlane.f32.xlu0 %v2720
        %v2722 = vpop.xlane.xlu0 %2721
        %v2723 = vsel %vm665, %v2719, 0.0
        %2724 = vadd.xlane.f32.xlu0 %v2723
        %v2725 = vpop.xlane.xlu0 %2724
        %v2726 = vrcp.pop 32.0
        %v2727 = vmul.f32 %v2722, %v2726
        %v2728 = vmul.f32 %v2725, %v2726
        %v2729 = vsub.f32 %v2718, %v2727
        %v2730 = vsub.f32 %v2719, %v2728
        %v2731 = vmul.f32 %v2729, %v2729
        %v2732 = vmul.f32 %v2730, %v2730
        %v2733 = vsel %vm665, %v2731, 0.0
        %2734 = vadd.xlane.f32.xlu0 %v2733
        %v2735 = vpop.xlane.xlu0 %2734
        %v2736 = vsel %vm665, %v2732, 0.0
        %2737 = vadd.xlane.f32.xlu0 %v2736
        %v2738 = vpop.xlane.xlu0 %2737
        %v2739 = vmul.f32 %v2735, %v2726
        %v2740 = vmul.f32 %v2738, %v2726
        %v2741 = vadd.f32 %v2739, 1e-06
        %v2742 = vadd.f32 %v2740, 1e-06
        %v2743 = vrsqrt.pop %v2741
        %v2744 = vrsqrt.pop %v2742
        %v2745 = vmul.f32 %v2729, %v2743
        %v2746 = vmul.f32 %v2730, %v2744
        %v2747 = vld [vmem:[%s612] sm:$0x1]
        %v2749 = vlaneseq
        %v2750 = vshrl.u32 %v2749, 7
        %v2751 = vsub.s32 0, %v2750
        %v2752 = vrot.slane %v2747, %v2751
        %v2754 = vmul.f32 %v2745, %v2752
        %v2755 = vmul.f32 %v2746, %v2752
        %v2756 = vld [vmem:[%s615] sm:$0x1]
        %v2758 = vlaneseq
        %v2759 = vshrl.u32 %v2758, 7
        %v2760 = vsub.s32 0, %v2759
        %v2761 = vrot.slane %v2756, %v2760
        %v2763 = vadd.f32 %v2754, %v2761
        %v2764 = vadd.f32 %v2755, %v2761
        %v2765 = vld [vmem:[%s620] sm:$0xff]
        %v2766 = vld [vmem:[%s620 + $0x8] sm:$0xff]
        %v2767 = vld [vmem:[%s620 + $0x10] sm:$0xff]
        %v2768 = vld [vmem:[%s620 + $0x18] sm:$0xff]
        %v2769 = vld [vmem:[%s623] sm:$0x1]
        %v2771 = vlaneseq
        %v2772 = vshrl.u32 %v2771, 7
        %v2773 = vsub.s32 0, %v2772
        %v2774 = vrot.slane %v2769, %v2773
        %v2777 = vsel %vm665, %v2763, 0
        %v2780 = vsel %vm665, %v2764, 0
        %2782 = vmatprep.subr.mxu0 0.0
        %2783 = vmatpush1.msra.mxu0 0.0
        %2784 = vmatprep.subr.mxu0 0.0
        %2785 = vmatpush1.msra.mxu0 0.0
        %2786 = vmatprep.subr.mxu0 0.0
        %2787 = vmatpush1.msra.mxu0 0.0
        %2788 = vmatprep.subr.mxu0 0.0
        %2789 = vmatpush1.msra.mxu0 0.0
        %2790 = vmatprep.subr.mxu0 0.0
        %2791 = vmatpush1.msra.mxu0 0.0
        %2792 = vmatprep.subr.mxu0 0.0
        %2793 = vmatpush1.msra.mxu0 0.0
        %2794 = vmatprep.subr.mxu0 0.0
        %2795 = vmatpush1.msra.mxu0 0.0
        %2796 = vmatprep.subr.mxu0 0.0
        %2797 = vmatpush1.msra.mxu0 0.0
        %2798 = vmatprep.subr.mxu0 0.0
        %2799 = vmatpush1.msra.mxu0 0.0
        %2800 = vmatprep.subr.mxu0 0.0
        %2801 = vmatpush1.msra.mxu0 0.0
        %2802 = vmatprep.subr.mxu0 0.0
        %2803 = vmatpush1.msra.mxu0 0.0
        %2804 = vmatprep.subr.mxu0 0.0
        %2805 = vmatpush1.msra.mxu0 0.0
        %2806 = vmatprep.subr.mxu0 0.0
        %2807 = vmatpush1.msra.mxu0 %v2768
        %2808 = vmatprep.subr.mxu0 0.0
        %2809 = vmatpush1.msra.mxu0 %v2767
        %2810 = vmatprep.subr.mxu0 0.0
        %2811 = vmatpush1.msra.mxu0 %v2766
        %2812 = vmatprep.subr.mxu0 0.0
        %2813 = vmatpush1.msra.mxu0 %v2765
        %2814 = vmatprep.subr.mxu0 0.0
        %2815 = vmatpush2.msra.mxu0 0.0
        %2816 = vmatprep.subr.mxu0 0.0
        %2817 = vmatpush2.msra.mxu0 0.0
        %2818 = vmatprep.subr.mxu0 0.0
        %2819 = vmatpush2.msra.mxu0 0.0
        %2820 = vmatprep.subr.mxu0 0.0
        %2821 = vmatpush2.msra.mxu0 0.0
        %2822 = vmatprep.subr.mxu0 0.0
        %2823 = vmatpush2.msra.mxu0 0.0
        %2824 = vmatprep.subr.mxu0 0.0
        %2825 = vmatpush2.msra.mxu0 0.0
        %2826 = vmatprep.subr.mxu0 0.0
        %2827 = vmatpush2.msra.mxu0 0.0
        %2828 = vmatprep.subr.mxu0 0.0
        %2829 = vmatpush2.msra.mxu0 0.0
        %2830 = vmatprep.subr.mxu0 0.0
        %2831 = vmatpush2.msra.mxu0 0.0
        %2832 = vmatprep.subr.mxu0 0.0
        %2833 = vmatpush2.msra.mxu0 0.0
        %2834 = vmatprep.subr.mxu0 0.0
        %2835 = vmatpush2.msra.mxu0 0.0
        %2836 = vmatprep.subr.mxu0 0.0
        %2837 = vmatpush2.msra.mxu0 0.0
        %2838 = vmatprep.subr.mxu0 0.0
        %2839 = vmatpush2.msra.mxu0 0.0
        %2840 = vmatprep.subr.mxu0 0.0
        %2841 = vmatpush2.msra.mxu0 0.0
        %2842 = vmatprep.subr.mxu0 0.0
        %2843 = vmatpush2.msra.mxu0 0.0
        %2844 = vmatprep.subr.mxu0 0.0
        %2845 = vmatpush2.msra.mxu0 0.0
        %2846 = vmatprep.mubr.f32.mxu0 0.0
        %2847 = vmatmul.mubr.f32.gmra.mxu0 %v2777
        %v2848 = vpop.f32.mrf.mxu0
        %v2849 = vadd.f32 %v2774, %v2848
        %v2850 = vpop.f32.mrf.mxu0
        %2851 = vmatprep.mubr.f32.mxu0 0.0
        %2852 = vmatmul.mubr.f32.gmra.mxu0 %v2780
        %v2853 = vpop.f32.mrf.mxu0
        %v2854 = vadd.f32 %v2774, %v2853
        %v2855 = vpop.f32.mrf.mxu0
        %2856 = vdwg.mxu0
        %v2857 = vmax.f32 %v2849, 0.0
        %v2858 = vmax.f32 %v2854, 0.0
        %v2859 = vld [vmem:[%s628] sm:$0xff]
        %v2860 = vld [vmem:[%s628 + $0x8] sm:$0xff]
        %v2861 = vld [vmem:[%s628 + $0x10] sm:$0xff]
        %v2862 = vld [vmem:[%s628 + $0x18] sm:$0xff]
        %v2863 = vld [vmem:[%s628 + $0x20] sm:$0xff]
        %v2864 = vld [vmem:[%s628 + $0x28] sm:$0xff]
        %v2865 = vld [vmem:[%s628 + $0x30] sm:$0xff]
        %v2866 = vld [vmem:[%s628 + $0x38] sm:$0xff]
        %v2867 = vld [vmem:[%s631] sm:$0x1]
        %v2869 = vlaneseq
        %v2870 = vshrl.u32 %v2869, 7
        %v2871 = vsub.s32 0, %v2870
        %v2872 = vrot.slane %v2867, %v2871
        %vm2874 = vcmask 523264
        %v2876 = vsel %vm2874, %v2857, 0
        %v2879 = vsel %vm2874, %v2858, 0
        %2881 = vmatprep.subr.mxu0 0.0
        %2882 = vmatpush1.msra.mxu0 0.0
        %2883 = vmatprep.subr.mxu0 0.0
        %2884 = vmatpush1.msra.mxu0 0.0
        %2885 = vmatprep.subr.mxu0 0.0
        %2886 = vmatpush1.msra.mxu0 0.0
        %2887 = vmatprep.subr.mxu0 0.0
        %2888 = vmatpush1.msra.mxu0 0.0
        %2889 = vmatprep.subr.mxu0 0.0
        %2890 = vmatpush1.msra.mxu0 0.0
        %2891 = vmatprep.subr.mxu0 0.0
        %2892 = vmatpush1.msra.mxu0 0.0
        %2893 = vmatprep.subr.mxu0 0.0
        %2894 = vmatpush1.msra.mxu0 0.0
        %2895 = vmatprep.subr.mxu0 0.0
        %2896 = vmatpush1.msra.mxu0 0.0
        %2897 = vmatprep.subr.mxu0 0.0
        %2898 = vmatpush1.msra.mxu0 %v2866
        %2899 = vmatprep.subr.mxu0 0.0
        %2900 = vmatpush1.msra.mxu0 %v2865
        %2901 = vmatprep.subr.mxu0 0.0
        %2902 = vmatpush1.msra.mxu0 %v2864
        %2903 = vmatprep.subr.mxu0 0.0
        %2904 = vmatpush1.msra.mxu0 %v2863
        %2905 = vmatprep.subr.mxu0 0.0
        %2906 = vmatpush1.msra.mxu0 %v2862
        %2907 = vmatprep.subr.mxu0 0.0
        %2908 = vmatpush1.msra.mxu0 %v2861
        %2909 = vmatprep.subr.mxu0 0.0
        %2910 = vmatpush1.msra.mxu0 %v2860
        %2911 = vmatprep.subr.mxu0 0.0
        %2912 = vmatpush1.msra.mxu0 %v2859
        %2913 = vmatprep.subr.mxu0 0.0
        %2914 = vmatpush2.msra.mxu0 0.0
        %2915 = vmatprep.subr.mxu0 0.0
        %2916 = vmatpush2.msra.mxu0 0.0
        %2917 = vmatprep.subr.mxu0 0.0
        %2918 = vmatpush2.msra.mxu0 0.0
        %2919 = vmatprep.subr.mxu0 0.0
        %2920 = vmatpush2.msra.mxu0 0.0
        %2921 = vmatprep.subr.mxu0 0.0
        %2922 = vmatpush2.msra.mxu0 0.0
        %2923 = vmatprep.subr.mxu0 0.0
        %2924 = vmatpush2.msra.mxu0 0.0
        %2925 = vmatprep.subr.mxu0 0.0
        %2926 = vmatpush2.msra.mxu0 0.0
        %2927 = vmatprep.subr.mxu0 0.0
        %2928 = vmatpush2.msra.mxu0 0.0
        %2929 = vmatprep.subr.mxu0 0.0
        %2930 = vmatpush2.msra.mxu0 0.0
        %2931 = vmatprep.subr.mxu0 0.0
        %2932 = vmatpush2.msra.mxu0 0.0
        %2933 = vmatprep.subr.mxu0 0.0
        %2934 = vmatpush2.msra.mxu0 0.0
        %2935 = vmatprep.subr.mxu0 0.0
        %2936 = vmatpush2.msra.mxu0 0.0
        %2937 = vmatprep.subr.mxu0 0.0
        %2938 = vmatpush2.msra.mxu0 0.0
        %2939 = vmatprep.subr.mxu0 0.0
        %2940 = vmatpush2.msra.mxu0 0.0
        %2941 = vmatprep.subr.mxu0 0.0
        %2942 = vmatpush2.msra.mxu0 0.0
        %2943 = vmatprep.subr.mxu0 0.0
        %2944 = vmatpush2.msra.mxu0 0.0
        %2945 = vmatprep.mubr.f32.mxu0 0.0
        %2946 = vmatmul.mubr.f32.gmra.mxu0 %v2876
        %v2947 = vpop.f32.mrf.mxu0
        %v2948 = vadd.f32 %v2872, %v2947
        %v2949 = vpop.f32.mrf.mxu0
        %2950 = vmatprep.mubr.f32.mxu0 0.0
        %2951 = vmatmul.mubr.f32.gmra.mxu0 %v2879
        %v2952 = vpop.f32.mrf.mxu0
        %v2953 = vadd.f32 %v2872, %v2952
        %v2954 = vpop.f32.mrf.mxu0
        %2955 = vdwg.mxu0
        %v2956 = vadd.f32 %v2948, %v2763
        %v2957 = vadd.f32 %v2953, %v2764
        %v2958 = vsel %vm665, %v2956, 0.0
        %2959 = vadd.xlane.f32.xlu0 %v2958
        %v2960 = vpop.xlane.xlu0 %2959
        %v2961 = vsel %vm665, %v2957, 0.0
        %2962 = vadd.xlane.f32.xlu0 %v2961
        %v2963 = vpop.xlane.xlu0 %2962
        %v2964 = vmul.f32 %v2960, %v2726
        %v2965 = vmul.f32 %v2963, %v2726
        %v2966 = vsub.f32 %v2956, %v2964
        %v2967 = vsub.f32 %v2957, %v2965
        %v2968 = vmul.f32 %v2966, %v2966
        %v2969 = vmul.f32 %v2967, %v2967
        %v2970 = vsel %vm665, %v2968, 0.0
        %2971 = vadd.xlane.f32.xlu0 %v2970
        %v2972 = vpop.xlane.xlu0 %2971
        %v2973 = vsel %vm665, %v2969, 0.0
        %2974 = vadd.xlane.f32.xlu0 %v2973
        %v2975 = vpop.xlane.xlu0 %2974
        %v2976 = vmul.f32 %v2972, %v2726
        %v2977 = vmul.f32 %v2975, %v2726
        %v2978 = vadd.f32 %v2976, 1e-06
        %v2979 = vadd.f32 %v2977, 1e-06
        %v2980 = vrsqrt.pop %v2978
        %v2981 = vrsqrt.pop %v2979
        %v2982 = vmul.f32 %v2966, %v2980
        %v2983 = vmul.f32 %v2967, %v2981
        %v2984 = vld [vmem:[%s634] sm:$0x1]
        %v2986 = vlaneseq
        %v2987 = vshrl.u32 %v2986, 7
        %v2988 = vsub.s32 0, %v2987
        %v2989 = vrot.slane %v2984, %v2988
        %v2991 = vmul.f32 %v2982, %v2989
        %v2992 = vmul.f32 %v2983, %v2989
        %v2993 = vld [vmem:[%s637] sm:$0x1]
        %v2995 = vlaneseq
        %v2996 = vshrl.u32 %v2995, 7
        %v2997 = vsub.s32 0, %v2996
        %v2998 = vrot.slane %v2993, %v2997
        %v3000 = vadd.f32 %v2991, %v2998
        %v3001 = vadd.f32 %v2992, %v2998
        %3002 = vst.msk [vmem:[#allocation2] sm:$0xff] %vm665, %v3000
        %3003 = vst.msk [vmem:[#allocation2 + $0x8] sm:$0xff] %vm665, %v3001
        %p3004 = scmp.eq.s32.totalorder %s26, 1
        // Predicated region
        $region81: #{tpu_custom_call.1} parent=75 // pred_check
          %p3005 = pneg %p3004
        $region82: #{tpu_custom_call.1} parent=75 // pred_check_branch
          %3007 = sbr.rel (%p3005) target = $region84
        $region83: #{tpu_custom_call.1} parent=75 // pred_region
          %3008 = vst.msk [vmem:[#allocation3] sm:$0xff] %vm665, %v3000
          %3009 = vst.msk [vmem:[#allocation3 + $0x8] sm:$0xff] %vm665, %v3001
        $region84: #{tpu_custom_call.1} parent=75 // pred_fallthru
          _
        // Predicated region
        $region85: #{tpu_custom_call.1} parent=75 // pred_check
          %p3010 = pneg %p393
        $region86: #{tpu_custom_call.1} parent=75 // pred_check_branch
          %3012 = sbr.rel (%p3010) target = $region88
        $region87: #{tpu_custom_call.1} parent=75 // pred_region
          %s3014 = ssub.s32 256, 256
          %3015 = vsyncadd [#allocation4], %s3014
          %s3016 = sshll.u32 [#allocation3], 4
          %s3017 = int_to_ptr.vmem [resolvable:$true] %s3016
          %3022 = dma.vmem_to_hbm [thread:$0]  %s3017, 256, %s14, [#allocation4], 128, 128, 8
        $region88: #{tpu_custom_call.1} parent=75 // pred_fallthru
          _
        // Predicated region
        $region89: #{tpu_custom_call.1} parent=75 // pred_check
          %p3023 = pneg %p393
        $region90: #{tpu_custom_call.1} parent=75 // pred_check_branch
          %3025 = sbr.rel (%p3023) target = $region92
        $region91: #{tpu_custom_call.1} parent=75 // pred_region
          %3026 = dma.done [#allocation4], 256
        $region92: #{tpu_custom_call.1} parent=75 // pred_fallthru
          _
      $region76: #{tpu_custom_call.1} parent=5 // pred_fallthru
        _
      %p3027 = scmp.le.s32.totalorder 2, %s21
      // Predicated region
      $region93: #{tpu_custom_call.1} parent=5 // pred_check
        %p3028 = pneg %p3027
      $region94: #{tpu_custom_call.1} parent=5 // pred_check_branch
        %3030 = sbr.rel (%p3028) target = $region96
      $region95: #{tpu_custom_call.1} parent=5 // pred_region
        %s3031 = ssub.s32 %s21, 2
      $region96: #{tpu_custom_call.1} parent=5 // pred_fallthru
        _
    $region6: #{tpu_custom_call.1} parent=1 // loop_footer
      %s25 = sadd.s32 1, %s21
    $region7: #{tpu_custom_call.1} parent=1 // loop_footer_branch
      %20 = sbr.rel target = $region3
    $region8: #{tpu_custom_call.1} parent=1 // loop_exit
      _
    %3032 = vsyncpa [#allocation4], 1
    %s3033 = scalar_lea.sflag [#allocation4], 1
    %3034 = vsyncpa %s3033, 1

</llo_original>
